<compile_context>
chip_gen: v7x
topology: tpu7x:2x2x1
jax: 0.10.0
libtpu: 0.0.40
codegen_flags: <defaults>
</compile_context>

<pallas_src>
import math

import numpy as np

import jax
import jax.numpy as jnp
from jax import lax
from jax.experimental import pallas as pl
from jax.experimental.pallas import tpu as pltpu

KERNEL_SIZE = 3
STRIDE = 2
PADDING = 1
CHANNEL_LIST = [8, 16, 32]
BN_EPS = 1e-5


def _round_up(x, m):
    return (x + m - 1) // m * m


# ----------------------------- host-side planning ---------------------------

def _make_plan(N, H, W, in_c, channel_list, k=KERNEL_SIZE, s=STRIDE, p=PADDING):
    """Shape-only plan: per layer, activation column ordering and the (k*k, M)
    patch-gather source-index tables consumed inside the fused kernel."""
    layers = []
    col_of = np.arange(N * H * W, dtype=np.int32).reshape(N, H, W)
    cur_c = in_c
    for idx, out_c in enumerate(channel_list):
        Ho = (H + 2 * p - k) // s + 1
        Wo = (W + 2 * p - k) // s + 1
        pool = idx % 2 == 1
        if pool and (Ho % 2 or Wo % 2):
            # TODO(synk): PyTorch MaxPool2d floors odd extents; not needed here.
            raise NotImplementedError("fused maxpool assumes even conv output")
        if pool:
            Hq, Wq = Ho // 2, Wo // 2
            out_col = np.zeros((N, Ho, Wo), dtype=np.int32)
            for di in range(2):
                for dj in range(2):
                    for n in range(N):
                        for i in range(Hq):
                            for j in range(Wq):
                                out_col[n, 2 * i + di, 2 * j + dj] = (
                                    (di * 2 + dj) * N * Hq * Wq
                                    + n * Hq * Wq + i * Wq + j)
        else:
            out_col = np.arange(N * Ho * Wo, dtype=np.int32).reshape(N, Ho, Wo)

        M = N * Ho * Wo
        R = N * H * W
        cin_pad = _round_up(cur_c, 8) if idx == 0 else cur_c

        src = np.full((k * k, M), -1, dtype=np.int32)   # -1 == zero padding
        for ki in range(k):
            for kj in range(k):
                t = ki * k + kj
                for n in range(N):
                    for ho in range(Ho):
                        for wo in range(Wo):
                            hi = s * ho - p + ki
                            wi = s * wo - p + kj
                            if 0 <= hi < H and 0 <= wi < W:
                                src[t, out_col[n, ho, wo]] = col_of[n, hi, wi]

        layers.append(dict(cin=cur_c, cin_pad=cin_pad, cout=out_c,
                           R=R, M=M, pool=pool, src=src))

        if pool:
            H, W = Ho // 2, Wo // 2
            col_of = np.arange(N * H * W, dtype=np.int32).reshape(N, H, W)
        else:
            H, W = Ho, Wo
            col_of = out_col
        cur_c = out_c
    return layers, (H, W)


# ------------------------------- fused kernel --------------------------------

def _build_fused_kernel(plan, k=KERNEL_SIZE):
    L = len(plan)
    taps = k * k

    def kernel(*refs):
        a0_ref = refs[0]
        w_refs = refs[1:1 + L]                 # BN-scale-folded weights (Cout, 9*Cin)
        sh_refs = refs[1 + L:1 + 2 * L]        # per-channel shift (Cout, 1)
        src_refs = refs[1 + 2 * L:1 + 3 * L]   # (9, M) int32 gather tables
        o_ref = refs[1 + 3 * L]
        p_refs = refs[2 + 3 * L:2 + 4 * L]     # VMEM patch scratch per layer

        act = a0_ref[...]                                   # (Cin_pad0, R0)
        for l, cfg in enumerate(plan):
            cp, R, M = cfg["cin_pad"], cfg["R"], cfg["M"]
            p_ref = p_refs[l]

            # In-VMEM patch gather: one-hot (R, M) masks from the int32 source
            # table, applied on the MXU. (-1 entries never match -> zero pad.)
            row_ids = lax.broadcasted_iota(jnp.int32, (R, M), 0)
            for t in range(taps):
                onehot = jnp.where(row_ids == src_refs[l][t:t + 1, :], 1.0, 0.0)
                p_ref[t * cp:(t + 1) * cp, :] = jnp.dot(
                    act, onehot, preferred_element_type=jnp.float32)

            # Conv (with BN scale pre-folded into W) as one aligned matmul;
            # fused bias/BN shift + ReLU epilogue.
            z = jnp.dot(w_refs[l][...], p_ref[...],
                        preferred_element_type=jnp.float32)
            act = jnp.maximum(z + sh_refs[l][...], 0.0)

            if cfg["pool"]:
                # Columns were emitted pool-block-major -> 4 static lane slices.
                q = M // 4
                act = jnp.maximum(
                    jnp.maximum(act[:, 0 * q:1 * q], act[:, 1 * q:2 * q]),
                    jnp.maximum(act[:, 2 * q:3 * q], act[:, 3 * q:4 * q]))

        o_ref[...] = act

    return kernel


# ------------------------------- glue / setup --------------------------------

def init_params(key, in_channels, channel_list, kernel_size):
    """Matches the module init: kaiming_uniform(relu) conv weights, conv bias=0,
    BN gamma=1 beta=0, running stats (0, 1)."""
    params = []
    cin_list = [in_channels] + channel_list[:-1]
    for cin, cout in zip(cin_list, channel_list):
        key, wk = jax.random.split(key)
        fan_in = cin * kernel_size * kernel_size
        bound = math.sqrt(2.0) * math.sqrt(3.0 / fan_in)
        w = jax.random.uniform(wk, (kernel_size, kernel_size, cin, cout),
                               jnp.float32, -bound, bound)  # HWIO
        params.append(dict(
            w=w,
            b=jnp.zeros((cout,), jnp.float32),
            gamma=jnp.ones((cout,), jnp.float32),
            beta=jnp.zeros((cout,), jnp.float32),
            mean=jnp.zeros((cout,), jnp.float32),
            var=jnp.ones((cout,), jnp.float32),
        ))
    return params


def cnn_base_forward(x_nchw, params):
    # TODO(synk): Dropout is stochastic in train mode; implemented as identity
    # (inference semantics). BatchNorm uses running statistics.
    N, C, H, W = x_nchw.shape
    channel_list = [int(p["w"].shape[-1]) for p in params]
    plan, (Hf, Wf) = _make_plan(N, H, W, C, channel_list)

    # Channel-major, lane-dense layer-0 activation: (Cin_pad0, N*H*W).
    cp0 = plan[0]["cin_pad"]
    a0 = jnp.transpose(x_nchw, (1, 0, 2, 3)).reshape(C, N * H * W)
    a0 = jnp.pad(a0, ((0, cp0 - C), (0, 0)))

    w_in, sh_in, src_in = [], [], []
    for p, cfg in zip(params, plan):
        cin, cout = p["w"].shape[2], p["w"].shape[3]
        scale = p["gamma"] / jnp.sqrt(p["var"] + BN_EPS)        # (cout,)
        w = p["w"] * scale                                      # fold BN scale
        if cfg["cin_pad"] > cin:
            w = jnp.pad(w, ((0, 0), (0, 0), (0, cfg["cin_pad"] - cin), (0, 0)))
        w_in.append(w.reshape(KERNEL_SIZE * KERNEL_SIZE * cfg["cin_pad"], cout).T)
        shift = (p["b"] - p["mean"]) * scale + p["beta"]        # bias folded in
        sh_in.append(shift.reshape(cout, 1))
        src_in.append(jnp.asarray(cfg["src"], dtype=jnp.int32))

    inputs = [a0] + w_in + sh_in + src_in
    cout_f = plan[-1]["cout"]
    M_f = plan[-1]["M"] // (4 if plan[-1]["pool"] else 1)

    out = pl.pallas_call(
        _build_fused_kernel(plan),
        out_shape=jax.ShapeDtypeStruct((cout_f, M_f), jnp.float32),
        grid=(1,),
        in_specs=[pl.BlockSpec(a.shape, lambda i: (0, 0)) for a in inputs],
        out_specs=pl.BlockSpec((cout_f, M_f), lambda i: (0, 0)),
        scratch_shapes=[
            pltpu.VMEM((KERNEL_SIZE * KERNEL_SIZE * cfg["cin_pad"], cfg["M"]),
                       jnp.float32)
            for cfg in plan],
        compiler_params=pltpu.CompilerParams(
            dimension_semantics=("arbitrary",)),
    )(*inputs)

    # (Cout, N*Hf*Wf) channel-major -> NCHW
    return jnp.transpose(out.reshape(cout_f, N, Hf, Wf), (1, 0, 2, 3))


def reference_forward(x_nchw, params):
    x = jnp.transpose(x_nchw, (0, 2, 3, 1))
    for idx, p in enumerate(params):
        y = lax.conv_general_dilated(
            x, p["w"], window_strides=(STRIDE, STRIDE),
            padding=[(PADDING, PADDING), (PADDING, PADDING)],
            dimension_numbers=("NHWC", "HWIO", "NHWC"),
            precision=lax.Precision.HIGHEST)
        y = y + p["b"]
        scale = p["gamma"] / jnp.sqrt(p["var"] + BN_EPS)
        y = (y - p["mean"]) * scale + p["beta"]
        y = jnp.maximum(y, 0.0)
        if idx % 2 == 1:
            y = lax.reduce_window(y, -jnp.inf, lax.max,
                                  (1, 2, 2, 1), (1, 2, 2, 1), "VALID")
        x = y
    return jnp.transpose(x, (0, 3, 1, 2))


if __name__ == "__main__":
    key = jax.random.PRNGKey(0)
    kx, kp = jax.random.split(key)

    # Small shapes: batch=2, input_size=(3, 16, 16), channel_list=[8, 16, 32]
    x = jax.random.normal(kx, (2, 3, 16, 16), jnp.float32)  # NCHW (PyTorch conv.)
    params = init_params(kp, 3, CHANNEL_LIST, KERNEL_SIZE)

    fwd = jax.jit(cnn_base_forward)
    out = jax.block_until_ready(fwd(x, params))

    # conv(s2): 16->8 ; conv(s2): 8->4 ; maxpool: 4->2 ; conv(s2): 2->1
    assert out.shape == (2, CHANNEL_LIST[-1], 1, 1), out.shape

    ref = jax.block_until_ready(reference_forward(x, params))
    assert jnp.allclose(out, ref, rtol=1e-2, atol=1e-2), \
        float(jnp.max(jnp.abs(out - ref)))

    print("KERNEL_OK")
</pallas_src>

<mosaic_0001>
module attributes {stable_mosaic.version = 11 : i64} {
  func.func @kernel(%arg0: i32, %arg1: memref<8x512xf32, #tpu.memory_space<vmem>>, %arg2: memref<8x72xf32, #tpu.memory_space<vmem>>, %arg3: memref<16x72xf32, #tpu.memory_space<vmem>>, %arg4: memref<32x144xf32, #tpu.memory_space<vmem>>, %arg5: memref<8x1xf32, #tpu.memory_space<vmem>>, %arg6: memref<16x1xf32, #tpu.memory_space<vmem>>, %arg7: memref<32x1xf32, #tpu.memory_space<vmem>>, %arg8: memref<9x128xi32, #tpu.memory_space<vmem>>, %arg9: memref<9x32xi32, #tpu.memory_space<vmem>>, %arg10: memref<9x2xi32, #tpu.memory_space<vmem>>, %arg11: memref<32x2xf32, #tpu.memory_space<vmem>>, %arg12: memref<72x128xf32, #tpu.memory_space<vmem>>, %arg13: memref<72x32xf32, #tpu.memory_space<vmem>>, %arg14: memref<144x2xf32, #tpu.memory_space<vmem>>) attributes {dimension_semantics = [#tpu.dimension_semantics<arbitrary>], iteration_bounds = array<i64: 1>, scalar_prefetch = 0 : i64, scratch_operands = 3 : i64, tpu.core_type = #tpu.core_type<tc>, window_params = [{pipeline_mode = #tpu.pipeline_mode<synchronous>, transform_indices = @transform_0, window_bounds = array<i64: 8, 512>}, {pipeline_mode = #tpu.pipeline_mode<synchronous>, transform_indices = @transform_1, window_bounds = array<i64: 8, 72>}, {pipeline_mode = #tpu.pipeline_mode<synchronous>, transform_indices = @transform_2, window_bounds = array<i64: 16, 72>}, {pipeline_mode = #tpu.pipeline_mode<synchronous>, transform_indices = @transform_3, window_bounds = array<i64: 32, 144>}, {pipeline_mode = #tpu.pipeline_mode<synchronous>, transform_indices = @transform_4, window_bounds = array<i64: 8, 1>}, {pipeline_mode = #tpu.pipeline_mode<synchronous>, transform_indices = @transform_5, window_bounds = array<i64: 16, 1>}, {pipeline_mode = #tpu.pipeline_mode<synchronous>, transform_indices = @transform_6, window_bounds = array<i64: 32, 1>}, {pipeline_mode = #tpu.pipeline_mode<synchronous>, transform_indices = @transform_7, window_bounds = array<i64: 9, 128>}, {pipeline_mode = #tpu.pipeline_mode<synchronous>, transform_indices = @transform_8, window_bounds = array<i64: 9, 32>}, {pipeline_mode = #tpu.pipeline_mode<synchronous>, transform_indices = @transform_9, window_bounds = array<i64: 9, 2>}, {pipeline_mode = #tpu.pipeline_mode<synchronous>, transform_indices = @transform_10, window_bounds = array<i64: 32, 2>}]} {
    %c0 = arith.constant 0 : index
    %c0_0 = arith.constant 0 : index
    %0 = vector.load %arg1[%c0, %c0_0] : memref<8x512xf32, #tpu.memory_space<vmem>>, vector<8x512xf32>
    %1 = tpu.iota {dimensions = array<i32: 0>} : vector<512x128xi32>
    %c0_1 = arith.constant 0 : index
    %c0_2 = arith.constant 0 : index
    %2 = vector.load %arg8[%c0_1, %c0_2] : memref<9x128xi32, #tpu.memory_space<vmem>>, vector<1x128xi32>
    %3 = vector.broadcast %2 : vector<1x128xi32> to vector<512x128xi32>
    %4 = arith.cmpi eq, %1, %3 : vector<512x128xi32>
    %cst = arith.constant 1.000000e+00 : f32
    %cst_3 = arith.constant 0.000000e+00 : f32
    %5 = vector.broadcast %cst : f32 to vector<512x128xf32>
    %6 = vector.broadcast %cst_3 : f32 to vector<512x128xf32>
    %7 = arith.select %4, %5, %6 : vector<512x128xi1>, vector<512x128xf32>
    %cst_4 = arith.constant dense<0.000000e+00> : vector<8x128xf32>
    %8 = tpu.matmul %0, %7, %cst_4 {dimension_numbers = #tpu.dot_dimension_numbers<[1], [0], [0], [1], [0, 0, 1, 1], [], []>} : vector<8x512xf32>, vector<512x128xf32>, vector<8x128xf32> -> vector<8x128xf32>
    %c0_5 = arith.constant 0 : index
    %c0_6 = arith.constant 0 : index
    %9 = vector.load %arg12[%c0_5, %c0_6] : memref<72x128xf32, #tpu.memory_space<vmem>>, vector<8x128xf32>
    tpu.vector_store %arg12[%c0_5, %c0_6], %8 {strides = array<i32>} : memref<72x128xf32, #tpu.memory_space<vmem>>, vector<8x128xf32>,
    %c1 = arith.constant 1 : index
    %c0_7 = arith.constant 0 : index
    %10 = vector.load %arg8[%c1, %c0_7] : memref<9x128xi32, #tpu.memory_space<vmem>>, vector<1x128xi32>
    %11 = vector.broadcast %10 : vector<1x128xi32> to vector<512x128xi32>
    %12 = arith.cmpi eq, %1, %11 : vector<512x128xi32>
    %cst_8 = arith.constant 1.000000e+00 : f32
    %cst_9 = arith.constant 0.000000e+00 : f32
    %13 = vector.broadcast %cst_8 : f32 to vector<512x128xf32>
    %14 = vector.broadcast %cst_9 : f32 to vector<512x128xf32>
    %15 = arith.select %12, %13, %14 : vector<512x128xi1>, vector<512x128xf32>
    %cst_10 = arith.constant dense<0.000000e+00> : vector<8x128xf32>
    %16 = tpu.matmul %0, %15, %cst_10 {dimension_numbers = #tpu.dot_dimension_numbers<[1], [0], [0], [1], [0, 0, 1, 1], [], []>} : vector<8x512xf32>, vector<512x128xf32>, vector<8x128xf32> -> vector<8x128xf32>
    %c8 = arith.constant 8 : index
    %c0_11 = arith.constant 0 : index
    %17 = vector.load %arg12[%c8, %c0_11] : memref<72x128xf32, #tpu.memory_space<vmem>>, vector<8x128xf32>
    tpu.vector_store %arg12[%c8, %c0_11], %16 {strides = array<i32>} : memref<72x128xf32, #tpu.memory_space<vmem>>, vector<8x128xf32>,
    %c2 = arith.constant 2 : index
    %c0_12 = arith.constant 0 : index
    %18 = vector.load %arg8[%c2, %c0_12] : memref<9x128xi32, #tpu.memory_space<vmem>>, vector<1x128xi32>
    %19 = vector.broadcast %18 : vector<1x128xi32> to vector<512x128xi32>
    %20 = arith.cmpi eq, %1, %19 : vector<512x128xi32>
    %cst_13 = arith.constant 1.000000e+00 : f32
    %cst_14 = arith.constant 0.000000e+00 : f32
    %21 = vector.broadcast %cst_13 : f32 to vector<512x128xf32>
    %22 = vector.broadcast %cst_14 : f32 to vector<512x128xf32>
    %23 = arith.select %20, %21, %22 : vector<512x128xi1>, vector<512x128xf32>
    %cst_15 = arith.constant dense<0.000000e+00> : vector<8x128xf32>
    %24 = tpu.matmul %0, %23, %cst_15 {dimension_numbers = #tpu.dot_dimension_numbers<[1], [0], [0], [1], [0, 0, 1, 1], [], []>} : vector<8x512xf32>, vector<512x128xf32>, vector<8x128xf32> -> vector<8x128xf32>
    %c16 = arith.constant 16 : index
    %c0_16 = arith.constant 0 : index
    %25 = vector.load %arg12[%c16, %c0_16] : memref<72x128xf32, #tpu.memory_space<vmem>>, vector<8x128xf32>
    tpu.vector_store %arg12[%c16, %c0_16], %24 {strides = array<i32>} : memref<72x128xf32, #tpu.memory_space<vmem>>, vector<8x128xf32>,
    %c3 = arith.constant 3 : index
    %c0_17 = arith.constant 0 : index
    %26 = vector.load %arg8[%c3, %c0_17] : memref<9x128xi32, #tpu.memory_space<vmem>>, vector<1x128xi32>
    %27 = vector.broadcast %26 : vector<1x128xi32> to vector<512x128xi32>
    %28 = arith.cmpi eq, %1, %27 : vector<512x128xi32>
    %cst_18 = arith.constant 1.000000e+00 : f32
    %cst_19 = arith.constant 0.000000e+00 : f32
    %29 = vector.broadcast %cst_18 : f32 to vector<512x128xf32>
    %30 = vector.broadcast %cst_19 : f32 to vector<512x128xf32>
    %31 = arith.select %28, %29, %30 : vector<512x128xi1>, vector<512x128xf32>
    %cst_20 = arith.constant dense<0.000000e+00> : vector<8x128xf32>
    %32 = tpu.matmul %0, %31, %cst_20 {dimension_numbers = #tpu.dot_dimension_numbers<[1], [0], [0], [1], [0, 0, 1, 1], [], []>} : vector<8x512xf32>, vector<512x128xf32>, vector<8x128xf32> -> vector<8x128xf32>
    %c24 = arith.constant 24 : index
    %c0_21 = arith.constant 0 : index
    %33 = vector.load %arg12[%c24, %c0_21] : memref<72x128xf32, #tpu.memory_space<vmem>>, vector<8x128xf32>
    tpu.vector_store %arg12[%c24, %c0_21], %32 {strides = array<i32>} : memref<72x128xf32, #tpu.memory_space<vmem>>, vector<8x128xf32>,
    %c4 = arith.constant 4 : index
    %c0_22 = arith.constant 0 : index
    %34 = vector.load %arg8[%c4, %c0_22] : memref<9x128xi32, #tpu.memory_space<vmem>>, vector<1x128xi32>
    %35 = vector.broadcast %34 : vector<1x128xi32> to vector<512x128xi32>
    %36 = arith.cmpi eq, %1, %35 : vector<512x128xi32>
    %cst_23 = arith.constant 1.000000e+00 : f32
    %cst_24 = arith.constant 0.000000e+00 : f32
    %37 = vector.broadcast %cst_23 : f32 to vector<512x128xf32>
    %38 = vector.broadcast %cst_24 : f32 to vector<512x128xf32>
    %39 = arith.select %36, %37, %38 : vector<512x128xi1>, vector<512x128xf32>
    %cst_25 = arith.constant dense<0.000000e+00> : vector<8x128xf32>
    %40 = tpu.matmul %0, %39, %cst_25 {dimension_numbers = #tpu.dot_dimension_numbers<[1], [0], [0], [1], [0, 0, 1, 1], [], []>} : vector<8x512xf32>, vector<512x128xf32>, vector<8x128xf32> -> vector<8x128xf32>
    %c32 = arith.constant 32 : index
    %c0_26 = arith.constant 0 : index
    %41 = vector.load %arg12[%c32, %c0_26] : memref<72x128xf32, #tpu.memory_space<vmem>>, vector<8x128xf32>
    tpu.vector_store %arg12[%c32, %c0_26], %40 {strides = array<i32>} : memref<72x128xf32, #tpu.memory_space<vmem>>, vector<8x128xf32>,
    %c5 = arith.constant 5 : index
    %c0_27 = arith.constant 0 : index
    %42 = vector.load %arg8[%c5, %c0_27] : memref<9x128xi32, #tpu.memory_space<vmem>>, vector<1x128xi32>
    %43 = vector.broadcast %42 : vector<1x128xi32> to vector<512x128xi32>
    %44 = arith.cmpi eq, %1, %43 : vector<512x128xi32>
    %cst_28 = arith.constant 1.000000e+00 : f32
    %cst_29 = arith.constant 0.000000e+00 : f32
    %45 = vector.broadcast %cst_28 : f32 to vector<512x128xf32>
    %46 = vector.broadcast %cst_29 : f32 to vector<512x128xf32>
    %47 = arith.select %44, %45, %46 : vector<512x128xi1>, vector<512x128xf32>
    %cst_30 = arith.constant dense<0.000000e+00> : vector<8x128xf32>
    %48 = tpu.matmul %0, %47, %cst_30 {dimension_numbers = #tpu.dot_dimension_numbers<[1], [0], [0], [1], [0, 0, 1, 1], [], []>} : vector<8x512xf32>, vector<512x128xf32>, vector<8x128xf32> -> vector<8x128xf32>
    %c40 = arith.constant 40 : index
    %c0_31 = arith.constant 0 : index
    %49 = vector.load %arg12[%c40, %c0_31] : memref<72x128xf32, #tpu.memory_space<vmem>>, vector<8x128xf32>
    tpu.vector_store %arg12[%c40, %c0_31], %48 {strides = array<i32>} : memref<72x128xf32, #tpu.memory_space<vmem>>, vector<8x128xf32>,
    %c6 = arith.constant 6 : index
    %c0_32 = arith.constant 0 : index
    %50 = vector.load %arg8[%c6, %c0_32] : memref<9x128xi32, #tpu.memory_space<vmem>>, vector<1x128xi32>
    %51 = vector.broadcast %50 : vector<1x128xi32> to vector<512x128xi32>
    %52 = arith.cmpi eq, %1, %51 : vector<512x128xi32>
    %cst_33 = arith.constant 1.000000e+00 : f32
    %cst_34 = arith.constant 0.000000e+00 : f32
    %53 = vector.broadcast %cst_33 : f32 to vector<512x128xf32>
    %54 = vector.broadcast %cst_34 : f32 to vector<512x128xf32>
    %55 = arith.select %52, %53, %54 : vector<512x128xi1>, vector<512x128xf32>
    %cst_35 = arith.constant dense<0.000000e+00> : vector<8x128xf32>
    %56 = tpu.matmul %0, %55, %cst_35 {dimension_numbers = #tpu.dot_dimension_numbers<[1], [0], [0], [1], [0, 0, 1, 1], [], []>} : vector<8x512xf32>, vector<512x128xf32>, vector<8x128xf32> -> vector<8x128xf32>
    %c48 = arith.constant 48 : index
    %c0_36 = arith.constant 0 : index
    %57 = vector.load %arg12[%c48, %c0_36] : memref<72x128xf32, #tpu.memory_space<vmem>>, vector<8x128xf32>
    tpu.vector_store %arg12[%c48, %c0_36], %56 {strides = array<i32>} : memref<72x128xf32, #tpu.memory_space<vmem>>, vector<8x128xf32>,
    %c7 = arith.constant 7 : index
    %c0_37 = arith.constant 0 : index
    %58 = vector.load %arg8[%c7, %c0_37] : memref<9x128xi32, #tpu.memory_space<vmem>>, vector<1x128xi32>
    %59 = vector.broadcast %58 : vector<1x128xi32> to vector<512x128xi32>
    %60 = arith.cmpi eq, %1, %59 : vector<512x128xi32>
    %cst_38 = arith.constant 1.000000e+00 : f32
    %cst_39 = arith.constant 0.000000e+00 : f32
    %61 = vector.broadcast %cst_38 : f32 to vector<512x128xf32>
    %62 = vector.broadcast %cst_39 : f32 to vector<512x128xf32>
    %63 = arith.select %60, %61, %62 : vector<512x128xi1>, vector<512x128xf32>
    %cst_40 = arith.constant dense<0.000000e+00> : vector<8x128xf32>
    %64 = tpu.matmul %0, %63, %cst_40 {dimension_numbers = #tpu.dot_dimension_numbers<[1], [0], [0], [1], [0, 0, 1, 1], [], []>} : vector<8x512xf32>, vector<512x128xf32>, vector<8x128xf32> -> vector<8x128xf32>
    %c56 = arith.constant 56 : index
    %c0_41 = arith.constant 0 : index
    %65 = vector.load %arg12[%c56, %c0_41] : memref<72x128xf32, #tpu.memory_space<vmem>>, vector<8x128xf32>
    tpu.vector_store %arg12[%c56, %c0_41], %64 {strides = array<i32>} : memref<72x128xf32, #tpu.memory_space<vmem>>, vector<8x128xf32>,
    %c8_42 = arith.constant 8 : index
    %c0_43 = arith.constant 0 : index
    %66 = vector.load %arg8[%c8_42, %c0_43] : memref<9x128xi32, #tpu.memory_space<vmem>>, vector<1x128xi32>
    %67 = vector.broadcast %66 : vector<1x128xi32> to vector<512x128xi32>
    %68 = arith.cmpi eq, %1, %67 : vector<512x128xi32>
    %cst_44 = arith.constant 1.000000e+00 : f32
    %cst_45 = arith.constant 0.000000e+00 : f32
    %69 = vector.broadcast %cst_44 : f32 to vector<512x128xf32>
    %70 = vector.broadcast %cst_45 : f32 to vector<512x128xf32>
    %71 = arith.select %68, %69, %70 : vector<512x128xi1>, vector<512x128xf32>
    %cst_46 = arith.constant dense<0.000000e+00> : vector<8x128xf32>
    %72 = tpu.matmul %0, %71, %cst_46 {dimension_numbers = #tpu.dot_dimension_numbers<[1], [0], [0], [1], [0, 0, 1, 1], [], []>} : vector<8x512xf32>, vector<512x128xf32>, vector<8x128xf32> -> vector<8x128xf32>
    %c64 = arith.constant 64 : index
    %c0_47 = arith.constant 0 : index
    %73 = vector.load %arg12[%c64, %c0_47] : memref<72x128xf32, #tpu.memory_space<vmem>>, vector<8x128xf32>
    tpu.vector_store %arg12[%c64, %c0_47], %72 {strides = array<i32>} : memref<72x128xf32, #tpu.memory_space<vmem>>, vector<8x128xf32>,
    %c0_48 = arith.constant 0 : index
    %c0_49 = arith.constant 0 : index
    %74 = vector.load %arg2[%c0_48, %c0_49] : memref<8x72xf32, #tpu.memory_space<vmem>>, vector<8x72xf32>
    %c0_50 = arith.constant 0 : index
    %c0_51 = arith.constant 0 : index
    %75 = vector.load %arg12[%c0_50, %c0_51] : memref<72x128xf32, #tpu.memory_space<vmem>>, vector<72x128xf32>
    %cst_52 = arith.constant dense<0.000000e+00> : vector<8x128xf32>
    %76 = tpu.matmul %74, %75, %cst_52 {dimension_numbers = #tpu.dot_dimension_numbers<[1], [0], [0], [1], [0, 0, 1, 1], [], []>} : vector<8x72xf32>, vector<72x128xf32>, vector<8x128xf32> -> vector<8x128xf32>
    %c0_53 = arith.constant 0 : index
    %c0_54 = arith.constant 0 : index
    %77 = vector.load %arg5[%c0_53, %c0_54] : memref<8x1xf32, #tpu.memory_space<vmem>>, vector<8x1xf32>
    %78 = vector.broadcast %77 : vector<8x1xf32> to vector<8x128xf32>
    %79 = arith.addf %76, %78 : vector<8x128xf32>
    %cst_55 = arith.constant 0.000000e+00 : f32
    %80 = vector.broadcast %cst_55 : f32 to vector<8x128xf32>
    %81 = arith.maximumf %79, %80 : vector<8x128xf32>
    %82 = tpu.iota {dimensions = array<i32: 0>} : vector<128x32xi32>
    %c0_56 = arith.constant 0 : index
    %c0_57 = arith.constant 0 : index
    %83 = vector.load %arg9[%c0_56, %c0_57] : memref<9x32xi32, #tpu.memory_space<vmem>>, vector<1x32xi32>
    %84 = vector.broadcast %83 : vector<1x32xi32> to vector<128x32xi32>
    %85 = arith.cmpi eq, %82, %84 : vector<128x32xi32>
    %cst_58 = arith.constant 1.000000e+00 : f32
    %cst_59 = arith.constant 0.000000e+00 : f32
    %86 = vector.broadcast %cst_58 : f32 to vector<128x32xf32>
    %87 = vector.broadcast %cst_59 : f32 to vector<128x32xf32>
    %88 = arith.select %85, %86, %87 : vector<128x32xi1>, vector<128x32xf32>
    %cst_60 = arith.constant dense<0.000000e+00> : vector<8x32xf32>
    %89 = tpu.matmul %81, %88, %cst_60 {dimension_numbers = #tpu.dot_dimension_numbers<[1], [0], [0], [1], [0, 0, 1, 1], [], []>} : vector<8x128xf32>, vector<128x32xf32>, vector<8x32xf32> -> vector<8x32xf32>
    %c0_61 = arith.constant 0 : index
    %c0_62 = arith.constant 0 : index
    %90 = vector.load %arg13[%c0_61, %c0_62] : memref<72x32xf32, #tpu.memory_space<vmem>>, vector<8x32xf32>
    tpu.vector_store %arg13[%c0_61, %c0_62], %89 {strides = array<i32>} : memref<72x32xf32, #tpu.memory_space<vmem>>, vector<8x32xf32>,
    %c1_63 = arith.constant 1 : index
    %c0_64 = arith.constant 0 : index
    %91 = vector.load %arg9[%c1_63, %c0_64] : memref<9x32xi32, #tpu.memory_space<vmem>>, vector<1x32xi32>
    %92 = vector.broadcast %91 : vector<1x32xi32> to vector<128x32xi32>
    %93 = arith.cmpi eq, %82, %92 : vector<128x32xi32>
    %cst_65 = arith.constant 1.000000e+00 : f32
    %cst_66 = arith.constant 0.000000e+00 : f32
    %94 = vector.broadcast %cst_65 : f32 to vector<128x32xf32>
    %95 = vector.broadcast %cst_66 : f32 to vector<128x32xf32>
    %96 = arith.select %93, %94, %95 : vector<128x32xi1>, vector<128x32xf32>
    %cst_67 = arith.constant dense<0.000000e+00> : vector<8x32xf32>
    %97 = tpu.matmul %81, %96, %cst_67 {dimension_numbers = #tpu.dot_dimension_numbers<[1], [0], [0], [1], [0, 0, 1, 1], [], []>} : vector<8x128xf32>, vector<128x32xf32>, vector<8x32xf32> -> vector<8x32xf32>
    %c8_68 = arith.constant 8 : index
    %c0_69 = arith.constant 0 : index
    %98 = vector.load %arg13[%c8_68, %c0_69] : memref<72x32xf32, #tpu.memory_space<vmem>>, vector<8x32xf32>
    tpu.vector_store %arg13[%c8_68, %c0_69], %97 {strides = array<i32>} : memref<72x32xf32, #tpu.memory_space<vmem>>, vector<8x32xf32>,
    %c2_70 = arith.constant 2 : index
    %c0_71 = arith.constant 0 : index
    %99 = vector.load %arg9[%c2_70, %c0_71] : memref<9x32xi32, #tpu.memory_space<vmem>>, vector<1x32xi32>
    %100 = vector.broadcast %99 : vector<1x32xi32> to vector<128x32xi32>
    %101 = arith.cmpi eq, %82, %100 : vector<128x32xi32>
    %cst_72 = arith.constant 1.000000e+00 : f32
    %cst_73 = arith.constant 0.000000e+00 : f32
    %102 = vector.broadcast %cst_72 : f32 to vector<128x32xf32>
    %103 = vector.broadcast %cst_73 : f32 to vector<128x32xf32>
    %104 = arith.select %101, %102, %103 : vector<128x32xi1>, vector<128x32xf32>
    %cst_74 = arith.constant dense<0.000000e+00> : vector<8x32xf32>
    %105 = tpu.matmul %81, %104, %cst_74 {dimension_numbers = #tpu.dot_dimension_numbers<[1], [0], [0], [1], [0, 0, 1, 1], [], []>} : vector<8x128xf32>, vector<128x32xf32>, vector<8x32xf32> -> vector<8x32xf32>
    %c16_75 = arith.constant 16 : index
    %c0_76 = arith.constant 0 : index
    %106 = vector.load %arg13[%c16_75, %c0_76] : memref<72x32xf32, #tpu.memory_space<vmem>>, vector<8x32xf32>
    tpu.vector_store %arg13[%c16_75, %c0_76], %105 {strides = array<i32>} : memref<72x32xf32, #tpu.memory_space<vmem>>, vector<8x32xf32>,
    %c3_77 = arith.constant 3 : index
    %c0_78 = arith.constant 0 : index
    %107 = vector.load %arg9[%c3_77, %c0_78] : memref<9x32xi32, #tpu.memory_space<vmem>>, vector<1x32xi32>
    %108 = vector.broadcast %107 : vector<1x32xi32> to vector<128x32xi32>
    %109 = arith.cmpi eq, %82, %108 : vector<128x32xi32>
    %cst_79 = arith.constant 1.000000e+00 : f32
    %cst_80 = arith.constant 0.000000e+00 : f32
    %110 = vector.broadcast %cst_79 : f32 to vector<128x32xf32>
    %111 = vector.broadcast %cst_80 : f32 to vector<128x32xf32>
    %112 = arith.select %109, %110, %111 : vector<128x32xi1>, vector<128x32xf32>
    %cst_81 = arith.constant dense<0.000000e+00> : vector<8x32xf32>
    %113 = tpu.matmul %81, %112, %cst_81 {dimension_numbers = #tpu.dot_dimension_numbers<[1], [0], [0], [1], [0, 0, 1, 1], [], []>} : vector<8x128xf32>, vector<128x32xf32>, vector<8x32xf32> -> vector<8x32xf32>
    %c24_82 = arith.constant 24 : index
    %c0_83 = arith.constant 0 : index
    %114 = vector.load %arg13[%c24_82, %c0_83] : memref<72x32xf32, #tpu.memory_space<vmem>>, vector<8x32xf32>
    tpu.vector_store %arg13[%c24_82, %c0_83], %113 {strides = array<i32>} : memref<72x32xf32, #tpu.memory_space<vmem>>, vector<8x32xf32>,
    %c4_84 = arith.constant 4 : index
    %c0_85 = arith.constant 0 : index
    %115 = vector.load %arg9[%c4_84, %c0_85] : memref<9x32xi32, #tpu.memory_space<vmem>>, vector<1x32xi32>
    %116 = vector.broadcast %115 : vector<1x32xi32> to vector<128x32xi32>
    %117 = arith.cmpi eq, %82, %116 : vector<128x32xi32>
    %cst_86 = arith.constant 1.000000e+00 : f32
    %cst_87 = arith.constant 0.000000e+00 : f32
    %118 = vector.broadcast %cst_86 : f32 to vector<128x32xf32>
    %119 = vector.broadcast %cst_87 : f32 to vector<128x32xf32>
    %120 = arith.select %117, %118, %119 : vector<128x32xi1>, vector<128x32xf32>
    %cst_88 = arith.constant dense<0.000000e+00> : vector<8x32xf32>
    %121 = tpu.matmul %81, %120, %cst_88 {dimension_numbers = #tpu.dot_dimension_numbers<[1], [0], [0], [1], [0, 0, 1, 1], [], []>} : vector<8x128xf32>, vector<128x32xf32>, vector<8x32xf32> -> vector<8x32xf32>
    %c32_89 = arith.constant 32 : index
    %c0_90 = arith.constant 0 : index
    %122 = vector.load %arg13[%c32_89, %c0_90] : memref<72x32xf32, #tpu.memory_space<vmem>>, vector<8x32xf32>
    tpu.vector_store %arg13[%c32_89, %c0_90], %121 {strides = array<i32>} : memref<72x32xf32, #tpu.memory_space<vmem>>, vector<8x32xf32>,
    %c5_91 = arith.constant 5 : index
    %c0_92 = arith.constant 0 : index
    %123 = vector.load %arg9[%c5_91, %c0_92] : memref<9x32xi32, #tpu.memory_space<vmem>>, vector<1x32xi32>
    %124 = vector.broadcast %123 : vector<1x32xi32> to vector<128x32xi32>
    %125 = arith.cmpi eq, %82, %124 : vector<128x32xi32>
    %cst_93 = arith.constant 1.000000e+00 : f32
    %cst_94 = arith.constant 0.000000e+00 : f32
    %126 = vector.broadcast %cst_93 : f32 to vector<128x32xf32>
    %127 = vector.broadcast %cst_94 : f32 to vector<128x32xf32>
    %128 = arith.select %125, %126, %127 : vector<128x32xi1>, vector<128x32xf32>
    %cst_95 = arith.constant dense<0.000000e+00> : vector<8x32xf32>
    %129 = tpu.matmul %81, %128, %cst_95 {dimension_numbers = #tpu.dot_dimension_numbers<[1], [0], [0], [1], [0, 0, 1, 1], [], []>} : vector<8x128xf32>, vector<128x32xf32>, vector<8x32xf32> -> vector<8x32xf32>
    %c40_96 = arith.constant 40 : index
    %c0_97 = arith.constant 0 : index
    %130 = vector.load %arg13[%c40_96, %c0_97] : memref<72x32xf32, #tpu.memory_space<vmem>>, vector<8x32xf32>
    tpu.vector_store %arg13[%c40_96, %c0_97], %129 {strides = array<i32>} : memref<72x32xf32, #tpu.memory_space<vmem>>, vector<8x32xf32>,
    %c6_98 = arith.constant 6 : index
    %c0_99 = arith.constant 0 : index
    %131 = vector.load %arg9[%c6_98, %c0_99] : memref<9x32xi32, #tpu.memory_space<vmem>>, vector<1x32xi32>
    %132 = vector.broadcast %131 : vector<1x32xi32> to vector<128x32xi32>
    %133 = arith.cmpi eq, %82, %132 : vector<128x32xi32>
    %cst_100 = arith.constant 1.000000e+00 : f32
    %cst_101 = arith.constant 0.000000e+00 : f32
    %134 = vector.broadcast %cst_100 : f32 to vector<128x32xf32>
    %135 = vector.broadcast %cst_101 : f32 to vector<128x32xf32>
    %136 = arith.select %133, %134, %135 : vector<128x32xi1>, vector<128x32xf32>
    %cst_102 = arith.constant dense<0.000000e+00> : vector<8x32xf32>
    %137 = tpu.matmul %81, %136, %cst_102 {dimension_numbers = #tpu.dot_dimension_numbers<[1], [0], [0], [1], [0, 0, 1, 1], [], []>} : vector<8x128xf32>, vector<128x32xf32>, vector<8x32xf32> -> vector<8x32xf32>
    %c48_103 = arith.constant 48 : index
    %c0_104 = arith.constant 0 : index
    %138 = vector.load %arg13[%c48_103, %c0_104] : memref<72x32xf32, #tpu.memory_space<vmem>>, vector<8x32xf32>
    tpu.vector_store %arg13[%c48_103, %c0_104], %137 {strides = array<i32>} : memref<72x32xf32, #tpu.memory_space<vmem>>, vector<8x32xf32>,
    %c7_105 = arith.constant 7 : index
    %c0_106 = arith.constant 0 : index
    %139 = vector.load %arg9[%c7_105, %c0_106] : memref<9x32xi32, #tpu.memory_space<vmem>>, vector<1x32xi32>
    %140 = vector.broadcast %139 : vector<1x32xi32> to vector<128x32xi32>
    %141 = arith.cmpi eq, %82, %140 : vector<128x32xi32>
    %cst_107 = arith.constant 1.000000e+00 : f32
    %cst_108 = arith.constant 0.000000e+00 : f32
    %142 = vector.broadcast %cst_107 : f32 to vector<128x32xf32>
    %143 = vector.broadcast %cst_108 : f32 to vector<128x32xf32>
    %144 = arith.select %141, %142, %143 : vector<128x32xi1>, vector<128x32xf32>
    %cst_109 = arith.constant dense<0.000000e+00> : vector<8x32xf32>
    %145 = tpu.matmul %81, %144, %cst_109 {dimension_numbers = #tpu.dot_dimension_numbers<[1], [0], [0], [1], [0, 0, 1, 1], [], []>} : vector<8x128xf32>, vector<128x32xf32>, vector<8x32xf32> -> vector<8x32xf32>
    %c56_110 = arith.constant 56 : index
    %c0_111 = arith.constant 0 : index
    %146 = vector.load %arg13[%c56_110, %c0_111] : memref<72x32xf32, #tpu.memory_space<vmem>>, vector<8x32xf32>
    tpu.vector_store %arg13[%c56_110, %c0_111], %145 {strides = array<i32>} : memref<72x32xf32, #tpu.memory_space<vmem>>, vector<8x32xf32>,
    %c8_112 = arith.constant 8 : index
    %c0_113 = arith.constant 0 : index
    %147 = vector.load %arg9[%c8_112, %c0_113] : memref<9x32xi32, #tpu.memory_space<vmem>>, vector<1x32xi32>
    %148 = vector.broadcast %147 : vector<1x32xi32> to vector<128x32xi32>
    %149 = arith.cmpi eq, %82, %148 : vector<128x32xi32>
    %cst_114 = arith.constant 1.000000e+00 : f32
    %cst_115 = arith.constant 0.000000e+00 : f32
    %150 = vector.broadcast %cst_114 : f32 to vector<128x32xf32>
    %151 = vector.broadcast %cst_115 : f32 to vector<128x32xf32>
    %152 = arith.select %149, %150, %151 : vector<128x32xi1>, vector<128x32xf32>
    %cst_116 = arith.constant dense<0.000000e+00> : vector<8x32xf32>
    %153 = tpu.matmul %81, %152, %cst_116 {dimension_numbers = #tpu.dot_dimension_numbers<[1], [0], [0], [1], [0, 0, 1, 1], [], []>} : vector<8x128xf32>, vector<128x32xf32>, vector<8x32xf32> -> vector<8x32xf32>
    %c64_117 = arith.constant 64 : index
    %c0_118 = arith.constant 0 : index
    %154 = vector.load %arg13[%c64_117, %c0_118] : memref<72x32xf32, #tpu.memory_space<vmem>>, vector<8x32xf32>
    tpu.vector_store %arg13[%c64_117, %c0_118], %153 {strides = array<i32>} : memref<72x32xf32, #tpu.memory_space<vmem>>, vector<8x32xf32>,
    %c0_119 = arith.constant 0 : index
    %c0_120 = arith.constant 0 : index
    %155 = vector.load %arg3[%c0_119, %c0_120] : memref<16x72xf32, #tpu.memory_space<vmem>>, vector<16x72xf32>
    %c0_121 = arith.constant 0 : index
    %c0_122 = arith.constant 0 : index
    %156 = vector.load %arg13[%c0_121, %c0_122] : memref<72x32xf32, #tpu.memory_space<vmem>>, vector<72x32xf32>
    %cst_123 = arith.constant dense<0.000000e+00> : vector<16x32xf32>
    %157 = tpu.matmul %155, %156, %cst_123 {dimension_numbers = #tpu.dot_dimension_numbers<[1], [0], [0], [1], [0, 0, 1, 1], [], []>} : vector<16x72xf32>, vector<72x32xf32>, vector<16x32xf32> -> vector<16x32xf32>
    %c0_124 = arith.constant 0 : index
    %c0_125 = arith.constant 0 : index
    %158 = vector.load %arg6[%c0_124, %c0_125] : memref<16x1xf32, #tpu.memory_space<vmem>>, vector<16x1xf32>
    %159 = vector.broadcast %158 : vector<16x1xf32> to vector<16x32xf32>
    %160 = arith.addf %157, %159 : vector<16x32xf32>
    %cst_126 = arith.constant 0.000000e+00 : f32
    %161 = vector.broadcast %cst_126 : f32 to vector<16x32xf32>
    %162 = arith.maximumf %160, %161 : vector<16x32xf32>
    %163 = vector.extract_strided_slice %162 {offsets = [0, 0], sizes = [16, 8], strides = [1, 1]} : vector<16x32xf32> to vector<16x8xf32>
    %164 = vector.extract_strided_slice %162 {offsets = [0, 8], sizes = [16, 8], strides = [1, 1]} : vector<16x32xf32> to vector<16x8xf32>
    %165 = arith.maximumf %163, %164 : vector<16x8xf32>
    %166 = vector.extract_strided_slice %162 {offsets = [0, 16], sizes = [16, 8], strides = [1, 1]} : vector<16x32xf32> to vector<16x8xf32>
    %167 = vector.extract_strided_slice %162 {offsets = [0, 24], sizes = [16, 8], strides = [1, 1]} : vector<16x32xf32> to vector<16x8xf32>
    %168 = arith.maximumf %166, %167 : vector<16x8xf32>
    %169 = arith.maximumf %165, %168 : vector<16x8xf32>
    %170 = tpu.iota {dimensions = array<i32: 0>} : vector<8x2xi32>
    %c0_127 = arith.constant 0 : index
    %c0_128 = arith.constant 0 : index
    %171 = vector.load %arg10[%c0_127, %c0_128] : memref<9x2xi32, #tpu.memory_space<vmem>>, vector<1x2xi32>
    %172 = vector.broadcast %171 : vector<1x2xi32> to vector<8x2xi32>
    %173 = arith.cmpi eq, %170, %172 : vector<8x2xi32>
    %cst_129 = arith.constant 1.000000e+00 : f32
    %cst_130 = arith.constant 0.000000e+00 : f32
    %174 = vector.broadcast %cst_129 : f32 to vector<8x2xf32>
    %175 = vector.broadcast %cst_130 : f32 to vector<8x2xf32>
    %176 = arith.select %173, %174, %175 : vector<8x2xi1>, vector<8x2xf32>
    %cst_131 = arith.constant dense<0.000000e+00> : vector<16x2xf32>
    %177 = tpu.matmul %169, %176, %cst_131 {dimension_numbers = #tpu.dot_dimension_numbers<[1], [0], [0], [1], [0, 0, 1, 1], [], []>} : vector<16x8xf32>, vector<8x2xf32>, vector<16x2xf32> -> vector<16x2xf32>
    %c0_132 = arith.constant 0 : index
    %c0_133 = arith.constant 0 : index
    %178 = vector.load %arg14[%c0_132, %c0_133] : memref<144x2xf32, #tpu.memory_space<vmem>>, vector<16x2xf32>
    tpu.vector_store %arg14[%c0_132, %c0_133], %177 {strides = array<i32>} : memref<144x2xf32, #tpu.memory_space<vmem>>, vector<16x2xf32>,
    %c1_134 = arith.constant 1 : index
    %c0_135 = arith.constant 0 : index
    %179 = vector.load %arg10[%c1_134, %c0_135] : memref<9x2xi32, #tpu.memory_space<vmem>>, vector<1x2xi32>
    %180 = vector.broadcast %179 : vector<1x2xi32> to vector<8x2xi32>
    %181 = arith.cmpi eq, %170, %180 : vector<8x2xi32>
    %cst_136 = arith.constant 1.000000e+00 : f32
    %cst_137 = arith.constant 0.000000e+00 : f32
    %182 = vector.broadcast %cst_136 : f32 to vector<8x2xf32>
    %183 = vector.broadcast %cst_137 : f32 to vector<8x2xf32>
    %184 = arith.select %181, %182, %183 : vector<8x2xi1>, vector<8x2xf32>
    %cst_138 = arith.constant dense<0.000000e+00> : vector<16x2xf32>
    %185 = tpu.matmul %169, %184, %cst_138 {dimension_numbers = #tpu.dot_dimension_numbers<[1], [0], [0], [1], [0, 0, 1, 1], [], []>} : vector<16x8xf32>, vector<8x2xf32>, vector<16x2xf32> -> vector<16x2xf32>
    %c16_139 = arith.constant 16 : index
    %c0_140 = arith.constant 0 : index
    %186 = vector.load %arg14[%c16_139, %c0_140] : memref<144x2xf32, #tpu.memory_space<vmem>>, vector<16x2xf32>
    tpu.vector_store %arg14[%c16_139, %c0_140], %185 {strides = array<i32>} : memref<144x2xf32, #tpu.memory_space<vmem>>, vector<16x2xf32>,
    %c2_141 = arith.constant 2 : index
    %c0_142 = arith.constant 0 : index
    %187 = vector.load %arg10[%c2_141, %c0_142] : memref<9x2xi32, #tpu.memory_space<vmem>>, vector<1x2xi32>
    %188 = vector.broadcast %187 : vector<1x2xi32> to vector<8x2xi32>
    %189 = arith.cmpi eq, %170, %188 : vector<8x2xi32>
    %cst_143 = arith.constant 1.000000e+00 : f32
    %cst_144 = arith.constant 0.000000e+00 : f32
    %190 = vector.broadcast %cst_143 : f32 to vector<8x2xf32>
    %191 = vector.broadcast %cst_144 : f32 to vector<8x2xf32>
    %192 = arith.select %189, %190, %191 : vector<8x2xi1>, vector<8x2xf32>
    %cst_145 = arith.constant dense<0.000000e+00> : vector<16x2xf32>
    %193 = tpu.matmul %169, %192, %cst_145 {dimension_numbers = #tpu.dot_dimension_numbers<[1], [0], [0], [1], [0, 0, 1, 1], [], []>} : vector<16x8xf32>, vector<8x2xf32>, vector<16x2xf32> -> vector<16x2xf32>
    %c32_146 = arith.constant 32 : index
    %c0_147 = arith.constant 0 : index
    %194 = vector.load %arg14[%c32_146, %c0_147] : memref<144x2xf32, #tpu.memory_space<vmem>>, vector<16x2xf32>
    tpu.vector_store %arg14[%c32_146, %c0_147], %193 {strides = array<i32>} : memref<144x2xf32, #tpu.memory_space<vmem>>, vector<16x2xf32>,
    %c3_148 = arith.constant 3 : index
    %c0_149 = arith.constant 0 : index
    %195 = vector.load %arg10[%c3_148, %c0_149] : memref<9x2xi32, #tpu.memory_space<vmem>>, vector<1x2xi32>
    %196 = vector.broadcast %195 : vector<1x2xi32> to vector<8x2xi32>
    %197 = arith.cmpi eq, %170, %196 : vector<8x2xi32>
    %cst_150 = arith.constant 1.000000e+00 : f32
    %cst_151 = arith.constant 0.000000e+00 : f32
    %198 = vector.broadcast %cst_150 : f32 to vector<8x2xf32>
    %199 = vector.broadcast %cst_151 : f32 to vector<8x2xf32>
    %200 = arith.select %197, %198, %199 : vector<8x2xi1>, vector<8x2xf32>
    %cst_152 = arith.constant dense<0.000000e+00> : vector<16x2xf32>
    %201 = tpu.matmul %169, %200, %cst_152 {dimension_numbers = #tpu.dot_dimension_numbers<[1], [0], [0], [1], [0, 0, 1, 1], [], []>} : vector<16x8xf32>, vector<8x2xf32>, vector<16x2xf32> -> vector<16x2xf32>
    %c48_153 = arith.constant 48 : index
    %c0_154 = arith.constant 0 : index
    %202 = vector.load %arg14[%c48_153, %c0_154] : memref<144x2xf32, #tpu.memory_space<vmem>>, vector<16x2xf32>
    tpu.vector_store %arg14[%c48_153, %c0_154], %201 {strides = array<i32>} : memref<144x2xf32, #tpu.memory_space<vmem>>, vector<16x2xf32>,
    %c4_155 = arith.constant 4 : index
    %c0_156 = arith.constant 0 : index
    %203 = vector.load %arg10[%c4_155, %c0_156] : memref<9x2xi32, #tpu.memory_space<vmem>>, vector<1x2xi32>
    %204 = vector.broadcast %203 : vector<1x2xi32> to vector<8x2xi32>
    %205 = arith.cmpi eq, %170, %204 : vector<8x2xi32>
    %cst_157 = arith.constant 1.000000e+00 : f32
    %cst_158 = arith.constant 0.000000e+00 : f32
    %206 = vector.broadcast %cst_157 : f32 to vector<8x2xf32>
    %207 = vector.broadcast %cst_158 : f32 to vector<8x2xf32>
    %208 = arith.select %205, %206, %207 : vector<8x2xi1>, vector<8x2xf32>
    %cst_159 = arith.constant dense<0.000000e+00> : vector<16x2xf32>
    %209 = tpu.matmul %169, %208, %cst_159 {dimension_numbers = #tpu.dot_dimension_numbers<[1], [0], [0], [1], [0, 0, 1, 1], [], []>} : vector<16x8xf32>, vector<8x2xf32>, vector<16x2xf32> -> vector<16x2xf32>
    %c64_160 = arith.constant 64 : index
    %c0_161 = arith.constant 0 : index
    %210 = vector.load %arg14[%c64_160, %c0_161] : memref<144x2xf32, #tpu.memory_space<vmem>>, vector<16x2xf32>
    tpu.vector_store %arg14[%c64_160, %c0_161], %209 {strides = array<i32>} : memref<144x2xf32, #tpu.memory_space<vmem>>, vector<16x2xf32>,
    %c5_162 = arith.constant 5 : index
    %c0_163 = arith.constant 0 : index
    %211 = vector.load %arg10[%c5_162, %c0_163] : memref<9x2xi32, #tpu.memory_space<vmem>>, vector<1x2xi32>
    %212 = vector.broadcast %211 : vector<1x2xi32> to vector<8x2xi32>
    %213 = arith.cmpi eq, %170, %212 : vector<8x2xi32>
    %cst_164 = arith.constant 1.000000e+00 : f32
    %cst_165 = arith.constant 0.000000e+00 : f32
    %214 = vector.broadcast %cst_164 : f32 to vector<8x2xf32>
    %215 = vector.broadcast %cst_165 : f32 to vector<8x2xf32>
    %216 = arith.select %213, %214, %215 : vector<8x2xi1>, vector<8x2xf32>
    %cst_166 = arith.constant dense<0.000000e+00> : vector<16x2xf32>
    %217 = tpu.matmul %169, %216, %cst_166 {dimension_numbers = #tpu.dot_dimension_numbers<[1], [0], [0], [1], [0, 0, 1, 1], [], []>} : vector<16x8xf32>, vector<8x2xf32>, vector<16x2xf32> -> vector<16x2xf32>
    %c80 = arith.constant 80 : index
    %c0_167 = arith.constant 0 : index
    %218 = vector.load %arg14[%c80, %c0_167] : memref<144x2xf32, #tpu.memory_space<vmem>>, vector<16x2xf32>
    tpu.vector_store %arg14[%c80, %c0_167], %217 {strides = array<i32>} : memref<144x2xf32, #tpu.memory_space<vmem>>, vector<16x2xf32>,
    %c6_168 = arith.constant 6 : index
    %c0_169 = arith.constant 0 : index
    %219 = vector.load %arg10[%c6_168, %c0_169] : memref<9x2xi32, #tpu.memory_space<vmem>>, vector<1x2xi32>
    %220 = vector.broadcast %219 : vector<1x2xi32> to vector<8x2xi32>
    %221 = arith.cmpi eq, %170, %220 : vector<8x2xi32>
    %cst_170 = arith.constant 1.000000e+00 : f32
    %cst_171 = arith.constant 0.000000e+00 : f32
    %222 = vector.broadcast %cst_170 : f32 to vector<8x2xf32>
    %223 = vector.broadcast %cst_171 : f32 to vector<8x2xf32>
    %224 = arith.select %221, %222, %223 : vector<8x2xi1>, vector<8x2xf32>
    %cst_172 = arith.constant dense<0.000000e+00> : vector<16x2xf32>
    %225 = tpu.matmul %169, %224, %cst_172 {dimension_numbers = #tpu.dot_dimension_numbers<[1], [0], [0], [1], [0, 0, 1, 1], [], []>} : vector<16x8xf32>, vector<8x2xf32>, vector<16x2xf32> -> vector<16x2xf32>
    %c96 = arith.constant 96 : index
    %c0_173 = arith.constant 0 : index
    %226 = vector.load %arg14[%c96, %c0_173] : memref<144x2xf32, #tpu.memory_space<vmem>>, vector<16x2xf32>
    tpu.vector_store %arg14[%c96, %c0_173], %225 {strides = array<i32>} : memref<144x2xf32, #tpu.memory_space<vmem>>, vector<16x2xf32>,
    %c7_174 = arith.constant 7 : index
    %c0_175 = arith.constant 0 : index
    %227 = vector.load %arg10[%c7_174, %c0_175] : memref<9x2xi32, #tpu.memory_space<vmem>>, vector<1x2xi32>
    %228 = vector.broadcast %227 : vector<1x2xi32> to vector<8x2xi32>
    %229 = arith.cmpi eq, %170, %228 : vector<8x2xi32>
    %cst_176 = arith.constant 1.000000e+00 : f32
    %cst_177 = arith.constant 0.000000e+00 : f32
    %230 = vector.broadcast %cst_176 : f32 to vector<8x2xf32>
    %231 = vector.broadcast %cst_177 : f32 to vector<8x2xf32>
    %232 = arith.select %229, %230, %231 : vector<8x2xi1>, vector<8x2xf32>
    %cst_178 = arith.constant dense<0.000000e+00> : vector<16x2xf32>
    %233 = tpu.matmul %169, %232, %cst_178 {dimension_numbers = #tpu.dot_dimension_numbers<[1], [0], [0], [1], [0, 0, 1, 1], [], []>} : vector<16x8xf32>, vector<8x2xf32>, vector<16x2xf32> -> vector<16x2xf32>
    %c112 = arith.constant 112 : index
    %c0_179 = arith.constant 0 : index
    %234 = vector.load %arg14[%c112, %c0_179] : memref<144x2xf32, #tpu.memory_space<vmem>>, vector<16x2xf32>
    tpu.vector_store %arg14[%c112, %c0_179], %233 {strides = array<i32>} : memref<144x2xf32, #tpu.memory_space<vmem>>, vector<16x2xf32>,
    %c8_180 = arith.constant 8 : index
    %c0_181 = arith.constant 0 : index
    %235 = vector.load %arg10[%c8_180, %c0_181] : memref<9x2xi32, #tpu.memory_space<vmem>>, vector<1x2xi32>
    %236 = vector.broadcast %235 : vector<1x2xi32> to vector<8x2xi32>
    %237 = arith.cmpi eq, %170, %236 : vector<8x2xi32>
    %cst_182 = arith.constant 1.000000e+00 : f32
    %cst_183 = arith.constant 0.000000e+00 : f32
    %238 = vector.broadcast %cst_182 : f32 to vector<8x2xf32>
    %239 = vector.broadcast %cst_183 : f32 to vector<8x2xf32>
    %240 = arith.select %237, %238, %239 : vector<8x2xi1>, vector<8x2xf32>
    %cst_184 = arith.constant dense<0.000000e+00> : vector<16x2xf32>
    %241 = tpu.matmul %169, %240, %cst_184 {dimension_numbers = #tpu.dot_dimension_numbers<[1], [0], [0], [1], [0, 0, 1, 1], [], []>} : vector<16x8xf32>, vector<8x2xf32>, vector<16x2xf32> -> vector<16x2xf32>
    %c128 = arith.constant 128 : index
    %c0_185 = arith.constant 0 : index
    %242 = vector.load %arg14[%c128, %c0_185] : memref<144x2xf32, #tpu.memory_space<vmem>>, vector<16x2xf32>
    tpu.vector_store %arg14[%c128, %c0_185], %241 {strides = array<i32>} : memref<144x2xf32, #tpu.memory_space<vmem>>, vector<16x2xf32>,
    %c0_186 = arith.constant 0 : index
    %c0_187 = arith.constant 0 : index
    %243 = vector.load %arg4[%c0_186, %c0_187] : memref<32x144xf32, #tpu.memory_space<vmem>>, vector<32x144xf32>
    %c0_188 = arith.constant 0 : index
    %c0_189 = arith.constant 0 : index
    %244 = vector.load %arg14[%c0_188, %c0_189] : memref<144x2xf32, #tpu.memory_space<vmem>>, vector<144x2xf32>
    %cst_190 = arith.constant dense<0.000000e+00> : vector<32x2xf32>
    %245 = tpu.matmul %243, %244, %cst_190 {dimension_numbers = #tpu.dot_dimension_numbers<[1], [0], [0], [1], [0, 0, 1, 1], [], []>} : vector<32x144xf32>, vector<144x2xf32>, vector<32x2xf32> -> vector<32x2xf32>
    %c0_191 = arith.constant 0 : index
    %c0_192 = arith.constant 0 : index
    %246 = vector.load %arg7[%c0_191, %c0_192] : memref<32x1xf32, #tpu.memory_space<vmem>>, vector<32x1xf32>
    %247 = vector.broadcast %246 : vector<32x1xf32> to vector<32x2xf32>
    %248 = arith.addf %245, %247 : vector<32x2xf32>
    %cst_193 = arith.constant 0.000000e+00 : f32
    %249 = vector.broadcast %cst_193 : f32 to vector<32x2xf32>
    %250 = arith.maximumf %248, %249 : vector<32x2xf32>
    %c0_194 = arith.constant 0 : index
    %c0_195 = arith.constant 0 : index
    %251 = vector.load %arg11[%c0_194, %c0_195] : memref<32x2xf32, #tpu.memory_space<vmem>>, vector<32x2xf32>
    tpu.vector_store %arg11[%c0_194, %c0_195], %250 {strides = array<i32>} : memref<32x2xf32, #tpu.memory_space<vmem>>, vector<32x2xf32>,
    return
  }
  func.func @transform_0(%arg0: i32) -> (i32, i32) {
    %c0_i32 = arith.constant 0 : i32
    %c0_i32_0 = arith.constant 0 : i32
    %c0_i32_1 = arith.constant 0 : i32
    return %c0_i32, %c0_i32_0 : i32, i32
  }
  func.func @transform_1(%arg0: i32) -> (i32, i32) {
    %c0_i32 = arith.constant 0 : i32
    %c0_i32_0 = arith.constant 0 : i32
    %c0_i32_1 = arith.constant 0 : i32
    return %c0_i32, %c0_i32_0 : i32, i32
  }
  func.func @transform_2(%arg0: i32) -> (i32, i32) {
    %c0_i32 = arith.constant 0 : i32
    %c0_i32_0 = arith.constant 0 : i32
    %c0_i32_1 = arith.constant 0 : i32
    return %c0_i32, %c0_i32_0 : i32, i32
  }
  func.func @transform_3(%arg0: i32) -> (i32, i32) {
    %c0_i32 = arith.constant 0 : i32
    %c0_i32_0 = arith.constant 0 : i32
    %c0_i32_1 = arith.constant 0 : i32
    return %c0_i32, %c0_i32_0 : i32, i32
  }
  func.func @transform_4(%arg0: i32) -> (i32, i32) {
    %c0_i32 = arith.constant 0 : i32
    %c0_i32_0 = arith.constant 0 : i32
    %c0_i32_1 = arith.constant 0 : i32
    return %c0_i32, %c0_i32_0 : i32, i32
  }
  func.func @transform_5(%arg0: i32) -> (i32, i32) {
    %c0_i32 = arith.constant 0 : i32
    %c0_i32_0 = arith.constant 0 : i32
    %c0_i32_1 = arith.constant 0 : i32
    return %c0_i32, %c0_i32_0 : i32, i32
  }
  func.func @transform_6(%arg0: i32) -> (i32, i32) {
    %c0_i32 = arith.constant 0 : i32
    %c0_i32_0 = arith.constant 0 : i32
    %c0_i32_1 = arith.constant 0 : i32
    return %c0_i32, %c0_i32_0 : i32, i32
  }
  func.func @transform_7(%arg0: i32) -> (i32, i32) {
    %c0_i32 = arith.constant 0 : i32
    %c0_i32_0 = arith.constant 0 : i32
    %c0_i32_1 = arith.constant 0 : i32
    return %c0_i32, %c0_i32_0 : i32, i32
  }
  func.func @transform_8(%arg0: i32) -> (i32, i32) {
    %c0_i32 = arith.constant 0 : i32
    %c0_i32_0 = arith.constant 0 : i32
    %c0_i32_1 = arith.constant 0 : i32
    return %c0_i32, %c0_i32_0 : i32, i32
  }
  func.func @transform_9(%arg0: i32) -> (i32, i32) {
    %c0_i32 = arith.constant 0 : i32
    %c0_i32_0 = arith.constant 0 : i32
    %c0_i32_1 = arith.constant 0 : i32
    return %c0_i32, %c0_i32_0 : i32, i32
  }
  func.func @transform_10(%arg0: i32) -> (i32, i32) {
    %c0_i32 = arith.constant 0 : i32
    %c0_i32_0 = arith.constant 0 : i32
    %c0_i32_1 = arith.constant 0 : i32
    return %c0_i32, %c0_i32_0 : i32, i32
  }
}

</mosaic_0001>

<llo_original>
// kernel: cnn_base_forward.1
$region0: #{cnn_base_forward.1}
  #allocation0 [shape = 'u32[]', space=smem, size = 0x4, offset = 0x4, fixed_abs, tag = 'smem constant byte address 0x4 - core index']
  #allocation1 [shape = 'u32[144,128]{1,0:T(1,128)}', space=vmem, size = 0x12000, scoped, tag = 'internal scratch']
  #allocation2 [shape = 'f32[72,128]{1,0:T(8,128)}', space=vmem, size = 0x9000, scoped, tag = 'scratch operand']
  #allocation3 [shape = 'f32[72,32]{1,0:T(8,128)}', space=vmem, size = 0x9000, scoped, tag = 'scratch operand']
  #allocation4 [shape = 'f32[144,2]{1,0:T(8,128)}', space=vmem, size = 0x12000, scoped, tag = 'scratch operand']
  %s0 = inlined_call_operand.vmem [shape: f32[8,512], index: 0, kind: input, shape index: {}]
  %s1 = inlined_call_operand.vmem [shape: f32[8,72], index: 1, kind: input, shape index: {}]
  %s2 = inlined_call_operand.vmem [shape: f32[16,72], index: 2, kind: input, shape index: {}]
  %s3 = inlined_call_operand.vmem [shape: f32[32,144], index: 3, kind: input, shape index: {}]
  %s4 = inlined_call_operand.vmem [shape: f32[8,1], index: 4, kind: input, shape index: {}]
  %s5 = inlined_call_operand.vmem [shape: f32[16,1], index: 5, kind: input, shape index: {}]
  %s6 = inlined_call_operand.vmem [shape: f32[32,1], index: 6, kind: input, shape index: {}]
  %s7 = inlined_call_operand.vmem [shape: s32[9,128], index: 7, kind: input, shape index: {}]
  %s8 = inlined_call_operand.vmem [shape: s32[9,32], index: 8, kind: input, shape index: {}]
  %s9 = inlined_call_operand.vmem [shape: s32[9,2], index: 9, kind: input, shape index: {}]
  %s10 = inlined_call_operand.vmem [shape: f32[32,2], index: 10, kind: output, shape index: {}]
  %s11 = sld [smem:[#allocation0]]
  $region50: #{cnn_base_forward.1} parent=0
    _
  %s13 = ssub.s32 1, %s11
  %s14 = scalar_select 0, %s13, %s11
  // Predicated region
  $region2: #{cnn_base_forward.1} parent=0 // pred_check
    _
  $region3: #{cnn_base_forward.1} parent=0 // pred_check_branch
    %16 = sbr.rel (0) target = $region5
  $region4: #{cnn_base_forward.1} parent=0 // pred_region
    _
  $region5: #{cnn_base_forward.1} parent=0 // pred_fallthru
    _
  // Predicated region
  $region6: #{cnn_base_forward.1} parent=0 // pred_check
    _
  $region7: #{cnn_base_forward.1} parent=0 // pred_check_branch
    %18 = sbr.rel (0) target = $region9
  $region8: #{cnn_base_forward.1} parent=0 // pred_region
    _
  $region9: #{cnn_base_forward.1} parent=0 // pred_fallthru
    _
  // Predicated region
  $region10: #{cnn_base_forward.1} parent=0 // pred_check
    _
  $region11: #{cnn_base_forward.1} parent=0 // pred_check_branch
    %20 = sbr.rel (0) target = $region13
  $region12: #{cnn_base_forward.1} parent=0 // pred_region
    _
  $region13: #{cnn_base_forward.1} parent=0 // pred_fallthru
    _
  // Predicated region
  $region14: #{cnn_base_forward.1} parent=0 // pred_check
    _
  $region15: #{cnn_base_forward.1} parent=0 // pred_check_branch
    %22 = sbr.rel (0) target = $region17
  $region16: #{cnn_base_forward.1} parent=0 // pred_region
    _
  $region17: #{cnn_base_forward.1} parent=0 // pred_fallthru
    _
  // Predicated region
  $region18: #{cnn_base_forward.1} parent=0 // pred_check
    _
  $region19: #{cnn_base_forward.1} parent=0 // pred_check_branch
    %24 = sbr.rel (0) target = $region21
  $region20: #{cnn_base_forward.1} parent=0 // pred_region
    _
  $region21: #{cnn_base_forward.1} parent=0 // pred_fallthru
    _
  // Predicated region
  $region22: #{cnn_base_forward.1} parent=0 // pred_check
    _
  $region23: #{cnn_base_forward.1} parent=0 // pred_check_branch
    %26 = sbr.rel (0) target = $region25
  $region24: #{cnn_base_forward.1} parent=0 // pred_region
    _
  $region25: #{cnn_base_forward.1} parent=0 // pred_fallthru
    _
  // Predicated region
  $region26: #{cnn_base_forward.1} parent=0 // pred_check
    _
  $region27: #{cnn_base_forward.1} parent=0 // pred_check_branch
    %28 = sbr.rel (0) target = $region29
  $region28: #{cnn_base_forward.1} parent=0 // pred_region
    _
  $region29: #{cnn_base_forward.1} parent=0 // pred_fallthru
    _
  // Predicated region
  $region30: #{cnn_base_forward.1} parent=0 // pred_check
    _
  $region31: #{cnn_base_forward.1} parent=0 // pred_check_branch
    %30 = sbr.rel (0) target = $region33
  $region32: #{cnn_base_forward.1} parent=0 // pred_region
    _
  $region33: #{cnn_base_forward.1} parent=0 // pred_fallthru
    _
  // Predicated region
  $region34: #{cnn_base_forward.1} parent=0 // pred_check
    _
  $region35: #{cnn_base_forward.1} parent=0 // pred_check_branch
    %32 = sbr.rel (0) target = $region37
  $region36: #{cnn_base_forward.1} parent=0 // pred_region
    _
  $region37: #{cnn_base_forward.1} parent=0 // pred_fallthru
    _
  // Predicated region
  $region38: #{cnn_base_forward.1} parent=0 // pred_check
    _
  $region39: #{cnn_base_forward.1} parent=0 // pred_check_branch
    %34 = sbr.rel (0) target = $region41
  $region40: #{cnn_base_forward.1} parent=0 // pred_region
    _
  $region41: #{cnn_base_forward.1} parent=0 // pred_fallthru
    _
  %v35 = vld [vmem:[%s0] sm:$0xff]
  %v36 = vld [vmem:[%s0 + $0x8] sm:$0xff]
  %v37 = vld [vmem:[%s0 + $0x10] sm:$0xff]
  %v38 = vld [vmem:[%s0 + $0x18] sm:$0xff]
  %v39 = vlaneseq
  %v40 = vshrl.u32 %v39, 7
  %v41 = vadd.s32 %v40, 8
  %v42 = vadd.s32 %v40, 16
  %v43 = vadd.s32 %v40, 24
  %v44 = vadd.s32 %v40, 32
  %v45 = vadd.s32 %v40, 40
  %v46 = vadd.s32 %v40, 48
  %v47 = vadd.s32 %v40, 56
  %v48 = vadd.s32 %v40, 64
  %v49 = vadd.s32 %v40, 72
  %v50 = vadd.s32 %v40, 80
  %v51 = vadd.s32 %v40, 88
  %v52 = vadd.s32 %v40, 96
  %v53 = vadd.s32 %v40, 104
  %v54 = vadd.s32 %v40, 112
  %v55 = vadd.s32 %v40, 120
  %v56 = vadd.s32 %v40, 128
  %v57 = vadd.s32 %v40, 136
  %v58 = vadd.s32 %v40, 144
  %v59 = vadd.s32 %v40, 152
  %v60 = vadd.s32 %v40, 160
  %v61 = vadd.s32 %v40, 168
  %v62 = vadd.s32 %v40, 176
  %v63 = vadd.s32 %v40, 184
  %v64 = vadd.s32 %v40, 192
  %v65 = vadd.s32 %v40, 200
  %v66 = vadd.s32 %v40, 208
  %v67 = vadd.s32 %v40, 216
  %v68 = vadd.s32 %v40, 224
  %v69 = vadd.s32 %v40, 232
  %v70 = vadd.s32 %v40, 240
  %v71 = vadd.s32 %v40, 248
  %v72 = vadd.s32 %v40, 256
  %v73 = vadd.s32 %v40, 264
  %v74 = vadd.s32 %v40, 272
  %v75 = vadd.s32 %v40, 280
  %v76 = vadd.s32 %v40, 288
  %v77 = vadd.s32 %v40, 296
  %v78 = vadd.s32 %v40, 304
  %v79 = vadd.s32 %v40, 312
  %v80 = vadd.s32 %v40, 320
  %v81 = vadd.s32 %v40, 328
  %v82 = vadd.s32 %v40, 336
  %v83 = vadd.s32 %v40, 344
  %v84 = vadd.s32 %v40, 352
  %v85 = vadd.s32 %v40, 360
  %v86 = vadd.s32 %v40, 368
  %v87 = vadd.s32 %v40, 376
  %v88 = vadd.s32 %v40, 384
  %v89 = vadd.s32 %v40, 392
  %v90 = vadd.s32 %v40, 400
  %v91 = vadd.s32 %v40, 408
  %v92 = vadd.s32 %v40, 416
  %v93 = vadd.s32 %v40, 424
  %v94 = vadd.s32 %v40, 432
  %v95 = vadd.s32 %v40, 440
  %v96 = vadd.s32 %v40, 448
  %v97 = vadd.s32 %v40, 456
  %v98 = vadd.s32 %v40, 464
  %v99 = vadd.s32 %v40, 472
  %v100 = vadd.s32 %v40, 480
  %v101 = vadd.s32 %v40, 488
  %v102 = vadd.s32 %v40, 496
  %v103 = vadd.s32 %v40, 504
  %v104 = vld [vmem:[%s7] sm:$0x1]
  %v105 = vlaneseq
  %v106 = vshrl.u32 %v105, 7
  %v107 = vsub.s32 0, %v106
  %v108 = vrot.slane %v104, %v107
  %vm109 = vcmp.eq.s32.totalorder %v40, %v108
  %vm110 = vcmp.eq.s32.totalorder %v41, %v108
  %vm111 = vcmp.eq.s32.totalorder %v42, %v108
  %vm112 = vcmp.eq.s32.totalorder %v43, %v108
  %vm113 = vcmp.eq.s32.totalorder %v44, %v108
  %vm114 = vcmp.eq.s32.totalorder %v45, %v108
  %vm115 = vcmp.eq.s32.totalorder %v46, %v108
  %vm116 = vcmp.eq.s32.totalorder %v47, %v108
  %vm117 = vcmp.eq.s32.totalorder %v48, %v108
  %vm118 = vcmp.eq.s32.totalorder %v49, %v108
  %vm119 = vcmp.eq.s32.totalorder %v50, %v108
  %vm120 = vcmp.eq.s32.totalorder %v51, %v108
  %vm121 = vcmp.eq.s32.totalorder %v52, %v108
  %vm122 = vcmp.eq.s32.totalorder %v53, %v108
  %vm123 = vcmp.eq.s32.totalorder %v54, %v108
  %vm124 = vcmp.eq.s32.totalorder %v55, %v108
  %vm125 = vcmp.eq.s32.totalorder %v56, %v108
  %vm126 = vcmp.eq.s32.totalorder %v57, %v108
  %vm127 = vcmp.eq.s32.totalorder %v58, %v108
  %vm128 = vcmp.eq.s32.totalorder %v59, %v108
  %vm129 = vcmp.eq.s32.totalorder %v60, %v108
  %vm130 = vcmp.eq.s32.totalorder %v61, %v108
  %vm131 = vcmp.eq.s32.totalorder %v62, %v108
  %vm132 = vcmp.eq.s32.totalorder %v63, %v108
  %vm133 = vcmp.eq.s32.totalorder %v64, %v108
  %vm134 = vcmp.eq.s32.totalorder %v65, %v108
  %vm135 = vcmp.eq.s32.totalorder %v66, %v108
  %vm136 = vcmp.eq.s32.totalorder %v67, %v108
  %vm137 = vcmp.eq.s32.totalorder %v68, %v108
  %vm138 = vcmp.eq.s32.totalorder %v69, %v108
  %vm139 = vcmp.eq.s32.totalorder %v70, %v108
  %vm140 = vcmp.eq.s32.totalorder %v71, %v108
  %vm141 = vcmp.eq.s32.totalorder %v72, %v108
  %vm142 = vcmp.eq.s32.totalorder %v73, %v108
  %vm143 = vcmp.eq.s32.totalorder %v74, %v108
  %vm144 = vcmp.eq.s32.totalorder %v75, %v108
  %vm145 = vcmp.eq.s32.totalorder %v76, %v108
  %vm146 = vcmp.eq.s32.totalorder %v77, %v108
  %vm147 = vcmp.eq.s32.totalorder %v78, %v108
  %vm148 = vcmp.eq.s32.totalorder %v79, %v108
  %vm149 = vcmp.eq.s32.totalorder %v80, %v108
  %vm150 = vcmp.eq.s32.totalorder %v81, %v108
  %vm151 = vcmp.eq.s32.totalorder %v82, %v108
  %vm152 = vcmp.eq.s32.totalorder %v83, %v108
  %vm153 = vcmp.eq.s32.totalorder %v84, %v108
  %vm154 = vcmp.eq.s32.totalorder %v85, %v108
  %vm155 = vcmp.eq.s32.totalorder %v86, %v108
  %vm156 = vcmp.eq.s32.totalorder %v87, %v108
  %vm157 = vcmp.eq.s32.totalorder %v88, %v108
  %vm158 = vcmp.eq.s32.totalorder %v89, %v108
  %vm159 = vcmp.eq.s32.totalorder %v90, %v108
  %vm160 = vcmp.eq.s32.totalorder %v91, %v108
  %vm161 = vcmp.eq.s32.totalorder %v92, %v108
  %vm162 = vcmp.eq.s32.totalorder %v93, %v108
  %vm163 = vcmp.eq.s32.totalorder %v94, %v108
  %vm164 = vcmp.eq.s32.totalorder %v95, %v108
  %vm165 = vcmp.eq.s32.totalorder %v96, %v108
  %vm166 = vcmp.eq.s32.totalorder %v97, %v108
  %vm167 = vcmp.eq.s32.totalorder %v98, %v108
  %vm168 = vcmp.eq.s32.totalorder %v99, %v108
  %vm169 = vcmp.eq.s32.totalorder %v100, %v108
  %vm170 = vcmp.eq.s32.totalorder %v101, %v108
  %vm171 = vcmp.eq.s32.totalorder %v102, %v108
  %vm172 = vcmp.eq.s32.totalorder %v103, %v108
  %v173 = vsel %vm109, 1.0, 0.0
  %v174 = vsel %vm110, 1.0, 0.0
  %v175 = vsel %vm111, 1.0, 0.0
  %v176 = vsel %vm112, 1.0, 0.0
  %v177 = vsel %vm113, 1.0, 0.0
  %v178 = vsel %vm114, 1.0, 0.0
  %v179 = vsel %vm115, 1.0, 0.0
  %v180 = vsel %vm116, 1.0, 0.0
  %v181 = vsel %vm117, 1.0, 0.0
  %v182 = vsel %vm118, 1.0, 0.0
  %v183 = vsel %vm119, 1.0, 0.0
  %v184 = vsel %vm120, 1.0, 0.0
  %v185 = vsel %vm121, 1.0, 0.0
  %v186 = vsel %vm122, 1.0, 0.0
  %v187 = vsel %vm123, 1.0, 0.0
  %v188 = vsel %vm124, 1.0, 0.0
  %v189 = vsel %vm125, 1.0, 0.0
  %v190 = vsel %vm126, 1.0, 0.0
  %v191 = vsel %vm127, 1.0, 0.0
  %v192 = vsel %vm128, 1.0, 0.0
  %v193 = vsel %vm129, 1.0, 0.0
  %v194 = vsel %vm130, 1.0, 0.0
  %v195 = vsel %vm131, 1.0, 0.0
  %v196 = vsel %vm132, 1.0, 0.0
  %v197 = vsel %vm133, 1.0, 0.0
  %v198 = vsel %vm134, 1.0, 0.0
  %v199 = vsel %vm135, 1.0, 0.0
  %v200 = vsel %vm136, 1.0, 0.0
  %v201 = vsel %vm137, 1.0, 0.0
  %v202 = vsel %vm138, 1.0, 0.0
  %v203 = vsel %vm139, 1.0, 0.0
  %v204 = vsel %vm140, 1.0, 0.0
  %v205 = vsel %vm141, 1.0, 0.0
  %v206 = vsel %vm142, 1.0, 0.0
  %v207 = vsel %vm143, 1.0, 0.0
  %v208 = vsel %vm144, 1.0, 0.0
  %v209 = vsel %vm145, 1.0, 0.0
  %v210 = vsel %vm146, 1.0, 0.0
  %v211 = vsel %vm147, 1.0, 0.0
  %v212 = vsel %vm148, 1.0, 0.0
  %v213 = vsel %vm149, 1.0, 0.0
  %v214 = vsel %vm150, 1.0, 0.0
  %v215 = vsel %vm151, 1.0, 0.0
  %v216 = vsel %vm152, 1.0, 0.0
  %v217 = vsel %vm153, 1.0, 0.0
  %v218 = vsel %vm154, 1.0, 0.0
  %v219 = vsel %vm155, 1.0, 0.0
  %v220 = vsel %vm156, 1.0, 0.0
  %v221 = vsel %vm157, 1.0, 0.0
  %v222 = vsel %vm158, 1.0, 0.0
  %v223 = vsel %vm159, 1.0, 0.0
  %v224 = vsel %vm160, 1.0, 0.0
  %v225 = vsel %vm161, 1.0, 0.0
  %v226 = vsel %vm162, 1.0, 0.0
  %v227 = vsel %vm163, 1.0, 0.0
  %v228 = vsel %vm164, 1.0, 0.0
  %v229 = vsel %vm165, 1.0, 0.0
  %v230 = vsel %vm166, 1.0, 0.0
  %v231 = vsel %vm167, 1.0, 0.0
  %v232 = vsel %vm168, 1.0, 0.0
  %v233 = vsel %vm169, 1.0, 0.0
  %v234 = vsel %vm170, 1.0, 0.0
  %v235 = vsel %vm171, 1.0, 0.0
  %v236 = vsel %vm172, 1.0, 0.0
  %237 = vmatprep.subr.mxu0 0.0
  %238 = vmatpush1.msra.mxu0 %v173
  %239 = vmatprep.subr.mxu0 0.0
  %240 = vmatpush1.msra.mxu0 %v174
  %241 = vmatprep.subr.mxu0 0.0
  %242 = vmatpush1.msra.mxu0 %v175
  %243 = vmatprep.subr.mxu0 0.0
  %244 = vmatpush1.msra.mxu0 %v176
  %245 = vmatprep.subr.mxu0 0.0
  %246 = vmatpush1.msra.mxu0 %v177
  %247 = vmatprep.subr.mxu0 0.0
  %248 = vmatpush1.msra.mxu0 %v178
  %249 = vmatprep.subr.mxu0 0.0
  %250 = vmatpush1.msra.mxu0 %v179
  %251 = vmatprep.subr.mxu0 0.0
  %252 = vmatpush1.msra.mxu0 %v180
  %253 = vmatprep.subr.mxu0 0.0
  %254 = vmatpush1.msra.mxu0 %v181
  %255 = vmatprep.subr.mxu0 0.0
  %256 = vmatpush1.msra.mxu0 %v182
  %257 = vmatprep.subr.mxu0 0.0
  %258 = vmatpush1.msra.mxu0 %v183
  %259 = vmatprep.subr.mxu0 0.0
  %260 = vmatpush1.msra.mxu0 %v184
  %261 = vmatprep.subr.mxu0 0.0
  %262 = vmatpush1.msra.mxu0 %v185
  %263 = vmatprep.subr.mxu0 0.0
  %264 = vmatpush1.msra.mxu0 %v186
  %265 = vmatprep.subr.mxu0 0.0
  %266 = vmatpush1.msra.mxu0 %v187
  %267 = vmatprep.subr.mxu0 0.0
  %268 = vmatpush1.msra.mxu0 %v188
  %269 = vmatprep.subr.mxu0 0.0
  %270 = vmatpush1.msra.mxu0 %v189
  %271 = vmatprep.subr.mxu0 0.0
  %272 = vmatpush1.msra.mxu0 %v190
  %273 = vmatprep.subr.mxu0 0.0
  %274 = vmatpush1.msra.mxu0 %v191
  %275 = vmatprep.subr.mxu0 0.0
  %276 = vmatpush1.msra.mxu0 %v192
  %277 = vmatprep.subr.mxu0 0.0
  %278 = vmatpush1.msra.mxu0 %v193
  %279 = vmatprep.subr.mxu0 0.0
  %280 = vmatpush1.msra.mxu0 %v194
  %281 = vmatprep.subr.mxu0 0.0
  %282 = vmatpush1.msra.mxu0 %v195
  %283 = vmatprep.subr.mxu0 0.0
  %284 = vmatpush1.msra.mxu0 %v196
  %285 = vmatprep.subr.mxu0 0.0
  %286 = vmatpush1.msra.mxu0 %v197
  %287 = vmatprep.subr.mxu0 0.0
  %288 = vmatpush1.msra.mxu0 %v198
  %289 = vmatprep.subr.mxu0 0.0
  %290 = vmatpush1.msra.mxu0 %v199
  %291 = vmatprep.subr.mxu0 0.0
  %292 = vmatpush1.msra.mxu0 %v200
  %293 = vmatprep.subr.mxu0 0.0
  %294 = vmatpush1.msra.mxu0 %v201
  %295 = vmatprep.subr.mxu0 0.0
  %296 = vmatpush1.msra.mxu0 %v202
  %297 = vmatprep.subr.mxu0 0.0
  %298 = vmatpush1.msra.mxu0 %v203
  %299 = vmatprep.subr.mxu0 0.0
  %300 = vmatpush1.msra.mxu0 %v204
  %301 = vmatprep.mubr.f32.mxu0 %v36
  %302 = vmatmul.mubr.f32.gmra.mrb[0].mxu0 %v35
  %v303 = vpop.f32.mrb[0].mxu0
  %v304 = vadd.f32 0.0, %v303
  %v305 = vpop.f32.mrb[0].mxu0
  %306 = vdwg.mxu0
  %307 = vmatprep.subr.mxu0 0.0
  %308 = vmatpush1.msra.mxu0 %v205
  %309 = vmatprep.subr.mxu0 0.0
  %310 = vmatpush1.msra.mxu0 %v206
  %311 = vmatprep.subr.mxu0 0.0
  %312 = vmatpush1.msra.mxu0 %v207
  %313 = vmatprep.subr.mxu0 0.0
  %314 = vmatpush1.msra.mxu0 %v208
  %315 = vmatprep.subr.mxu0 0.0
  %316 = vmatpush1.msra.mxu0 %v209
  %317 = vmatprep.subr.mxu0 0.0
  %318 = vmatpush1.msra.mxu0 %v210
  %319 = vmatprep.subr.mxu0 0.0
  %320 = vmatpush1.msra.mxu0 %v211
  %321 = vmatprep.subr.mxu0 0.0
  %322 = vmatpush1.msra.mxu0 %v212
  %323 = vmatprep.subr.mxu0 0.0
  %324 = vmatpush1.msra.mxu0 %v213
  %325 = vmatprep.subr.mxu0 0.0
  %326 = vmatpush1.msra.mxu0 %v214
  %327 = vmatprep.subr.mxu0 0.0
  %328 = vmatpush1.msra.mxu0 %v215
  %329 = vmatprep.subr.mxu0 0.0
  %330 = vmatpush1.msra.mxu0 %v216
  %331 = vmatprep.subr.mxu0 0.0
  %332 = vmatpush1.msra.mxu0 %v217
  %333 = vmatprep.subr.mxu0 0.0
  %334 = vmatpush1.msra.mxu0 %v218
  %335 = vmatprep.subr.mxu0 0.0
  %336 = vmatpush1.msra.mxu0 %v219
  %337 = vmatprep.subr.mxu0 0.0
  %338 = vmatpush1.msra.mxu0 %v220
  %339 = vmatprep.subr.mxu0 0.0
  %340 = vmatpush1.msra.mxu0 %v221
  %341 = vmatprep.subr.mxu0 0.0
  %342 = vmatpush1.msra.mxu0 %v222
  %343 = vmatprep.subr.mxu0 0.0
  %344 = vmatpush1.msra.mxu0 %v223
  %345 = vmatprep.subr.mxu0 0.0
  %346 = vmatpush1.msra.mxu0 %v224
  %347 = vmatprep.subr.mxu0 0.0
  %348 = vmatpush1.msra.mxu0 %v225
  %349 = vmatprep.subr.mxu0 0.0
  %350 = vmatpush1.msra.mxu0 %v226
  %351 = vmatprep.subr.mxu0 0.0
  %352 = vmatpush1.msra.mxu0 %v227
  %353 = vmatprep.subr.mxu0 0.0
  %354 = vmatpush1.msra.mxu0 %v228
  %355 = vmatprep.subr.mxu0 0.0
  %356 = vmatpush1.msra.mxu0 %v229
  %357 = vmatprep.subr.mxu0 0.0
  %358 = vmatpush1.msra.mxu0 %v230
  %359 = vmatprep.subr.mxu0 0.0
  %360 = vmatpush1.msra.mxu0 %v231
  %361 = vmatprep.subr.mxu0 0.0
  %362 = vmatpush1.msra.mxu0 %v232
  %363 = vmatprep.subr.mxu0 0.0
  %364 = vmatpush1.msra.mxu0 %v233
  %365 = vmatprep.subr.mxu0 0.0
  %366 = vmatpush1.msra.mxu0 %v234
  %367 = vmatprep.subr.mxu0 0.0
  %368 = vmatpush1.msra.mxu0 %v235
  %369 = vmatprep.subr.mxu0 0.0
  %370 = vmatpush1.msra.mxu0 %v236
  %371 = vmatprep.mubr.f32.mxu0 %v38
  %372 = vmatmul.mubr.f32.gmra.mrb[0].mxu0 %v37
  %v373 = vpop.f32.mrb[0].mxu0
  %v374 = vadd.f32 %v304, %v373
  %v375 = vpop.f32.mrb[0].mxu0
  %376 = vdwg.mxu0
  %377 = vst [vmem:[#allocation2] sm:$0xff] %v374
  %v378 = vld [vmem:[%s7 + $0x1] sm:$0x1]
  %v379 = vlaneseq
  %v380 = vshrl.u32 %v379, 7
  %v381 = vsub.s32 0, %v380
  %v382 = vrot.slane %v378, %v381
  %vm383 = vcmp.eq.s32.totalorder %v40, %v382
  %vm384 = vcmp.eq.s32.totalorder %v41, %v382
  %vm385 = vcmp.eq.s32.totalorder %v42, %v382
  %vm386 = vcmp.eq.s32.totalorder %v43, %v382
  %vm387 = vcmp.eq.s32.totalorder %v44, %v382
  %vm388 = vcmp.eq.s32.totalorder %v45, %v382
  %vm389 = vcmp.eq.s32.totalorder %v46, %v382
  %vm390 = vcmp.eq.s32.totalorder %v47, %v382
  %vm391 = vcmp.eq.s32.totalorder %v48, %v382
  %vm392 = vcmp.eq.s32.totalorder %v49, %v382
  %vm393 = vcmp.eq.s32.totalorder %v50, %v382
  %vm394 = vcmp.eq.s32.totalorder %v51, %v382
  %vm395 = vcmp.eq.s32.totalorder %v52, %v382
  %vm396 = vcmp.eq.s32.totalorder %v53, %v382
  %vm397 = vcmp.eq.s32.totalorder %v54, %v382
  %vm398 = vcmp.eq.s32.totalorder %v55, %v382
  %vm399 = vcmp.eq.s32.totalorder %v56, %v382
  %vm400 = vcmp.eq.s32.totalorder %v57, %v382
  %vm401 = vcmp.eq.s32.totalorder %v58, %v382
  %vm402 = vcmp.eq.s32.totalorder %v59, %v382
  %vm403 = vcmp.eq.s32.totalorder %v60, %v382
  %vm404 = vcmp.eq.s32.totalorder %v61, %v382
  %vm405 = vcmp.eq.s32.totalorder %v62, %v382
  %vm406 = vcmp.eq.s32.totalorder %v63, %v382
  %vm407 = vcmp.eq.s32.totalorder %v64, %v382
  %vm408 = vcmp.eq.s32.totalorder %v65, %v382
  %vm409 = vcmp.eq.s32.totalorder %v66, %v382
  %vm410 = vcmp.eq.s32.totalorder %v67, %v382
  %vm411 = vcmp.eq.s32.totalorder %v68, %v382
  %vm412 = vcmp.eq.s32.totalorder %v69, %v382
  %vm413 = vcmp.eq.s32.totalorder %v70, %v382
  %vm414 = vcmp.eq.s32.totalorder %v71, %v382
  %vm415 = vcmp.eq.s32.totalorder %v72, %v382
  %vm416 = vcmp.eq.s32.totalorder %v73, %v382
  %vm417 = vcmp.eq.s32.totalorder %v74, %v382
  %vm418 = vcmp.eq.s32.totalorder %v75, %v382
  %vm419 = vcmp.eq.s32.totalorder %v76, %v382
  %vm420 = vcmp.eq.s32.totalorder %v77, %v382
  %vm421 = vcmp.eq.s32.totalorder %v78, %v382
  %vm422 = vcmp.eq.s32.totalorder %v79, %v382
  %vm423 = vcmp.eq.s32.totalorder %v80, %v382
  %vm424 = vcmp.eq.s32.totalorder %v81, %v382
  %vm425 = vcmp.eq.s32.totalorder %v82, %v382
  %vm426 = vcmp.eq.s32.totalorder %v83, %v382
  %vm427 = vcmp.eq.s32.totalorder %v84, %v382
  %vm428 = vcmp.eq.s32.totalorder %v85, %v382
  %vm429 = vcmp.eq.s32.totalorder %v86, %v382
  %vm430 = vcmp.eq.s32.totalorder %v87, %v382
  %vm431 = vcmp.eq.s32.totalorder %v88, %v382
  %vm432 = vcmp.eq.s32.totalorder %v89, %v382
  %vm433 = vcmp.eq.s32.totalorder %v90, %v382
  %vm434 = vcmp.eq.s32.totalorder %v91, %v382
  %vm435 = vcmp.eq.s32.totalorder %v92, %v382
  %vm436 = vcmp.eq.s32.totalorder %v93, %v382
  %vm437 = vcmp.eq.s32.totalorder %v94, %v382
  %vm438 = vcmp.eq.s32.totalorder %v95, %v382
  %vm439 = vcmp.eq.s32.totalorder %v96, %v382
  %vm440 = vcmp.eq.s32.totalorder %v97, %v382
  %vm441 = vcmp.eq.s32.totalorder %v98, %v382
  %vm442 = vcmp.eq.s32.totalorder %v99, %v382
  %vm443 = vcmp.eq.s32.totalorder %v100, %v382
  %vm444 = vcmp.eq.s32.totalorder %v101, %v382
  %vm445 = vcmp.eq.s32.totalorder %v102, %v382
  %vm446 = vcmp.eq.s32.totalorder %v103, %v382
  %v447 = vsel %vm383, 1.0, 0.0
  %v448 = vsel %vm384, 1.0, 0.0
  %v449 = vsel %vm385, 1.0, 0.0
  %v450 = vsel %vm386, 1.0, 0.0
  %v451 = vsel %vm387, 1.0, 0.0
  %v452 = vsel %vm388, 1.0, 0.0
  %v453 = vsel %vm389, 1.0, 0.0
  %v454 = vsel %vm390, 1.0, 0.0
  %v455 = vsel %vm391, 1.0, 0.0
  %v456 = vsel %vm392, 1.0, 0.0
  %v457 = vsel %vm393, 1.0, 0.0
  %v458 = vsel %vm394, 1.0, 0.0
  %v459 = vsel %vm395, 1.0, 0.0
  %v460 = vsel %vm396, 1.0, 0.0
  %v461 = vsel %vm397, 1.0, 0.0
  %v462 = vsel %vm398, 1.0, 0.0
  %v463 = vsel %vm399, 1.0, 0.0
  %v464 = vsel %vm400, 1.0, 0.0
  %v465 = vsel %vm401, 1.0, 0.0
  %v466 = vsel %vm402, 1.0, 0.0
  %v467 = vsel %vm403, 1.0, 0.0
  %v468 = vsel %vm404, 1.0, 0.0
  %v469 = vsel %vm405, 1.0, 0.0
  %v470 = vsel %vm406, 1.0, 0.0
  %v471 = vsel %vm407, 1.0, 0.0
  %v472 = vsel %vm408, 1.0, 0.0
  %v473 = vsel %vm409, 1.0, 0.0
  %v474 = vsel %vm410, 1.0, 0.0
  %v475 = vsel %vm411, 1.0, 0.0
  %v476 = vsel %vm412, 1.0, 0.0
  %v477 = vsel %vm413, 1.0, 0.0
  %v478 = vsel %vm414, 1.0, 0.0
  %v479 = vsel %vm415, 1.0, 0.0
  %v480 = vsel %vm416, 1.0, 0.0
  %v481 = vsel %vm417, 1.0, 0.0
  %v482 = vsel %vm418, 1.0, 0.0
  %v483 = vsel %vm419, 1.0, 0.0
  %v484 = vsel %vm420, 1.0, 0.0
  %v485 = vsel %vm421, 1.0, 0.0
  %v486 = vsel %vm422, 1.0, 0.0
  %v487 = vsel %vm423, 1.0, 0.0
  %v488 = vsel %vm424, 1.0, 0.0
  %v489 = vsel %vm425, 1.0, 0.0
  %v490 = vsel %vm426, 1.0, 0.0
  %v491 = vsel %vm427, 1.0, 0.0
  %v492 = vsel %vm428, 1.0, 0.0
  %v493 = vsel %vm429, 1.0, 0.0
  %v494 = vsel %vm430, 1.0, 0.0
  %v495 = vsel %vm431, 1.0, 0.0
  %v496 = vsel %vm432, 1.0, 0.0
  %v497 = vsel %vm433, 1.0, 0.0
  %v498 = vsel %vm434, 1.0, 0.0
  %v499 = vsel %vm435, 1.0, 0.0
  %v500 = vsel %vm436, 1.0, 0.0
  %v501 = vsel %vm437, 1.0, 0.0
  %v502 = vsel %vm438, 1.0, 0.0
  %v503 = vsel %vm439, 1.0, 0.0
  %v504 = vsel %vm440, 1.0, 0.0
  %v505 = vsel %vm441, 1.0, 0.0
  %v506 = vsel %vm442, 1.0, 0.0
  %v507 = vsel %vm443, 1.0, 0.0
  %v508 = vsel %vm444, 1.0, 0.0
  %v509 = vsel %vm445, 1.0, 0.0
  %v510 = vsel %vm446, 1.0, 0.0
  %511 = vmatprep.subr.mxu0 0.0
  %512 = vmatpush1.msra.mxu0 %v447
  %513 = vmatprep.subr.mxu0 0.0
  %514 = vmatpush1.msra.mxu0 %v448
  %515 = vmatprep.subr.mxu0 0.0
  %516 = vmatpush1.msra.mxu0 %v449
  %517 = vmatprep.subr.mxu0 0.0
  %518 = vmatpush1.msra.mxu0 %v450
  %519 = vmatprep.subr.mxu0 0.0
  %520 = vmatpush1.msra.mxu0 %v451
  %521 = vmatprep.subr.mxu0 0.0
  %522 = vmatpush1.msra.mxu0 %v452
  %523 = vmatprep.subr.mxu0 0.0
  %524 = vmatpush1.msra.mxu0 %v453
  %525 = vmatprep.subr.mxu0 0.0
  %526 = vmatpush1.msra.mxu0 %v454
  %527 = vmatprep.subr.mxu0 0.0
  %528 = vmatpush1.msra.mxu0 %v455
  %529 = vmatprep.subr.mxu0 0.0
  %530 = vmatpush1.msra.mxu0 %v456
  %531 = vmatprep.subr.mxu0 0.0
  %532 = vmatpush1.msra.mxu0 %v457
  %533 = vmatprep.subr.mxu0 0.0
  %534 = vmatpush1.msra.mxu0 %v458
  %535 = vmatprep.subr.mxu0 0.0
  %536 = vmatpush1.msra.mxu0 %v459
  %537 = vmatprep.subr.mxu0 0.0
  %538 = vmatpush1.msra.mxu0 %v460
  %539 = vmatprep.subr.mxu0 0.0
  %540 = vmatpush1.msra.mxu0 %v461
  %541 = vmatprep.subr.mxu0 0.0
  %542 = vmatpush1.msra.mxu0 %v462
  %543 = vmatprep.subr.mxu0 0.0
  %544 = vmatpush1.msra.mxu0 %v463
  %545 = vmatprep.subr.mxu0 0.0
  %546 = vmatpush1.msra.mxu0 %v464
  %547 = vmatprep.subr.mxu0 0.0
  %548 = vmatpush1.msra.mxu0 %v465
  %549 = vmatprep.subr.mxu0 0.0
  %550 = vmatpush1.msra.mxu0 %v466
  %551 = vmatprep.subr.mxu0 0.0
  %552 = vmatpush1.msra.mxu0 %v467
  %553 = vmatprep.subr.mxu0 0.0
  %554 = vmatpush1.msra.mxu0 %v468
  %555 = vmatprep.subr.mxu0 0.0
  %556 = vmatpush1.msra.mxu0 %v469
  %557 = vmatprep.subr.mxu0 0.0
  %558 = vmatpush1.msra.mxu0 %v470
  %559 = vmatprep.subr.mxu0 0.0
  %560 = vmatpush1.msra.mxu0 %v471
  %561 = vmatprep.subr.mxu0 0.0
  %562 = vmatpush1.msra.mxu0 %v472
  %563 = vmatprep.subr.mxu0 0.0
  %564 = vmatpush1.msra.mxu0 %v473
  %565 = vmatprep.subr.mxu0 0.0
  %566 = vmatpush1.msra.mxu0 %v474
  %567 = vmatprep.subr.mxu0 0.0
  %568 = vmatpush1.msra.mxu0 %v475
  %569 = vmatprep.subr.mxu0 0.0
  %570 = vmatpush1.msra.mxu0 %v476
  %571 = vmatprep.subr.mxu0 0.0
  %572 = vmatpush1.msra.mxu0 %v477
  %573 = vmatprep.subr.mxu0 0.0
  %574 = vmatpush1.msra.mxu0 %v478
  %575 = vmatprep.mubr.f32.mxu0 %v36
  %576 = vmatmul.mubr.f32.gmra.mrb[0].mxu0 %v35
  %v577 = vpop.f32.mrb[0].mxu0
  %v578 = vadd.f32 0.0, %v577
  %v579 = vpop.f32.mrb[0].mxu0
  %580 = vdwg.mxu0
  %581 = vmatprep.subr.mxu0 0.0
  %582 = vmatpush1.msra.mxu0 %v479
  %583 = vmatprep.subr.mxu0 0.0
  %584 = vmatpush1.msra.mxu0 %v480
  %585 = vmatprep.subr.mxu0 0.0
  %586 = vmatpush1.msra.mxu0 %v481
  %587 = vmatprep.subr.mxu0 0.0
  %588 = vmatpush1.msra.mxu0 %v482
  %589 = vmatprep.subr.mxu0 0.0
  %590 = vmatpush1.msra.mxu0 %v483
  %591 = vmatprep.subr.mxu0 0.0
  %592 = vmatpush1.msra.mxu0 %v484
  %593 = vmatprep.subr.mxu0 0.0
  %594 = vmatpush1.msra.mxu0 %v485
  %595 = vmatprep.subr.mxu0 0.0
  %596 = vmatpush1.msra.mxu0 %v486
  %597 = vmatprep.subr.mxu0 0.0
  %598 = vmatpush1.msra.mxu0 %v487
  %599 = vmatprep.subr.mxu0 0.0
  %600 = vmatpush1.msra.mxu0 %v488
  %601 = vmatprep.subr.mxu0 0.0
  %602 = vmatpush1.msra.mxu0 %v489
  %603 = vmatprep.subr.mxu0 0.0
  %604 = vmatpush1.msra.mxu0 %v490
  %605 = vmatprep.subr.mxu0 0.0
  %606 = vmatpush1.msra.mxu0 %v491
  %607 = vmatprep.subr.mxu0 0.0
  %608 = vmatpush1.msra.mxu0 %v492
  %609 = vmatprep.subr.mxu0 0.0
  %610 = vmatpush1.msra.mxu0 %v493
  %611 = vmatprep.subr.mxu0 0.0
  %612 = vmatpush1.msra.mxu0 %v494
  %613 = vmatprep.subr.mxu0 0.0
  %614 = vmatpush1.msra.mxu0 %v495
  %615 = vmatprep.subr.mxu0 0.0
  %616 = vmatpush1.msra.mxu0 %v496
  %617 = vmatprep.subr.mxu0 0.0
  %618 = vmatpush1.msra.mxu0 %v497
  %619 = vmatprep.subr.mxu0 0.0
  %620 = vmatpush1.msra.mxu0 %v498
  %621 = vmatprep.subr.mxu0 0.0
  %622 = vmatpush1.msra.mxu0 %v499
  %623 = vmatprep.subr.mxu0 0.0
  %624 = vmatpush1.msra.mxu0 %v500
  %625 = vmatprep.subr.mxu0 0.0
  %626 = vmatpush1.msra.mxu0 %v501
  %627 = vmatprep.subr.mxu0 0.0
  %628 = vmatpush1.msra.mxu0 %v502
  %629 = vmatprep.subr.mxu0 0.0
  %630 = vmatpush1.msra.mxu0 %v503
  %631 = vmatprep.subr.mxu0 0.0
  %632 = vmatpush1.msra.mxu0 %v504
  %633 = vmatprep.subr.mxu0 0.0
  %634 = vmatpush1.msra.mxu0 %v505
  %635 = vmatprep.subr.mxu0 0.0
  %636 = vmatpush1.msra.mxu0 %v506
  %637 = vmatprep.subr.mxu0 0.0
  %638 = vmatpush1.msra.mxu0 %v507
  %639 = vmatprep.subr.mxu0 0.0
  %640 = vmatpush1.msra.mxu0 %v508
  %641 = vmatprep.subr.mxu0 0.0
  %642 = vmatpush1.msra.mxu0 %v509
  %643 = vmatprep.subr.mxu0 0.0
  %644 = vmatpush1.msra.mxu0 %v510
  %645 = vmatprep.mubr.f32.mxu0 %v38
  %646 = vmatmul.mubr.f32.gmra.mrb[0].mxu0 %v37
  %v647 = vpop.f32.mrb[0].mxu0
  %v648 = vadd.f32 %v578, %v647
  %v649 = vpop.f32.mrb[0].mxu0
  %650 = vdwg.mxu0
  %651 = vst [vmem:[#allocation2 + $0x8] sm:$0xff] %v648
  %v652 = vld [vmem:[%s7 + $0x2] sm:$0x1]
  %v653 = vlaneseq
  %v654 = vshrl.u32 %v653, 7
  %v655 = vsub.s32 0, %v654
  %v656 = vrot.slane %v652, %v655
  %vm657 = vcmp.eq.s32.totalorder %v40, %v656
  %vm658 = vcmp.eq.s32.totalorder %v41, %v656
  %vm659 = vcmp.eq.s32.totalorder %v42, %v656
  %vm660 = vcmp.eq.s32.totalorder %v43, %v656
  %vm661 = vcmp.eq.s32.totalorder %v44, %v656
  %vm662 = vcmp.eq.s32.totalorder %v45, %v656
  %vm663 = vcmp.eq.s32.totalorder %v46, %v656
  %vm664 = vcmp.eq.s32.totalorder %v47, %v656
  %vm665 = vcmp.eq.s32.totalorder %v48, %v656
  %vm666 = vcmp.eq.s32.totalorder %v49, %v656
  %vm667 = vcmp.eq.s32.totalorder %v50, %v656
  %vm668 = vcmp.eq.s32.totalorder %v51, %v656
  %vm669 = vcmp.eq.s32.totalorder %v52, %v656
  %vm670 = vcmp.eq.s32.totalorder %v53, %v656
  %vm671 = vcmp.eq.s32.totalorder %v54, %v656
  %vm672 = vcmp.eq.s32.totalorder %v55, %v656
  %vm673 = vcmp.eq.s32.totalorder %v56, %v656
  %vm674 = vcmp.eq.s32.totalorder %v57, %v656
  %vm675 = vcmp.eq.s32.totalorder %v58, %v656
  %vm676 = vcmp.eq.s32.totalorder %v59, %v656
  %vm677 = vcmp.eq.s32.totalorder %v60, %v656
  %vm678 = vcmp.eq.s32.totalorder %v61, %v656
  %vm679 = vcmp.eq.s32.totalorder %v62, %v656
  %vm680 = vcmp.eq.s32.totalorder %v63, %v656
  %vm681 = vcmp.eq.s32.totalorder %v64, %v656
  %vm682 = vcmp.eq.s32.totalorder %v65, %v656
  %vm683 = vcmp.eq.s32.totalorder %v66, %v656
  %vm684 = vcmp.eq.s32.totalorder %v67, %v656
  %vm685 = vcmp.eq.s32.totalorder %v68, %v656
  %vm686 = vcmp.eq.s32.totalorder %v69, %v656
  %vm687 = vcmp.eq.s32.totalorder %v70, %v656
  %vm688 = vcmp.eq.s32.totalorder %v71, %v656
  %vm689 = vcmp.eq.s32.totalorder %v72, %v656
  %vm690 = vcmp.eq.s32.totalorder %v73, %v656
  %vm691 = vcmp.eq.s32.totalorder %v74, %v656
  %vm692 = vcmp.eq.s32.totalorder %v75, %v656
  %vm693 = vcmp.eq.s32.totalorder %v76, %v656
  %vm694 = vcmp.eq.s32.totalorder %v77, %v656
  %vm695 = vcmp.eq.s32.totalorder %v78, %v656
  %vm696 = vcmp.eq.s32.totalorder %v79, %v656
  %vm697 = vcmp.eq.s32.totalorder %v80, %v656
  %vm698 = vcmp.eq.s32.totalorder %v81, %v656
  %vm699 = vcmp.eq.s32.totalorder %v82, %v656
  %vm700 = vcmp.eq.s32.totalorder %v83, %v656
  %vm701 = vcmp.eq.s32.totalorder %v84, %v656
  %vm702 = vcmp.eq.s32.totalorder %v85, %v656
  %vm703 = vcmp.eq.s32.totalorder %v86, %v656
  %vm704 = vcmp.eq.s32.totalorder %v87, %v656
  %vm705 = vcmp.eq.s32.totalorder %v88, %v656
  %vm706 = vcmp.eq.s32.totalorder %v89, %v656
  %vm707 = vcmp.eq.s32.totalorder %v90, %v656
  %vm708 = vcmp.eq.s32.totalorder %v91, %v656
  %vm709 = vcmp.eq.s32.totalorder %v92, %v656
  %vm710 = vcmp.eq.s32.totalorder %v93, %v656
  %vm711 = vcmp.eq.s32.totalorder %v94, %v656
  %vm712 = vcmp.eq.s32.totalorder %v95, %v656
  %vm713 = vcmp.eq.s32.totalorder %v96, %v656
  %vm714 = vcmp.eq.s32.totalorder %v97, %v656
  %vm715 = vcmp.eq.s32.totalorder %v98, %v656
  %vm716 = vcmp.eq.s32.totalorder %v99, %v656
  %vm717 = vcmp.eq.s32.totalorder %v100, %v656
  %vm718 = vcmp.eq.s32.totalorder %v101, %v656
  %vm719 = vcmp.eq.s32.totalorder %v102, %v656
  %vm720 = vcmp.eq.s32.totalorder %v103, %v656
  %v721 = vsel %vm657, 1.0, 0.0
  %v722 = vsel %vm658, 1.0, 0.0
  %v723 = vsel %vm659, 1.0, 0.0
  %v724 = vsel %vm660, 1.0, 0.0
  %v725 = vsel %vm661, 1.0, 0.0
  %v726 = vsel %vm662, 1.0, 0.0
  %v727 = vsel %vm663, 1.0, 0.0
  %v728 = vsel %vm664, 1.0, 0.0
  %v729 = vsel %vm665, 1.0, 0.0
  %v730 = vsel %vm666, 1.0, 0.0
  %v731 = vsel %vm667, 1.0, 0.0
  %v732 = vsel %vm668, 1.0, 0.0
  %v733 = vsel %vm669, 1.0, 0.0
  %v734 = vsel %vm670, 1.0, 0.0
  %v735 = vsel %vm671, 1.0, 0.0
  %v736 = vsel %vm672, 1.0, 0.0
  %v737 = vsel %vm673, 1.0, 0.0
  %v738 = vsel %vm674, 1.0, 0.0
  %v739 = vsel %vm675, 1.0, 0.0
  %v740 = vsel %vm676, 1.0, 0.0
  %v741 = vsel %vm677, 1.0, 0.0
  %v742 = vsel %vm678, 1.0, 0.0
  %v743 = vsel %vm679, 1.0, 0.0
  %v744 = vsel %vm680, 1.0, 0.0
  %v745 = vsel %vm681, 1.0, 0.0
  %v746 = vsel %vm682, 1.0, 0.0
  %v747 = vsel %vm683, 1.0, 0.0
  %v748 = vsel %vm684, 1.0, 0.0
  %v749 = vsel %vm685, 1.0, 0.0
  %v750 = vsel %vm686, 1.0, 0.0
  %v751 = vsel %vm687, 1.0, 0.0
  %v752 = vsel %vm688, 1.0, 0.0
  %v753 = vsel %vm689, 1.0, 0.0
  %v754 = vsel %vm690, 1.0, 0.0
  %v755 = vsel %vm691, 1.0, 0.0
  %v756 = vsel %vm692, 1.0, 0.0
  %v757 = vsel %vm693, 1.0, 0.0
  %v758 = vsel %vm694, 1.0, 0.0
  %v759 = vsel %vm695, 1.0, 0.0
  %v760 = vsel %vm696, 1.0, 0.0
  %v761 = vsel %vm697, 1.0, 0.0
  %v762 = vsel %vm698, 1.0, 0.0
  %v763 = vsel %vm699, 1.0, 0.0
  %v764 = vsel %vm700, 1.0, 0.0
  %v765 = vsel %vm701, 1.0, 0.0
  %v766 = vsel %vm702, 1.0, 0.0
  %v767 = vsel %vm703, 1.0, 0.0
  %v768 = vsel %vm704, 1.0, 0.0
  %v769 = vsel %vm705, 1.0, 0.0
  %v770 = vsel %vm706, 1.0, 0.0
  %v771 = vsel %vm707, 1.0, 0.0
  %v772 = vsel %vm708, 1.0, 0.0
  %v773 = vsel %vm709, 1.0, 0.0
  %v774 = vsel %vm710, 1.0, 0.0
  %v775 = vsel %vm711, 1.0, 0.0
  %v776 = vsel %vm712, 1.0, 0.0
  %v777 = vsel %vm713, 1.0, 0.0
  %v778 = vsel %vm714, 1.0, 0.0
  %v779 = vsel %vm715, 1.0, 0.0
  %v780 = vsel %vm716, 1.0, 0.0
  %v781 = vsel %vm717, 1.0, 0.0
  %v782 = vsel %vm718, 1.0, 0.0
  %v783 = vsel %vm719, 1.0, 0.0
  %v784 = vsel %vm720, 1.0, 0.0
  %785 = vmatprep.subr.mxu0 0.0
  %786 = vmatpush1.msra.mxu0 %v721
  %787 = vmatprep.subr.mxu0 0.0
  %788 = vmatpush1.msra.mxu0 %v722
  %789 = vmatprep.subr.mxu0 0.0
  %790 = vmatpush1.msra.mxu0 %v723
  %791 = vmatprep.subr.mxu0 0.0
  %792 = vmatpush1.msra.mxu0 %v724
  %793 = vmatprep.subr.mxu0 0.0
  %794 = vmatpush1.msra.mxu0 %v725
  %795 = vmatprep.subr.mxu0 0.0
  %796 = vmatpush1.msra.mxu0 %v726
  %797 = vmatprep.subr.mxu0 0.0
  %798 = vmatpush1.msra.mxu0 %v727
  %799 = vmatprep.subr.mxu0 0.0
  %800 = vmatpush1.msra.mxu0 %v728
  %801 = vmatprep.subr.mxu0 0.0
  %802 = vmatpush1.msra.mxu0 %v729
  %803 = vmatprep.subr.mxu0 0.0
  %804 = vmatpush1.msra.mxu0 %v730
  %805 = vmatprep.subr.mxu0 0.0
  %806 = vmatpush1.msra.mxu0 %v731
  %807 = vmatprep.subr.mxu0 0.0
  %808 = vmatpush1.msra.mxu0 %v732
  %809 = vmatprep.subr.mxu0 0.0
  %810 = vmatpush1.msra.mxu0 %v733
  %811 = vmatprep.subr.mxu0 0.0
  %812 = vmatpush1.msra.mxu0 %v734
  %813 = vmatprep.subr.mxu0 0.0
  %814 = vmatpush1.msra.mxu0 %v735
  %815 = vmatprep.subr.mxu0 0.0
  %816 = vmatpush1.msra.mxu0 %v736
  %817 = vmatprep.subr.mxu0 0.0
  %818 = vmatpush1.msra.mxu0 %v737
  %819 = vmatprep.subr.mxu0 0.0
  %820 = vmatpush1.msra.mxu0 %v738
  %821 = vmatprep.subr.mxu0 0.0
  %822 = vmatpush1.msra.mxu0 %v739
  %823 = vmatprep.subr.mxu0 0.0
  %824 = vmatpush1.msra.mxu0 %v740
  %825 = vmatprep.subr.mxu0 0.0
  %826 = vmatpush1.msra.mxu0 %v741
  %827 = vmatprep.subr.mxu0 0.0
  %828 = vmatpush1.msra.mxu0 %v742
  %829 = vmatprep.subr.mxu0 0.0
  %830 = vmatpush1.msra.mxu0 %v743
  %831 = vmatprep.subr.mxu0 0.0
  %832 = vmatpush1.msra.mxu0 %v744
  %833 = vmatprep.subr.mxu0 0.0
  %834 = vmatpush1.msra.mxu0 %v745
  %835 = vmatprep.subr.mxu0 0.0
  %836 = vmatpush1.msra.mxu0 %v746
  %837 = vmatprep.subr.mxu0 0.0
  %838 = vmatpush1.msra.mxu0 %v747
  %839 = vmatprep.subr.mxu0 0.0
  %840 = vmatpush1.msra.mxu0 %v748
  %841 = vmatprep.subr.mxu0 0.0
  %842 = vmatpush1.msra.mxu0 %v749
  %843 = vmatprep.subr.mxu0 0.0
  %844 = vmatpush1.msra.mxu0 %v750
  %845 = vmatprep.subr.mxu0 0.0
  %846 = vmatpush1.msra.mxu0 %v751
  %847 = vmatprep.subr.mxu0 0.0
  %848 = vmatpush1.msra.mxu0 %v752
  %849 = vmatprep.mubr.f32.mxu0 %v36
  %850 = vmatmul.mubr.f32.gmra.mrb[0].mxu0 %v35
  %v851 = vpop.f32.mrb[0].mxu0
  %v852 = vadd.f32 0.0, %v851
  %v853 = vpop.f32.mrb[0].mxu0
  %854 = vdwg.mxu0
  %855 = vmatprep.subr.mxu0 0.0
  %856 = vmatpush1.msra.mxu0 %v753
  %857 = vmatprep.subr.mxu0 0.0
  %858 = vmatpush1.msra.mxu0 %v754
  %859 = vmatprep.subr.mxu0 0.0
  %860 = vmatpush1.msra.mxu0 %v755
  %861 = vmatprep.subr.mxu0 0.0
  %862 = vmatpush1.msra.mxu0 %v756
  %863 = vmatprep.subr.mxu0 0.0
  %864 = vmatpush1.msra.mxu0 %v757
  %865 = vmatprep.subr.mxu0 0.0
  %866 = vmatpush1.msra.mxu0 %v758
  %867 = vmatprep.subr.mxu0 0.0
  %868 = vmatpush1.msra.mxu0 %v759
  %869 = vmatprep.subr.mxu0 0.0
  %870 = vmatpush1.msra.mxu0 %v760
  %871 = vmatprep.subr.mxu0 0.0
  %872 = vmatpush1.msra.mxu0 %v761
  %873 = vmatprep.subr.mxu0 0.0
  %874 = vmatpush1.msra.mxu0 %v762
  %875 = vmatprep.subr.mxu0 0.0
  %876 = vmatpush1.msra.mxu0 %v763
  %877 = vmatprep.subr.mxu0 0.0
  %878 = vmatpush1.msra.mxu0 %v764
  %879 = vmatprep.subr.mxu0 0.0
  %880 = vmatpush1.msra.mxu0 %v765
  %881 = vmatprep.subr.mxu0 0.0
  %882 = vmatpush1.msra.mxu0 %v766
  %883 = vmatprep.subr.mxu0 0.0
  %884 = vmatpush1.msra.mxu0 %v767
  %885 = vmatprep.subr.mxu0 0.0
  %886 = vmatpush1.msra.mxu0 %v768
  %887 = vmatprep.subr.mxu0 0.0
  %888 = vmatpush1.msra.mxu0 %v769
  %889 = vmatprep.subr.mxu0 0.0
  %890 = vmatpush1.msra.mxu0 %v770
  %891 = vmatprep.subr.mxu0 0.0
  %892 = vmatpush1.msra.mxu0 %v771
  %893 = vmatprep.subr.mxu0 0.0
  %894 = vmatpush1.msra.mxu0 %v772
  %895 = vmatprep.subr.mxu0 0.0
  %896 = vmatpush1.msra.mxu0 %v773
  %897 = vmatprep.subr.mxu0 0.0
  %898 = vmatpush1.msra.mxu0 %v774
  %899 = vmatprep.subr.mxu0 0.0
  %900 = vmatpush1.msra.mxu0 %v775
  %901 = vmatprep.subr.mxu0 0.0
  %902 = vmatpush1.msra.mxu0 %v776
  %903 = vmatprep.subr.mxu0 0.0
  %904 = vmatpush1.msra.mxu0 %v777
  %905 = vmatprep.subr.mxu0 0.0
  %906 = vmatpush1.msra.mxu0 %v778
  %907 = vmatprep.subr.mxu0 0.0
  %908 = vmatpush1.msra.mxu0 %v779
  %909 = vmatprep.subr.mxu0 0.0
  %910 = vmatpush1.msra.mxu0 %v780
  %911 = vmatprep.subr.mxu0 0.0
  %912 = vmatpush1.msra.mxu0 %v781
  %913 = vmatprep.subr.mxu0 0.0
  %914 = vmatpush1.msra.mxu0 %v782
  %915 = vmatprep.subr.mxu0 0.0
  %916 = vmatpush1.msra.mxu0 %v783
  %917 = vmatprep.subr.mxu0 0.0
  %918 = vmatpush1.msra.mxu0 %v784
  %919 = vmatprep.mubr.f32.mxu0 %v38
  %920 = vmatmul.mubr.f32.gmra.mrb[0].mxu0 %v37
  %v921 = vpop.f32.mrb[0].mxu0
  %v922 = vadd.f32 %v852, %v921
  %v923 = vpop.f32.mrb[0].mxu0
  %924 = vdwg.mxu0
  %925 = vst [vmem:[#allocation2 + $0x10] sm:$0xff] %v922
  %v926 = vld [vmem:[%s7 + $0x3] sm:$0x1]
  %v927 = vlaneseq
  %v928 = vshrl.u32 %v927, 7
  %v929 = vsub.s32 0, %v928
  %v930 = vrot.slane %v926, %v929
  %vm931 = vcmp.eq.s32.totalorder %v40, %v930
  %vm932 = vcmp.eq.s32.totalorder %v41, %v930
  %vm933 = vcmp.eq.s32.totalorder %v42, %v930
  %vm934 = vcmp.eq.s32.totalorder %v43, %v930
  %vm935 = vcmp.eq.s32.totalorder %v44, %v930
  %vm936 = vcmp.eq.s32.totalorder %v45, %v930
  %vm937 = vcmp.eq.s32.totalorder %v46, %v930
  %vm938 = vcmp.eq.s32.totalorder %v47, %v930
  %vm939 = vcmp.eq.s32.totalorder %v48, %v930
  %vm940 = vcmp.eq.s32.totalorder %v49, %v930
  %vm941 = vcmp.eq.s32.totalorder %v50, %v930
  %vm942 = vcmp.eq.s32.totalorder %v51, %v930
  %vm943 = vcmp.eq.s32.totalorder %v52, %v930
  %vm944 = vcmp.eq.s32.totalorder %v53, %v930
  %vm945 = vcmp.eq.s32.totalorder %v54, %v930
  %vm946 = vcmp.eq.s32.totalorder %v55, %v930
  %vm947 = vcmp.eq.s32.totalorder %v56, %v930
  %vm948 = vcmp.eq.s32.totalorder %v57, %v930
  %vm949 = vcmp.eq.s32.totalorder %v58, %v930
  %vm950 = vcmp.eq.s32.totalorder %v59, %v930
  %vm951 = vcmp.eq.s32.totalorder %v60, %v930
  %vm952 = vcmp.eq.s32.totalorder %v61, %v930
  %vm953 = vcmp.eq.s32.totalorder %v62, %v930
  %vm954 = vcmp.eq.s32.totalorder %v63, %v930
  %vm955 = vcmp.eq.s32.totalorder %v64, %v930
  %vm956 = vcmp.eq.s32.totalorder %v65, %v930
  %vm957 = vcmp.eq.s32.totalorder %v66, %v930
  %vm958 = vcmp.eq.s32.totalorder %v67, %v930
  %vm959 = vcmp.eq.s32.totalorder %v68, %v930
  %vm960 = vcmp.eq.s32.totalorder %v69, %v930
  %vm961 = vcmp.eq.s32.totalorder %v70, %v930
  %vm962 = vcmp.eq.s32.totalorder %v71, %v930
  %vm963 = vcmp.eq.s32.totalorder %v72, %v930
  %vm964 = vcmp.eq.s32.totalorder %v73, %v930
  %vm965 = vcmp.eq.s32.totalorder %v74, %v930
  %vm966 = vcmp.eq.s32.totalorder %v75, %v930
  %vm967 = vcmp.eq.s32.totalorder %v76, %v930
  %vm968 = vcmp.eq.s32.totalorder %v77, %v930
  %vm969 = vcmp.eq.s32.totalorder %v78, %v930
  %vm970 = vcmp.eq.s32.totalorder %v79, %v930
  %vm971 = vcmp.eq.s32.totalorder %v80, %v930
  %vm972 = vcmp.eq.s32.totalorder %v81, %v930
  %vm973 = vcmp.eq.s32.totalorder %v82, %v930
  %vm974 = vcmp.eq.s32.totalorder %v83, %v930
  %vm975 = vcmp.eq.s32.totalorder %v84, %v930
  %vm976 = vcmp.eq.s32.totalorder %v85, %v930
  %vm977 = vcmp.eq.s32.totalorder %v86, %v930
  %vm978 = vcmp.eq.s32.totalorder %v87, %v930
  %vm979 = vcmp.eq.s32.totalorder %v88, %v930
  %vm980 = vcmp.eq.s32.totalorder %v89, %v930
  %vm981 = vcmp.eq.s32.totalorder %v90, %v930
  %vm982 = vcmp.eq.s32.totalorder %v91, %v930
  %vm983 = vcmp.eq.s32.totalorder %v92, %v930
  %vm984 = vcmp.eq.s32.totalorder %v93, %v930
  %vm985 = vcmp.eq.s32.totalorder %v94, %v930
  %vm986 = vcmp.eq.s32.totalorder %v95, %v930
  %vm987 = vcmp.eq.s32.totalorder %v96, %v930
  %vm988 = vcmp.eq.s32.totalorder %v97, %v930
  %vm989 = vcmp.eq.s32.totalorder %v98, %v930
  %vm990 = vcmp.eq.s32.totalorder %v99, %v930
  %vm991 = vcmp.eq.s32.totalorder %v100, %v930
  %vm992 = vcmp.eq.s32.totalorder %v101, %v930
  %vm993 = vcmp.eq.s32.totalorder %v102, %v930
  %vm994 = vcmp.eq.s32.totalorder %v103, %v930
  %v995 = vsel %vm931, 1.0, 0.0
  %v996 = vsel %vm932, 1.0, 0.0
  %v997 = vsel %vm933, 1.0, 0.0
  %v998 = vsel %vm934, 1.0, 0.0
  %v999 = vsel %vm935, 1.0, 0.0
  %v1000 = vsel %vm936, 1.0, 0.0
  %v1001 = vsel %vm937, 1.0, 0.0
  %v1002 = vsel %vm938, 1.0, 0.0
  %v1003 = vsel %vm939, 1.0, 0.0
  %v1004 = vsel %vm940, 1.0, 0.0
  %v1005 = vsel %vm941, 1.0, 0.0
  %v1006 = vsel %vm942, 1.0, 0.0
  %v1007 = vsel %vm943, 1.0, 0.0
  %v1008 = vsel %vm944, 1.0, 0.0
  %v1009 = vsel %vm945, 1.0, 0.0
  %v1010 = vsel %vm946, 1.0, 0.0
  %v1011 = vsel %vm947, 1.0, 0.0
  %v1012 = vsel %vm948, 1.0, 0.0
  %v1013 = vsel %vm949, 1.0, 0.0
  %v1014 = vsel %vm950, 1.0, 0.0
  %v1015 = vsel %vm951, 1.0, 0.0
  %v1016 = vsel %vm952, 1.0, 0.0
  %v1017 = vsel %vm953, 1.0, 0.0
  %v1018 = vsel %vm954, 1.0, 0.0
  %v1019 = vsel %vm955, 1.0, 0.0
  %v1020 = vsel %vm956, 1.0, 0.0
  %v1021 = vsel %vm957, 1.0, 0.0
  %v1022 = vsel %vm958, 1.0, 0.0
  %v1023 = vsel %vm959, 1.0, 0.0
  %v1024 = vsel %vm960, 1.0, 0.0
  %v1025 = vsel %vm961, 1.0, 0.0
  %v1026 = vsel %vm962, 1.0, 0.0
  %v1027 = vsel %vm963, 1.0, 0.0
  %v1028 = vsel %vm964, 1.0, 0.0
  %v1029 = vsel %vm965, 1.0, 0.0
  %v1030 = vsel %vm966, 1.0, 0.0
  %v1031 = vsel %vm967, 1.0, 0.0
  %v1032 = vsel %vm968, 1.0, 0.0
  %v1033 = vsel %vm969, 1.0, 0.0
  %v1034 = vsel %vm970, 1.0, 0.0
  %v1035 = vsel %vm971, 1.0, 0.0
  %v1036 = vsel %vm972, 1.0, 0.0
  %v1037 = vsel %vm973, 1.0, 0.0
  %v1038 = vsel %vm974, 1.0, 0.0
  %v1039 = vsel %vm975, 1.0, 0.0
  %v1040 = vsel %vm976, 1.0, 0.0
  %v1041 = vsel %vm977, 1.0, 0.0
  %v1042 = vsel %vm978, 1.0, 0.0
  %v1043 = vsel %vm979, 1.0, 0.0
  %v1044 = vsel %vm980, 1.0, 0.0
  %v1045 = vsel %vm981, 1.0, 0.0
  %v1046 = vsel %vm982, 1.0, 0.0
  %v1047 = vsel %vm983, 1.0, 0.0
  %v1048 = vsel %vm984, 1.0, 0.0
  %v1049 = vsel %vm985, 1.0, 0.0
  %v1050 = vsel %vm986, 1.0, 0.0
  %v1051 = vsel %vm987, 1.0, 0.0
  %v1052 = vsel %vm988, 1.0, 0.0
  %v1053 = vsel %vm989, 1.0, 0.0
  %v1054 = vsel %vm990, 1.0, 0.0
  %v1055 = vsel %vm991, 1.0, 0.0
  %v1056 = vsel %vm992, 1.0, 0.0
  %v1057 = vsel %vm993, 1.0, 0.0
  %v1058 = vsel %vm994, 1.0, 0.0
  %1059 = vmatprep.subr.mxu0 0.0
  %1060 = vmatpush1.msra.mxu0 %v995
  %1061 = vmatprep.subr.mxu0 0.0
  %1062 = vmatpush1.msra.mxu0 %v996
  %1063 = vmatprep.subr.mxu0 0.0
  %1064 = vmatpush1.msra.mxu0 %v997
  %1065 = vmatprep.subr.mxu0 0.0
  %1066 = vmatpush1.msra.mxu0 %v998
  %1067 = vmatprep.subr.mxu0 0.0
  %1068 = vmatpush1.msra.mxu0 %v999
  %1069 = vmatprep.subr.mxu0 0.0
  %1070 = vmatpush1.msra.mxu0 %v1000
  %1071 = vmatprep.subr.mxu0 0.0
  %1072 = vmatpush1.msra.mxu0 %v1001
  %1073 = vmatprep.subr.mxu0 0.0
  %1074 = vmatpush1.msra.mxu0 %v1002
  %1075 = vmatprep.subr.mxu0 0.0
  %1076 = vmatpush1.msra.mxu0 %v1003
  %1077 = vmatprep.subr.mxu0 0.0
  %1078 = vmatpush1.msra.mxu0 %v1004
  %1079 = vmatprep.subr.mxu0 0.0
  %1080 = vmatpush1.msra.mxu0 %v1005
  %1081 = vmatprep.subr.mxu0 0.0
  %1082 = vmatpush1.msra.mxu0 %v1006
  %1083 = vmatprep.subr.mxu0 0.0
  %1084 = vmatpush1.msra.mxu0 %v1007
  %1085 = vmatprep.subr.mxu0 0.0
  %1086 = vmatpush1.msra.mxu0 %v1008
  %1087 = vmatprep.subr.mxu0 0.0
  %1088 = vmatpush1.msra.mxu0 %v1009
  %1089 = vmatprep.subr.mxu0 0.0
  %1090 = vmatpush1.msra.mxu0 %v1010
  %1091 = vmatprep.subr.mxu0 0.0
  %1092 = vmatpush1.msra.mxu0 %v1011
  %1093 = vmatprep.subr.mxu0 0.0
  %1094 = vmatpush1.msra.mxu0 %v1012
  %1095 = vmatprep.subr.mxu0 0.0
  %1096 = vmatpush1.msra.mxu0 %v1013
  %1097 = vmatprep.subr.mxu0 0.0
  %1098 = vmatpush1.msra.mxu0 %v1014
  %1099 = vmatprep.subr.mxu0 0.0
  %1100 = vmatpush1.msra.mxu0 %v1015
  %1101 = vmatprep.subr.mxu0 0.0
  %1102 = vmatpush1.msra.mxu0 %v1016
  %1103 = vmatprep.subr.mxu0 0.0
  %1104 = vmatpush1.msra.mxu0 %v1017
  %1105 = vmatprep.subr.mxu0 0.0
  %1106 = vmatpush1.msra.mxu0 %v1018
  %1107 = vmatprep.subr.mxu0 0.0
  %1108 = vmatpush1.msra.mxu0 %v1019
  %1109 = vmatprep.subr.mxu0 0.0
  %1110 = vmatpush1.msra.mxu0 %v1020
  %1111 = vmatprep.subr.mxu0 0.0
  %1112 = vmatpush1.msra.mxu0 %v1021
  %1113 = vmatprep.subr.mxu0 0.0
  %1114 = vmatpush1.msra.mxu0 %v1022
  %1115 = vmatprep.subr.mxu0 0.0
  %1116 = vmatpush1.msra.mxu0 %v1023
  %1117 = vmatprep.subr.mxu0 0.0
  %1118 = vmatpush1.msra.mxu0 %v1024
  %1119 = vmatprep.subr.mxu0 0.0
  %1120 = vmatpush1.msra.mxu0 %v1025
  %1121 = vmatprep.subr.mxu0 0.0
  %1122 = vmatpush1.msra.mxu0 %v1026
  %1123 = vmatprep.mubr.f32.mxu0 %v36
  %1124 = vmatmul.mubr.f32.gmra.mrb[0].mxu0 %v35
  %v1125 = vpop.f32.mrb[0].mxu0
  %v1126 = vadd.f32 0.0, %v1125
  %v1127 = vpop.f32.mrb[0].mxu0
  %1128 = vdwg.mxu0
  %1129 = vmatprep.subr.mxu0 0.0
  %1130 = vmatpush1.msra.mxu0 %v1027
  %1131 = vmatprep.subr.mxu0 0.0
  %1132 = vmatpush1.msra.mxu0 %v1028
  %1133 = vmatprep.subr.mxu0 0.0
  %1134 = vmatpush1.msra.mxu0 %v1029
  %1135 = vmatprep.subr.mxu0 0.0
  %1136 = vmatpush1.msra.mxu0 %v1030
  %1137 = vmatprep.subr.mxu0 0.0
  %1138 = vmatpush1.msra.mxu0 %v1031
  %1139 = vmatprep.subr.mxu0 0.0
  %1140 = vmatpush1.msra.mxu0 %v1032
  %1141 = vmatprep.subr.mxu0 0.0
  %1142 = vmatpush1.msra.mxu0 %v1033
  %1143 = vmatprep.subr.mxu0 0.0
  %1144 = vmatpush1.msra.mxu0 %v1034
  %1145 = vmatprep.subr.mxu0 0.0
  %1146 = vmatpush1.msra.mxu0 %v1035
  %1147 = vmatprep.subr.mxu0 0.0
  %1148 = vmatpush1.msra.mxu0 %v1036
  %1149 = vmatprep.subr.mxu0 0.0
  %1150 = vmatpush1.msra.mxu0 %v1037
  %1151 = vmatprep.subr.mxu0 0.0
  %1152 = vmatpush1.msra.mxu0 %v1038
  %1153 = vmatprep.subr.mxu0 0.0
  %1154 = vmatpush1.msra.mxu0 %v1039
  %1155 = vmatprep.subr.mxu0 0.0
  %1156 = vmatpush1.msra.mxu0 %v1040
  %1157 = vmatprep.subr.mxu0 0.0
  %1158 = vmatpush1.msra.mxu0 %v1041
  %1159 = vmatprep.subr.mxu0 0.0
  %1160 = vmatpush1.msra.mxu0 %v1042
  %1161 = vmatprep.subr.mxu0 0.0
  %1162 = vmatpush1.msra.mxu0 %v1043
  %1163 = vmatprep.subr.mxu0 0.0
  %1164 = vmatpush1.msra.mxu0 %v1044
  %1165 = vmatprep.subr.mxu0 0.0
  %1166 = vmatpush1.msra.mxu0 %v1045
  %1167 = vmatprep.subr.mxu0 0.0
  %1168 = vmatpush1.msra.mxu0 %v1046
  %1169 = vmatprep.subr.mxu0 0.0
  %1170 = vmatpush1.msra.mxu0 %v1047
  %1171 = vmatprep.subr.mxu0 0.0
  %1172 = vmatpush1.msra.mxu0 %v1048
  %1173 = vmatprep.subr.mxu0 0.0
  %1174 = vmatpush1.msra.mxu0 %v1049
  %1175 = vmatprep.subr.mxu0 0.0
  %1176 = vmatpush1.msra.mxu0 %v1050
  %1177 = vmatprep.subr.mxu0 0.0
  %1178 = vmatpush1.msra.mxu0 %v1051
  %1179 = vmatprep.subr.mxu0 0.0
  %1180 = vmatpush1.msra.mxu0 %v1052
  %1181 = vmatprep.subr.mxu0 0.0
  %1182 = vmatpush1.msra.mxu0 %v1053
  %1183 = vmatprep.subr.mxu0 0.0
  %1184 = vmatpush1.msra.mxu0 %v1054
  %1185 = vmatprep.subr.mxu0 0.0
  %1186 = vmatpush1.msra.mxu0 %v1055
  %1187 = vmatprep.subr.mxu0 0.0
  %1188 = vmatpush1.msra.mxu0 %v1056
  %1189 = vmatprep.subr.mxu0 0.0
  %1190 = vmatpush1.msra.mxu0 %v1057
  %1191 = vmatprep.subr.mxu0 0.0
  %1192 = vmatpush1.msra.mxu0 %v1058
  %1193 = vmatprep.mubr.f32.mxu0 %v38
  %1194 = vmatmul.mubr.f32.gmra.mrb[0].mxu0 %v37
  %v1195 = vpop.f32.mrb[0].mxu0
  %v1196 = vadd.f32 %v1126, %v1195
  %v1197 = vpop.f32.mrb[0].mxu0
  %1198 = vdwg.mxu0
  %1199 = vst [vmem:[#allocation2 + $0x18] sm:$0xff] %v1196
  %v1200 = vld [vmem:[%s7 + $0x4] sm:$0x1]
  %v1201 = vlaneseq
  %v1202 = vshrl.u32 %v1201, 7
  %v1203 = vsub.s32 0, %v1202
  %v1204 = vrot.slane %v1200, %v1203
  %vm1205 = vcmp.eq.s32.totalorder %v40, %v1204
  %vm1206 = vcmp.eq.s32.totalorder %v41, %v1204
  %vm1207 = vcmp.eq.s32.totalorder %v42, %v1204
  %vm1208 = vcmp.eq.s32.totalorder %v43, %v1204
  %vm1209 = vcmp.eq.s32.totalorder %v44, %v1204
  %vm1210 = vcmp.eq.s32.totalorder %v45, %v1204
  %vm1211 = vcmp.eq.s32.totalorder %v46, %v1204
  %vm1212 = vcmp.eq.s32.totalorder %v47, %v1204
  %vm1213 = vcmp.eq.s32.totalorder %v48, %v1204
  %vm1214 = vcmp.eq.s32.totalorder %v49, %v1204
  %vm1215 = vcmp.eq.s32.totalorder %v50, %v1204
  %vm1216 = vcmp.eq.s32.totalorder %v51, %v1204
  %vm1217 = vcmp.eq.s32.totalorder %v52, %v1204
  %vm1218 = vcmp.eq.s32.totalorder %v53, %v1204
  %vm1219 = vcmp.eq.s32.totalorder %v54, %v1204
  %vm1220 = vcmp.eq.s32.totalorder %v55, %v1204
  %vm1221 = vcmp.eq.s32.totalorder %v56, %v1204
  %vm1222 = vcmp.eq.s32.totalorder %v57, %v1204
  %vm1223 = vcmp.eq.s32.totalorder %v58, %v1204
  %vm1224 = vcmp.eq.s32.totalorder %v59, %v1204
  %vm1225 = vcmp.eq.s32.totalorder %v60, %v1204
  %vm1226 = vcmp.eq.s32.totalorder %v61, %v1204
  %vm1227 = vcmp.eq.s32.totalorder %v62, %v1204
  %vm1228 = vcmp.eq.s32.totalorder %v63, %v1204
  %vm1229 = vcmp.eq.s32.totalorder %v64, %v1204
  %vm1230 = vcmp.eq.s32.totalorder %v65, %v1204
  %vm1231 = vcmp.eq.s32.totalorder %v66, %v1204
  %vm1232 = vcmp.eq.s32.totalorder %v67, %v1204
  %vm1233 = vcmp.eq.s32.totalorder %v68, %v1204
  %vm1234 = vcmp.eq.s32.totalorder %v69, %v1204
  %vm1235 = vcmp.eq.s32.totalorder %v70, %v1204
  %vm1236 = vcmp.eq.s32.totalorder %v71, %v1204
  %vm1237 = vcmp.eq.s32.totalorder %v72, %v1204
  %vm1238 = vcmp.eq.s32.totalorder %v73, %v1204
  %vm1239 = vcmp.eq.s32.totalorder %v74, %v1204
  %vm1240 = vcmp.eq.s32.totalorder %v75, %v1204
  %vm1241 = vcmp.eq.s32.totalorder %v76, %v1204
  %vm1242 = vcmp.eq.s32.totalorder %v77, %v1204
  %vm1243 = vcmp.eq.s32.totalorder %v78, %v1204
  %vm1244 = vcmp.eq.s32.totalorder %v79, %v1204
  %vm1245 = vcmp.eq.s32.totalorder %v80, %v1204
  %vm1246 = vcmp.eq.s32.totalorder %v81, %v1204
  %vm1247 = vcmp.eq.s32.totalorder %v82, %v1204
  %vm1248 = vcmp.eq.s32.totalorder %v83, %v1204
  %vm1249 = vcmp.eq.s32.totalorder %v84, %v1204
  %vm1250 = vcmp.eq.s32.totalorder %v85, %v1204
  %vm1251 = vcmp.eq.s32.totalorder %v86, %v1204
  %vm1252 = vcmp.eq.s32.totalorder %v87, %v1204
  %vm1253 = vcmp.eq.s32.totalorder %v88, %v1204
  %vm1254 = vcmp.eq.s32.totalorder %v89, %v1204
  %vm1255 = vcmp.eq.s32.totalorder %v90, %v1204
  %vm1256 = vcmp.eq.s32.totalorder %v91, %v1204
  %vm1257 = vcmp.eq.s32.totalorder %v92, %v1204
  %vm1258 = vcmp.eq.s32.totalorder %v93, %v1204
  %vm1259 = vcmp.eq.s32.totalorder %v94, %v1204
  %vm1260 = vcmp.eq.s32.totalorder %v95, %v1204
  %vm1261 = vcmp.eq.s32.totalorder %v96, %v1204
  %vm1262 = vcmp.eq.s32.totalorder %v97, %v1204
  %vm1263 = vcmp.eq.s32.totalorder %v98, %v1204
  %vm1264 = vcmp.eq.s32.totalorder %v99, %v1204
  %vm1265 = vcmp.eq.s32.totalorder %v100, %v1204
  %vm1266 = vcmp.eq.s32.totalorder %v101, %v1204
  %vm1267 = vcmp.eq.s32.totalorder %v102, %v1204
  %vm1268 = vcmp.eq.s32.totalorder %v103, %v1204
  %v1269 = vsel %vm1205, 1.0, 0.0
  %v1270 = vsel %vm1206, 1.0, 0.0
  %v1271 = vsel %vm1207, 1.0, 0.0
  %v1272 = vsel %vm1208, 1.0, 0.0
  %v1273 = vsel %vm1209, 1.0, 0.0
  %v1274 = vsel %vm1210, 1.0, 0.0
  %v1275 = vsel %vm1211, 1.0, 0.0
  %v1276 = vsel %vm1212, 1.0, 0.0
  %v1277 = vsel %vm1213, 1.0, 0.0
  %v1278 = vsel %vm1214, 1.0, 0.0
  %v1279 = vsel %vm1215, 1.0, 0.0
  %v1280 = vsel %vm1216, 1.0, 0.0
  %v1281 = vsel %vm1217, 1.0, 0.0
  %v1282 = vsel %vm1218, 1.0, 0.0
  %v1283 = vsel %vm1219, 1.0, 0.0
  %v1284 = vsel %vm1220, 1.0, 0.0
  %v1285 = vsel %vm1221, 1.0, 0.0
  %v1286 = vsel %vm1222, 1.0, 0.0
  %v1287 = vsel %vm1223, 1.0, 0.0
  %v1288 = vsel %vm1224, 1.0, 0.0
  %v1289 = vsel %vm1225, 1.0, 0.0
  %v1290 = vsel %vm1226, 1.0, 0.0
  %v1291 = vsel %vm1227, 1.0, 0.0
  %v1292 = vsel %vm1228, 1.0, 0.0
  %v1293 = vsel %vm1229, 1.0, 0.0
  %v1294 = vsel %vm1230, 1.0, 0.0
  %v1295 = vsel %vm1231, 1.0, 0.0
  %v1296 = vsel %vm1232, 1.0, 0.0
  %v1297 = vsel %vm1233, 1.0, 0.0
  %v1298 = vsel %vm1234, 1.0, 0.0
  %v1299 = vsel %vm1235, 1.0, 0.0
  %v1300 = vsel %vm1236, 1.0, 0.0
  %v1301 = vsel %vm1237, 1.0, 0.0
  %v1302 = vsel %vm1238, 1.0, 0.0
  %v1303 = vsel %vm1239, 1.0, 0.0
  %v1304 = vsel %vm1240, 1.0, 0.0
  %v1305 = vsel %vm1241, 1.0, 0.0
  %v1306 = vsel %vm1242, 1.0, 0.0
  %v1307 = vsel %vm1243, 1.0, 0.0
  %v1308 = vsel %vm1244, 1.0, 0.0
  %v1309 = vsel %vm1245, 1.0, 0.0
  %v1310 = vsel %vm1246, 1.0, 0.0
  %v1311 = vsel %vm1247, 1.0, 0.0
  %v1312 = vsel %vm1248, 1.0, 0.0
  %v1313 = vsel %vm1249, 1.0, 0.0
  %v1314 = vsel %vm1250, 1.0, 0.0
  %v1315 = vsel %vm1251, 1.0, 0.0
  %v1316 = vsel %vm1252, 1.0, 0.0
  %v1317 = vsel %vm1253, 1.0, 0.0
  %v1318 = vsel %vm1254, 1.0, 0.0
  %v1319 = vsel %vm1255, 1.0, 0.0
  %v1320 = vsel %vm1256, 1.0, 0.0
  %v1321 = vsel %vm1257, 1.0, 0.0
  %v1322 = vsel %vm1258, 1.0, 0.0
  %v1323 = vsel %vm1259, 1.0, 0.0
  %v1324 = vsel %vm1260, 1.0, 0.0
  %v1325 = vsel %vm1261, 1.0, 0.0
  %v1326 = vsel %vm1262, 1.0, 0.0
  %v1327 = vsel %vm1263, 1.0, 0.0
  %v1328 = vsel %vm1264, 1.0, 0.0
  %v1329 = vsel %vm1265, 1.0, 0.0
  %v1330 = vsel %vm1266, 1.0, 0.0
  %v1331 = vsel %vm1267, 1.0, 0.0
  %v1332 = vsel %vm1268, 1.0, 0.0
  %1333 = vmatprep.subr.mxu0 0.0
  %1334 = vmatpush1.msra.mxu0 %v1269
  %1335 = vmatprep.subr.mxu0 0.0
  %1336 = vmatpush1.msra.mxu0 %v1270
  %1337 = vmatprep.subr.mxu0 0.0
  %1338 = vmatpush1.msra.mxu0 %v1271
  %1339 = vmatprep.subr.mxu0 0.0
  %1340 = vmatpush1.msra.mxu0 %v1272
  %1341 = vmatprep.subr.mxu0 0.0
  %1342 = vmatpush1.msra.mxu0 %v1273
  %1343 = vmatprep.subr.mxu0 0.0
  %1344 = vmatpush1.msra.mxu0 %v1274
  %1345 = vmatprep.subr.mxu0 0.0
  %1346 = vmatpush1.msra.mxu0 %v1275
  %1347 = vmatprep.subr.mxu0 0.0
  %1348 = vmatpush1.msra.mxu0 %v1276
  %1349 = vmatprep.subr.mxu0 0.0
  %1350 = vmatpush1.msra.mxu0 %v1277
  %1351 = vmatprep.subr.mxu0 0.0
  %1352 = vmatpush1.msra.mxu0 %v1278
  %1353 = vmatprep.subr.mxu0 0.0
  %1354 = vmatpush1.msra.mxu0 %v1279
  %1355 = vmatprep.subr.mxu0 0.0
  %1356 = vmatpush1.msra.mxu0 %v1280
  %1357 = vmatprep.subr.mxu0 0.0
  %1358 = vmatpush1.msra.mxu0 %v1281
  %1359 = vmatprep.subr.mxu0 0.0
  %1360 = vmatpush1.msra.mxu0 %v1282
  %1361 = vmatprep.subr.mxu0 0.0
  %1362 = vmatpush1.msra.mxu0 %v1283
  %1363 = vmatprep.subr.mxu0 0.0
  %1364 = vmatpush1.msra.mxu0 %v1284
  %1365 = vmatprep.subr.mxu0 0.0
  %1366 = vmatpush1.msra.mxu0 %v1285
  %1367 = vmatprep.subr.mxu0 0.0
  %1368 = vmatpush1.msra.mxu0 %v1286
  %1369 = vmatprep.subr.mxu0 0.0
  %1370 = vmatpush1.msra.mxu0 %v1287
  %1371 = vmatprep.subr.mxu0 0.0
  %1372 = vmatpush1.msra.mxu0 %v1288
  %1373 = vmatprep.subr.mxu0 0.0
  %1374 = vmatpush1.msra.mxu0 %v1289
  %1375 = vmatprep.subr.mxu0 0.0
  %1376 = vmatpush1.msra.mxu0 %v1290
  %1377 = vmatprep.subr.mxu0 0.0
  %1378 = vmatpush1.msra.mxu0 %v1291
  %1379 = vmatprep.subr.mxu0 0.0
  %1380 = vmatpush1.msra.mxu0 %v1292
  %1381 = vmatprep.subr.mxu0 0.0
  %1382 = vmatpush1.msra.mxu0 %v1293
  %1383 = vmatprep.subr.mxu0 0.0
  %1384 = vmatpush1.msra.mxu0 %v1294
  %1385 = vmatprep.subr.mxu0 0.0
  %1386 = vmatpush1.msra.mxu0 %v1295
  %1387 = vmatprep.subr.mxu0 0.0
  %1388 = vmatpush1.msra.mxu0 %v1296
  %1389 = vmatprep.subr.mxu0 0.0
  %1390 = vmatpush1.msra.mxu0 %v1297
  %1391 = vmatprep.subr.mxu0 0.0
  %1392 = vmatpush1.msra.mxu0 %v1298
  %1393 = vmatprep.subr.mxu0 0.0
  %1394 = vmatpush1.msra.mxu0 %v1299
  %1395 = vmatprep.subr.mxu0 0.0
  %1396 = vmatpush1.msra.mxu0 %v1300
  %1397 = vmatprep.mubr.f32.mxu0 %v36
  %1398 = vmatmul.mubr.f32.gmra.mrb[0].mxu0 %v35
  %v1399 = vpop.f32.mrb[0].mxu0
  %v1400 = vadd.f32 0.0, %v1399
  %v1401 = vpop.f32.mrb[0].mxu0
  %1402 = vdwg.mxu0
  %1403 = vmatprep.subr.mxu0 0.0
  %1404 = vmatpush1.msra.mxu0 %v1301
  %1405 = vmatprep.subr.mxu0 0.0
  %1406 = vmatpush1.msra.mxu0 %v1302
  %1407 = vmatprep.subr.mxu0 0.0
  %1408 = vmatpush1.msra.mxu0 %v1303
  %1409 = vmatprep.subr.mxu0 0.0
  %1410 = vmatpush1.msra.mxu0 %v1304
  %1411 = vmatprep.subr.mxu0 0.0
  %1412 = vmatpush1.msra.mxu0 %v1305
  %1413 = vmatprep.subr.mxu0 0.0
  %1414 = vmatpush1.msra.mxu0 %v1306
  %1415 = vmatprep.subr.mxu0 0.0
  %1416 = vmatpush1.msra.mxu0 %v1307
  %1417 = vmatprep.subr.mxu0 0.0
  %1418 = vmatpush1.msra.mxu0 %v1308
  %1419 = vmatprep.subr.mxu0 0.0
  %1420 = vmatpush1.msra.mxu0 %v1309
  %1421 = vmatprep.subr.mxu0 0.0
  %1422 = vmatpush1.msra.mxu0 %v1310
  %1423 = vmatprep.subr.mxu0 0.0
  %1424 = vmatpush1.msra.mxu0 %v1311
  %1425 = vmatprep.subr.mxu0 0.0
  %1426 = vmatpush1.msra.mxu0 %v1312
  %1427 = vmatprep.subr.mxu0 0.0
  %1428 = vmatpush1.msra.mxu0 %v1313
  %1429 = vmatprep.subr.mxu0 0.0
  %1430 = vmatpush1.msra.mxu0 %v1314
  %1431 = vmatprep.subr.mxu0 0.0
  %1432 = vmatpush1.msra.mxu0 %v1315
  %1433 = vmatprep.subr.mxu0 0.0
  %1434 = vmatpush1.msra.mxu0 %v1316
  %1435 = vmatprep.subr.mxu0 0.0
  %1436 = vmatpush1.msra.mxu0 %v1317
  %1437 = vmatprep.subr.mxu0 0.0
  %1438 = vmatpush1.msra.mxu0 %v1318
  %1439 = vmatprep.subr.mxu0 0.0
  %1440 = vmatpush1.msra.mxu0 %v1319
  %1441 = vmatprep.subr.mxu0 0.0
  %1442 = vmatpush1.msra.mxu0 %v1320
  %1443 = vmatprep.subr.mxu0 0.0
  %1444 = vmatpush1.msra.mxu0 %v1321
  %1445 = vmatprep.subr.mxu0 0.0
  %1446 = vmatpush1.msra.mxu0 %v1322
  %1447 = vmatprep.subr.mxu0 0.0
  %1448 = vmatpush1.msra.mxu0 %v1323
  %1449 = vmatprep.subr.mxu0 0.0
  %1450 = vmatpush1.msra.mxu0 %v1324
  %1451 = vmatprep.subr.mxu0 0.0
  %1452 = vmatpush1.msra.mxu0 %v1325
  %1453 = vmatprep.subr.mxu0 0.0
  %1454 = vmatpush1.msra.mxu0 %v1326
  %1455 = vmatprep.subr.mxu0 0.0
  %1456 = vmatpush1.msra.mxu0 %v1327
  %1457 = vmatprep.subr.mxu0 0.0
  %1458 = vmatpush1.msra.mxu0 %v1328
  %1459 = vmatprep.subr.mxu0 0.0
  %1460 = vmatpush1.msra.mxu0 %v1329
  %1461 = vmatprep.subr.mxu0 0.0
  %1462 = vmatpush1.msra.mxu0 %v1330
  %1463 = vmatprep.subr.mxu0 0.0
  %1464 = vmatpush1.msra.mxu0 %v1331
  %1465 = vmatprep.subr.mxu0 0.0
  %1466 = vmatpush1.msra.mxu0 %v1332
  %1467 = vmatprep.mubr.f32.mxu0 %v38
  %1468 = vmatmul.mubr.f32.gmra.mrb[0].mxu0 %v37
  %v1469 = vpop.f32.mrb[0].mxu0
  %v1470 = vadd.f32 %v1400, %v1469
  %v1471 = vpop.f32.mrb[0].mxu0
  %1472 = vdwg.mxu0
  %1473 = vst [vmem:[#allocation2 + $0x20] sm:$0xff] %v1470
  %v1474 = vld [vmem:[%s7 + $0x5] sm:$0x1]
  %v1475 = vlaneseq
  %v1476 = vshrl.u32 %v1475, 7
  %v1477 = vsub.s32 0, %v1476
  %v1478 = vrot.slane %v1474, %v1477
  %vm1479 = vcmp.eq.s32.totalorder %v40, %v1478
  %vm1480 = vcmp.eq.s32.totalorder %v41, %v1478
  %vm1481 = vcmp.eq.s32.totalorder %v42, %v1478
  %vm1482 = vcmp.eq.s32.totalorder %v43, %v1478
  %vm1483 = vcmp.eq.s32.totalorder %v44, %v1478
  %vm1484 = vcmp.eq.s32.totalorder %v45, %v1478
  %vm1485 = vcmp.eq.s32.totalorder %v46, %v1478
  %vm1486 = vcmp.eq.s32.totalorder %v47, %v1478
  %vm1487 = vcmp.eq.s32.totalorder %v48, %v1478
  %vm1488 = vcmp.eq.s32.totalorder %v49, %v1478
  %vm1489 = vcmp.eq.s32.totalorder %v50, %v1478
  %vm1490 = vcmp.eq.s32.totalorder %v51, %v1478
  %vm1491 = vcmp.eq.s32.totalorder %v52, %v1478
  %vm1492 = vcmp.eq.s32.totalorder %v53, %v1478
  %vm1493 = vcmp.eq.s32.totalorder %v54, %v1478
  %vm1494 = vcmp.eq.s32.totalorder %v55, %v1478
  %vm1495 = vcmp.eq.s32.totalorder %v56, %v1478
  %vm1496 = vcmp.eq.s32.totalorder %v57, %v1478
  %vm1497 = vcmp.eq.s32.totalorder %v58, %v1478
  %vm1498 = vcmp.eq.s32.totalorder %v59, %v1478
  %vm1499 = vcmp.eq.s32.totalorder %v60, %v1478
  %vm1500 = vcmp.eq.s32.totalorder %v61, %v1478
  %vm1501 = vcmp.eq.s32.totalorder %v62, %v1478
  %vm1502 = vcmp.eq.s32.totalorder %v63, %v1478
  %vm1503 = vcmp.eq.s32.totalorder %v64, %v1478
  %vm1504 = vcmp.eq.s32.totalorder %v65, %v1478
  %vm1505 = vcmp.eq.s32.totalorder %v66, %v1478
  %vm1506 = vcmp.eq.s32.totalorder %v67, %v1478
  %vm1507 = vcmp.eq.s32.totalorder %v68, %v1478
  %vm1508 = vcmp.eq.s32.totalorder %v69, %v1478
  %vm1509 = vcmp.eq.s32.totalorder %v70, %v1478
  %vm1510 = vcmp.eq.s32.totalorder %v71, %v1478
  %vm1511 = vcmp.eq.s32.totalorder %v72, %v1478
  %vm1512 = vcmp.eq.s32.totalorder %v73, %v1478
  %vm1513 = vcmp.eq.s32.totalorder %v74, %v1478
  %vm1514 = vcmp.eq.s32.totalorder %v75, %v1478
  %vm1515 = vcmp.eq.s32.totalorder %v76, %v1478
  %vm1516 = vcmp.eq.s32.totalorder %v77, %v1478
  %vm1517 = vcmp.eq.s32.totalorder %v78, %v1478
  %vm1518 = vcmp.eq.s32.totalorder %v79, %v1478
  %vm1519 = vcmp.eq.s32.totalorder %v80, %v1478
  %vm1520 = vcmp.eq.s32.totalorder %v81, %v1478
  %vm1521 = vcmp.eq.s32.totalorder %v82, %v1478
  %vm1522 = vcmp.eq.s32.totalorder %v83, %v1478
  %vm1523 = vcmp.eq.s32.totalorder %v84, %v1478
  %vm1524 = vcmp.eq.s32.totalorder %v85, %v1478
  %vm1525 = vcmp.eq.s32.totalorder %v86, %v1478
  %vm1526 = vcmp.eq.s32.totalorder %v87, %v1478
  %vm1527 = vcmp.eq.s32.totalorder %v88, %v1478
  %vm1528 = vcmp.eq.s32.totalorder %v89, %v1478
  %vm1529 = vcmp.eq.s32.totalorder %v90, %v1478
  %vm1530 = vcmp.eq.s32.totalorder %v91, %v1478
  %vm1531 = vcmp.eq.s32.totalorder %v92, %v1478
  %vm1532 = vcmp.eq.s32.totalorder %v93, %v1478
  %vm1533 = vcmp.eq.s32.totalorder %v94, %v1478
  %vm1534 = vcmp.eq.s32.totalorder %v95, %v1478
  %vm1535 = vcmp.eq.s32.totalorder %v96, %v1478
  %vm1536 = vcmp.eq.s32.totalorder %v97, %v1478
  %vm1537 = vcmp.eq.s32.totalorder %v98, %v1478
  %vm1538 = vcmp.eq.s32.totalorder %v99, %v1478
  %vm1539 = vcmp.eq.s32.totalorder %v100, %v1478
  %vm1540 = vcmp.eq.s32.totalorder %v101, %v1478
  %vm1541 = vcmp.eq.s32.totalorder %v102, %v1478
  %vm1542 = vcmp.eq.s32.totalorder %v103, %v1478
  %v1543 = vsel %vm1479, 1.0, 0.0
  %v1544 = vsel %vm1480, 1.0, 0.0
  %v1545 = vsel %vm1481, 1.0, 0.0
  %v1546 = vsel %vm1482, 1.0, 0.0
  %v1547 = vsel %vm1483, 1.0, 0.0
  %v1548 = vsel %vm1484, 1.0, 0.0
  %v1549 = vsel %vm1485, 1.0, 0.0
  %v1550 = vsel %vm1486, 1.0, 0.0
  %v1551 = vsel %vm1487, 1.0, 0.0
  %v1552 = vsel %vm1488, 1.0, 0.0
  %v1553 = vsel %vm1489, 1.0, 0.0
  %v1554 = vsel %vm1490, 1.0, 0.0
  %v1555 = vsel %vm1491, 1.0, 0.0
  %v1556 = vsel %vm1492, 1.0, 0.0
  %v1557 = vsel %vm1493, 1.0, 0.0
  %v1558 = vsel %vm1494, 1.0, 0.0
  %v1559 = vsel %vm1495, 1.0, 0.0
  %v1560 = vsel %vm1496, 1.0, 0.0
  %v1561 = vsel %vm1497, 1.0, 0.0
  %v1562 = vsel %vm1498, 1.0, 0.0
  %v1563 = vsel %vm1499, 1.0, 0.0
  %v1564 = vsel %vm1500, 1.0, 0.0
  %v1565 = vsel %vm1501, 1.0, 0.0
  %v1566 = vsel %vm1502, 1.0, 0.0
  %v1567 = vsel %vm1503, 1.0, 0.0
  %v1568 = vsel %vm1504, 1.0, 0.0
  %v1569 = vsel %vm1505, 1.0, 0.0
  %v1570 = vsel %vm1506, 1.0, 0.0
  %v1571 = vsel %vm1507, 1.0, 0.0
  %v1572 = vsel %vm1508, 1.0, 0.0
  %v1573 = vsel %vm1509, 1.0, 0.0
  %v1574 = vsel %vm1510, 1.0, 0.0
  %v1575 = vsel %vm1511, 1.0, 0.0
  %v1576 = vsel %vm1512, 1.0, 0.0
  %v1577 = vsel %vm1513, 1.0, 0.0
  %v1578 = vsel %vm1514, 1.0, 0.0
  %v1579 = vsel %vm1515, 1.0, 0.0
  %v1580 = vsel %vm1516, 1.0, 0.0
  %v1581 = vsel %vm1517, 1.0, 0.0
  %v1582 = vsel %vm1518, 1.0, 0.0
  %v1583 = vsel %vm1519, 1.0, 0.0
  %v1584 = vsel %vm1520, 1.0, 0.0
  %v1585 = vsel %vm1521, 1.0, 0.0
  %v1586 = vsel %vm1522, 1.0, 0.0
  %v1587 = vsel %vm1523, 1.0, 0.0
  %v1588 = vsel %vm1524, 1.0, 0.0
  %v1589 = vsel %vm1525, 1.0, 0.0
  %v1590 = vsel %vm1526, 1.0, 0.0
  %v1591 = vsel %vm1527, 1.0, 0.0
  %v1592 = vsel %vm1528, 1.0, 0.0
  %v1593 = vsel %vm1529, 1.0, 0.0
  %v1594 = vsel %vm1530, 1.0, 0.0
  %v1595 = vsel %vm1531, 1.0, 0.0
  %v1596 = vsel %vm1532, 1.0, 0.0
  %v1597 = vsel %vm1533, 1.0, 0.0
  %v1598 = vsel %vm1534, 1.0, 0.0
  %v1599 = vsel %vm1535, 1.0, 0.0
  %v1600 = vsel %vm1536, 1.0, 0.0
  %v1601 = vsel %vm1537, 1.0, 0.0
  %v1602 = vsel %vm1538, 1.0, 0.0
  %v1603 = vsel %vm1539, 1.0, 0.0
  %v1604 = vsel %vm1540, 1.0, 0.0
  %v1605 = vsel %vm1541, 1.0, 0.0
  %v1606 = vsel %vm1542, 1.0, 0.0
  %1607 = vmatprep.subr.mxu0 0.0
  %1608 = vmatpush1.msra.mxu0 %v1543
  %1609 = vmatprep.subr.mxu0 0.0
  %1610 = vmatpush1.msra.mxu0 %v1544
  %1611 = vmatprep.subr.mxu0 0.0
  %1612 = vmatpush1.msra.mxu0 %v1545
  %1613 = vmatprep.subr.mxu0 0.0
  %1614 = vmatpush1.msra.mxu0 %v1546
  %1615 = vmatprep.subr.mxu0 0.0
  %1616 = vmatpush1.msra.mxu0 %v1547
  %1617 = vmatprep.subr.mxu0 0.0
  %1618 = vmatpush1.msra.mxu0 %v1548
  %1619 = vmatprep.subr.mxu0 0.0
  %1620 = vmatpush1.msra.mxu0 %v1549
  %1621 = vmatprep.subr.mxu0 0.0
  %1622 = vmatpush1.msra.mxu0 %v1550
  %1623 = vmatprep.subr.mxu0 0.0
  %1624 = vmatpush1.msra.mxu0 %v1551
  %1625 = vmatprep.subr.mxu0 0.0
  %1626 = vmatpush1.msra.mxu0 %v1552
  %1627 = vmatprep.subr.mxu0 0.0
  %1628 = vmatpush1.msra.mxu0 %v1553
  %1629 = vmatprep.subr.mxu0 0.0
  %1630 = vmatpush1.msra.mxu0 %v1554
  %1631 = vmatprep.subr.mxu0 0.0
  %1632 = vmatpush1.msra.mxu0 %v1555
  %1633 = vmatprep.subr.mxu0 0.0
  %1634 = vmatpush1.msra.mxu0 %v1556
  %1635 = vmatprep.subr.mxu0 0.0
  %1636 = vmatpush1.msra.mxu0 %v1557
  %1637 = vmatprep.subr.mxu0 0.0
  %1638 = vmatpush1.msra.mxu0 %v1558
  %1639 = vmatprep.subr.mxu0 0.0
  %1640 = vmatpush1.msra.mxu0 %v1559
  %1641 = vmatprep.subr.mxu0 0.0
  %1642 = vmatpush1.msra.mxu0 %v1560
  %1643 = vmatprep.subr.mxu0 0.0
  %1644 = vmatpush1.msra.mxu0 %v1561
  %1645 = vmatprep.subr.mxu0 0.0
  %1646 = vmatpush1.msra.mxu0 %v1562
  %1647 = vmatprep.subr.mxu0 0.0
  %1648 = vmatpush1.msra.mxu0 %v1563
  %1649 = vmatprep.subr.mxu0 0.0
  %1650 = vmatpush1.msra.mxu0 %v1564
  %1651 = vmatprep.subr.mxu0 0.0
  %1652 = vmatpush1.msra.mxu0 %v1565
  %1653 = vmatprep.subr.mxu0 0.0
  %1654 = vmatpush1.msra.mxu0 %v1566
  %1655 = vmatprep.subr.mxu0 0.0
  %1656 = vmatpush1.msra.mxu0 %v1567
  %1657 = vmatprep.subr.mxu0 0.0
  %1658 = vmatpush1.msra.mxu0 %v1568
  %1659 = vmatprep.subr.mxu0 0.0
  %1660 = vmatpush1.msra.mxu0 %v1569
  %1661 = vmatprep.subr.mxu0 0.0
  %1662 = vmatpush1.msra.mxu0 %v1570
  %1663 = vmatprep.subr.mxu0 0.0
  %1664 = vmatpush1.msra.mxu0 %v1571
  %1665 = vmatprep.subr.mxu0 0.0
  %1666 = vmatpush1.msra.mxu0 %v1572
  %1667 = vmatprep.subr.mxu0 0.0
  %1668 = vmatpush1.msra.mxu0 %v1573
  %1669 = vmatprep.subr.mxu0 0.0
  %1670 = vmatpush1.msra.mxu0 %v1574
  %1671 = vmatprep.mubr.f32.mxu0 %v36
  %1672 = vmatmul.mubr.f32.gmra.mrb[0].mxu0 %v35
  %v1673 = vpop.f32.mrb[0].mxu0
  %v1674 = vadd.f32 0.0, %v1673
  %v1675 = vpop.f32.mrb[0].mxu0
  %1676 = vdwg.mxu0
  %1677 = vmatprep.subr.mxu0 0.0
  %1678 = vmatpush1.msra.mxu0 %v1575
  %1679 = vmatprep.subr.mxu0 0.0
  %1680 = vmatpush1.msra.mxu0 %v1576
  %1681 = vmatprep.subr.mxu0 0.0
  %1682 = vmatpush1.msra.mxu0 %v1577
  %1683 = vmatprep.subr.mxu0 0.0
  %1684 = vmatpush1.msra.mxu0 %v1578
  %1685 = vmatprep.subr.mxu0 0.0
  %1686 = vmatpush1.msra.mxu0 %v1579
  %1687 = vmatprep.subr.mxu0 0.0
  %1688 = vmatpush1.msra.mxu0 %v1580
  %1689 = vmatprep.subr.mxu0 0.0
  %1690 = vmatpush1.msra.mxu0 %v1581
  %1691 = vmatprep.subr.mxu0 0.0
  %1692 = vmatpush1.msra.mxu0 %v1582
  %1693 = vmatprep.subr.mxu0 0.0
  %1694 = vmatpush1.msra.mxu0 %v1583
  %1695 = vmatprep.subr.mxu0 0.0
  %1696 = vmatpush1.msra.mxu0 %v1584
  %1697 = vmatprep.subr.mxu0 0.0
  %1698 = vmatpush1.msra.mxu0 %v1585
  %1699 = vmatprep.subr.mxu0 0.0
  %1700 = vmatpush1.msra.mxu0 %v1586
  %1701 = vmatprep.subr.mxu0 0.0
  %1702 = vmatpush1.msra.mxu0 %v1587
  %1703 = vmatprep.subr.mxu0 0.0
  %1704 = vmatpush1.msra.mxu0 %v1588
  %1705 = vmatprep.subr.mxu0 0.0
  %1706 = vmatpush1.msra.mxu0 %v1589
  %1707 = vmatprep.subr.mxu0 0.0
  %1708 = vmatpush1.msra.mxu0 %v1590
  %1709 = vmatprep.subr.mxu0 0.0
  %1710 = vmatpush1.msra.mxu0 %v1591
  %1711 = vmatprep.subr.mxu0 0.0
  %1712 = vmatpush1.msra.mxu0 %v1592
  %1713 = vmatprep.subr.mxu0 0.0
  %1714 = vmatpush1.msra.mxu0 %v1593
  %1715 = vmatprep.subr.mxu0 0.0
  %1716 = vmatpush1.msra.mxu0 %v1594
  %1717 = vmatprep.subr.mxu0 0.0
  %1718 = vmatpush1.msra.mxu0 %v1595
  %1719 = vmatprep.subr.mxu0 0.0
  %1720 = vmatpush1.msra.mxu0 %v1596
  %1721 = vmatprep.subr.mxu0 0.0
  %1722 = vmatpush1.msra.mxu0 %v1597
  %1723 = vmatprep.subr.mxu0 0.0
  %1724 = vmatpush1.msra.mxu0 %v1598
  %1725 = vmatprep.subr.mxu0 0.0
  %1726 = vmatpush1.msra.mxu0 %v1599
  %1727 = vmatprep.subr.mxu0 0.0
  %1728 = vmatpush1.msra.mxu0 %v1600
  %1729 = vmatprep.subr.mxu0 0.0
  %1730 = vmatpush1.msra.mxu0 %v1601
  %1731 = vmatprep.subr.mxu0 0.0
  %1732 = vmatpush1.msra.mxu0 %v1602
  %1733 = vmatprep.subr.mxu0 0.0
  %1734 = vmatpush1.msra.mxu0 %v1603
  %1735 = vmatprep.subr.mxu0 0.0
  %1736 = vmatpush1.msra.mxu0 %v1604
  %1737 = vmatprep.subr.mxu0 0.0
  %1738 = vmatpush1.msra.mxu0 %v1605
  %1739 = vmatprep.subr.mxu0 0.0
  %1740 = vmatpush1.msra.mxu0 %v1606
  %1741 = vmatprep.mubr.f32.mxu0 %v38
  %1742 = vmatmul.mubr.f32.gmra.mrb[0].mxu0 %v37
  %v1743 = vpop.f32.mrb[0].mxu0
  %v1744 = vadd.f32 %v1674, %v1743
  %v1745 = vpop.f32.mrb[0].mxu0
  %1746 = vdwg.mxu0
  %1747 = vst [vmem:[#allocation2 + $0x28] sm:$0xff] %v1744
  %v1748 = vld [vmem:[%s7 + $0x6] sm:$0x1]
  %v1749 = vlaneseq
  %v1750 = vshrl.u32 %v1749, 7
  %v1751 = vsub.s32 0, %v1750
  %v1752 = vrot.slane %v1748, %v1751
  %vm1753 = vcmp.eq.s32.totalorder %v40, %v1752
  %vm1754 = vcmp.eq.s32.totalorder %v41, %v1752
  %vm1755 = vcmp.eq.s32.totalorder %v42, %v1752
  %vm1756 = vcmp.eq.s32.totalorder %v43, %v1752
  %vm1757 = vcmp.eq.s32.totalorder %v44, %v1752
  %vm1758 = vcmp.eq.s32.totalorder %v45, %v1752
  %vm1759 = vcmp.eq.s32.totalorder %v46, %v1752
  %vm1760 = vcmp.eq.s32.totalorder %v47, %v1752
  %vm1761 = vcmp.eq.s32.totalorder %v48, %v1752
  %vm1762 = vcmp.eq.s32.totalorder %v49, %v1752
  %vm1763 = vcmp.eq.s32.totalorder %v50, %v1752
  %vm1764 = vcmp.eq.s32.totalorder %v51, %v1752
  %vm1765 = vcmp.eq.s32.totalorder %v52, %v1752
  %vm1766 = vcmp.eq.s32.totalorder %v53, %v1752
  %vm1767 = vcmp.eq.s32.totalorder %v54, %v1752
  %vm1768 = vcmp.eq.s32.totalorder %v55, %v1752
  %vm1769 = vcmp.eq.s32.totalorder %v56, %v1752
  %vm1770 = vcmp.eq.s32.totalorder %v57, %v1752
  %vm1771 = vcmp.eq.s32.totalorder %v58, %v1752
  %vm1772 = vcmp.eq.s32.totalorder %v59, %v1752
  %vm1773 = vcmp.eq.s32.totalorder %v60, %v1752
  %vm1774 = vcmp.eq.s32.totalorder %v61, %v1752
  %vm1775 = vcmp.eq.s32.totalorder %v62, %v1752
  %vm1776 = vcmp.eq.s32.totalorder %v63, %v1752
  %vm1777 = vcmp.eq.s32.totalorder %v64, %v1752
  %vm1778 = vcmp.eq.s32.totalorder %v65, %v1752
  %vm1779 = vcmp.eq.s32.totalorder %v66, %v1752
  %vm1780 = vcmp.eq.s32.totalorder %v67, %v1752
  %vm1781 = vcmp.eq.s32.totalorder %v68, %v1752
  %vm1782 = vcmp.eq.s32.totalorder %v69, %v1752
  %vm1783 = vcmp.eq.s32.totalorder %v70, %v1752
  %vm1784 = vcmp.eq.s32.totalorder %v71, %v1752
  %vm1785 = vcmp.eq.s32.totalorder %v72, %v1752
  %vm1786 = vcmp.eq.s32.totalorder %v73, %v1752
  %vm1787 = vcmp.eq.s32.totalorder %v74, %v1752
  %vm1788 = vcmp.eq.s32.totalorder %v75, %v1752
  %vm1789 = vcmp.eq.s32.totalorder %v76, %v1752
  %vm1790 = vcmp.eq.s32.totalorder %v77, %v1752
  %vm1791 = vcmp.eq.s32.totalorder %v78, %v1752
  %vm1792 = vcmp.eq.s32.totalorder %v79, %v1752
  %vm1793 = vcmp.eq.s32.totalorder %v80, %v1752
  %vm1794 = vcmp.eq.s32.totalorder %v81, %v1752
  %vm1795 = vcmp.eq.s32.totalorder %v82, %v1752
  %vm1796 = vcmp.eq.s32.totalorder %v83, %v1752
  %vm1797 = vcmp.eq.s32.totalorder %v84, %v1752
  %vm1798 = vcmp.eq.s32.totalorder %v85, %v1752
  %vm1799 = vcmp.eq.s32.totalorder %v86, %v1752
  %vm1800 = vcmp.eq.s32.totalorder %v87, %v1752
  %vm1801 = vcmp.eq.s32.totalorder %v88, %v1752
  %vm1802 = vcmp.eq.s32.totalorder %v89, %v1752
  %vm1803 = vcmp.eq.s32.totalorder %v90, %v1752
  %vm1804 = vcmp.eq.s32.totalorder %v91, %v1752
  %vm1805 = vcmp.eq.s32.totalorder %v92, %v1752
  %vm1806 = vcmp.eq.s32.totalorder %v93, %v1752
  %vm1807 = vcmp.eq.s32.totalorder %v94, %v1752
  %vm1808 = vcmp.eq.s32.totalorder %v95, %v1752
  %vm1809 = vcmp.eq.s32.totalorder %v96, %v1752
  %vm1810 = vcmp.eq.s32.totalorder %v97, %v1752
  %vm1811 = vcmp.eq.s32.totalorder %v98, %v1752
  %vm1812 = vcmp.eq.s32.totalorder %v99, %v1752
  %vm1813 = vcmp.eq.s32.totalorder %v100, %v1752
  %vm1814 = vcmp.eq.s32.totalorder %v101, %v1752
  %vm1815 = vcmp.eq.s32.totalorder %v102, %v1752
  %vm1816 = vcmp.eq.s32.totalorder %v103, %v1752
  %v1817 = vsel %vm1753, 1.0, 0.0
  %v1818 = vsel %vm1754, 1.0, 0.0
  %v1819 = vsel %vm1755, 1.0, 0.0
  %v1820 = vsel %vm1756, 1.0, 0.0
  %v1821 = vsel %vm1757, 1.0, 0.0
  %v1822 = vsel %vm1758, 1.0, 0.0
  %v1823 = vsel %vm1759, 1.0, 0.0
  %v1824 = vsel %vm1760, 1.0, 0.0
  %v1825 = vsel %vm1761, 1.0, 0.0
  %v1826 = vsel %vm1762, 1.0, 0.0
  %v1827 = vsel %vm1763, 1.0, 0.0
  %v1828 = vsel %vm1764, 1.0, 0.0
  %v1829 = vsel %vm1765, 1.0, 0.0
  %v1830 = vsel %vm1766, 1.0, 0.0
  %v1831 = vsel %vm1767, 1.0, 0.0
  %v1832 = vsel %vm1768, 1.0, 0.0
  %v1833 = vsel %vm1769, 1.0, 0.0
  %v1834 = vsel %vm1770, 1.0, 0.0
  %v1835 = vsel %vm1771, 1.0, 0.0
  %v1836 = vsel %vm1772, 1.0, 0.0
  %v1837 = vsel %vm1773, 1.0, 0.0
  %v1838 = vsel %vm1774, 1.0, 0.0
  %v1839 = vsel %vm1775, 1.0, 0.0
  %v1840 = vsel %vm1776, 1.0, 0.0
  %v1841 = vsel %vm1777, 1.0, 0.0
  %v1842 = vsel %vm1778, 1.0, 0.0
  %v1843 = vsel %vm1779, 1.0, 0.0
  %v1844 = vsel %vm1780, 1.0, 0.0
  %v1845 = vsel %vm1781, 1.0, 0.0
  %v1846 = vsel %vm1782, 1.0, 0.0
  %v1847 = vsel %vm1783, 1.0, 0.0
  %v1848 = vsel %vm1784, 1.0, 0.0
  %v1849 = vsel %vm1785, 1.0, 0.0
  %v1850 = vsel %vm1786, 1.0, 0.0
  %v1851 = vsel %vm1787, 1.0, 0.0
  %v1852 = vsel %vm1788, 1.0, 0.0
  %v1853 = vsel %vm1789, 1.0, 0.0
  %v1854 = vsel %vm1790, 1.0, 0.0
  %v1855 = vsel %vm1791, 1.0, 0.0
  %v1856 = vsel %vm1792, 1.0, 0.0
  %v1857 = vsel %vm1793, 1.0, 0.0
  %v1858 = vsel %vm1794, 1.0, 0.0
  %v1859 = vsel %vm1795, 1.0, 0.0
  %v1860 = vsel %vm1796, 1.0, 0.0
  %v1861 = vsel %vm1797, 1.0, 0.0
  %v1862 = vsel %vm1798, 1.0, 0.0
  %v1863 = vsel %vm1799, 1.0, 0.0
  %v1864 = vsel %vm1800, 1.0, 0.0
  %v1865 = vsel %vm1801, 1.0, 0.0
  %v1866 = vsel %vm1802, 1.0, 0.0
  %v1867 = vsel %vm1803, 1.0, 0.0
  %v1868 = vsel %vm1804, 1.0, 0.0
  %v1869 = vsel %vm1805, 1.0, 0.0
  %v1870 = vsel %vm1806, 1.0, 0.0
  %v1871 = vsel %vm1807, 1.0, 0.0
  %v1872 = vsel %vm1808, 1.0, 0.0
  %v1873 = vsel %vm1809, 1.0, 0.0
  %v1874 = vsel %vm1810, 1.0, 0.0
  %v1875 = vsel %vm1811, 1.0, 0.0
  %v1876 = vsel %vm1812, 1.0, 0.0
  %v1877 = vsel %vm1813, 1.0, 0.0
  %v1878 = vsel %vm1814, 1.0, 0.0
  %v1879 = vsel %vm1815, 1.0, 0.0
  %v1880 = vsel %vm1816, 1.0, 0.0
  %1881 = vmatprep.subr.mxu0 0.0
  %1882 = vmatpush1.msra.mxu0 %v1817
  %1883 = vmatprep.subr.mxu0 0.0
  %1884 = vmatpush1.msra.mxu0 %v1818
  %1885 = vmatprep.subr.mxu0 0.0
  %1886 = vmatpush1.msra.mxu0 %v1819
  %1887 = vmatprep.subr.mxu0 0.0
  %1888 = vmatpush1.msra.mxu0 %v1820
  %1889 = vmatprep.subr.mxu0 0.0
  %1890 = vmatpush1.msra.mxu0 %v1821
  %1891 = vmatprep.subr.mxu0 0.0
  %1892 = vmatpush1.msra.mxu0 %v1822
  %1893 = vmatprep.subr.mxu0 0.0
  %1894 = vmatpush1.msra.mxu0 %v1823
  %1895 = vmatprep.subr.mxu0 0.0
  %1896 = vmatpush1.msra.mxu0 %v1824
  %1897 = vmatprep.subr.mxu0 0.0
  %1898 = vmatpush1.msra.mxu0 %v1825
  %1899 = vmatprep.subr.mxu0 0.0
  %1900 = vmatpush1.msra.mxu0 %v1826
  %1901 = vmatprep.subr.mxu0 0.0
  %1902 = vmatpush1.msra.mxu0 %v1827
  %1903 = vmatprep.subr.mxu0 0.0
  %1904 = vmatpush1.msra.mxu0 %v1828
  %1905 = vmatprep.subr.mxu0 0.0
  %1906 = vmatpush1.msra.mxu0 %v1829
  %1907 = vmatprep.subr.mxu0 0.0
  %1908 = vmatpush1.msra.mxu0 %v1830
  %1909 = vmatprep.subr.mxu0 0.0
  %1910 = vmatpush1.msra.mxu0 %v1831
  %1911 = vmatprep.subr.mxu0 0.0
  %1912 = vmatpush1.msra.mxu0 %v1832
  %1913 = vmatprep.subr.mxu0 0.0
  %1914 = vmatpush1.msra.mxu0 %v1833
  %1915 = vmatprep.subr.mxu0 0.0
  %1916 = vmatpush1.msra.mxu0 %v1834
  %1917 = vmatprep.subr.mxu0 0.0
  %1918 = vmatpush1.msra.mxu0 %v1835
  %1919 = vmatprep.subr.mxu0 0.0
  %1920 = vmatpush1.msra.mxu0 %v1836
  %1921 = vmatprep.subr.mxu0 0.0
  %1922 = vmatpush1.msra.mxu0 %v1837
  %1923 = vmatprep.subr.mxu0 0.0
  %1924 = vmatpush1.msra.mxu0 %v1838
  %1925 = vmatprep.subr.mxu0 0.0
  %1926 = vmatpush1.msra.mxu0 %v1839
  %1927 = vmatprep.subr.mxu0 0.0
  %1928 = vmatpush1.msra.mxu0 %v1840
  %1929 = vmatprep.subr.mxu0 0.0
  %1930 = vmatpush1.msra.mxu0 %v1841
  %1931 = vmatprep.subr.mxu0 0.0
  %1932 = vmatpush1.msra.mxu0 %v1842
  %1933 = vmatprep.subr.mxu0 0.0
  %1934 = vmatpush1.msra.mxu0 %v1843
  %1935 = vmatprep.subr.mxu0 0.0
  %1936 = vmatpush1.msra.mxu0 %v1844
  %1937 = vmatprep.subr.mxu0 0.0
  %1938 = vmatpush1.msra.mxu0 %v1845
  %1939 = vmatprep.subr.mxu0 0.0
  %1940 = vmatpush1.msra.mxu0 %v1846
  %1941 = vmatprep.subr.mxu0 0.0
  %1942 = vmatpush1.msra.mxu0 %v1847
  %1943 = vmatprep.subr.mxu0 0.0
  %1944 = vmatpush1.msra.mxu0 %v1848
  %1945 = vmatprep.mubr.f32.mxu0 %v36
  %1946 = vmatmul.mubr.f32.gmra.mrb[0].mxu0 %v35
  %v1947 = vpop.f32.mrb[0].mxu0
  %v1948 = vadd.f32 0.0, %v1947
  %v1949 = vpop.f32.mrb[0].mxu0
  %1950 = vdwg.mxu0
  %1951 = vmatprep.subr.mxu0 0.0
  %1952 = vmatpush1.msra.mxu0 %v1849
  %1953 = vmatprep.subr.mxu0 0.0
  %1954 = vmatpush1.msra.mxu0 %v1850
  %1955 = vmatprep.subr.mxu0 0.0
  %1956 = vmatpush1.msra.mxu0 %v1851
  %1957 = vmatprep.subr.mxu0 0.0
  %1958 = vmatpush1.msra.mxu0 %v1852
  %1959 = vmatprep.subr.mxu0 0.0
  %1960 = vmatpush1.msra.mxu0 %v1853
  %1961 = vmatprep.subr.mxu0 0.0
  %1962 = vmatpush1.msra.mxu0 %v1854
  %1963 = vmatprep.subr.mxu0 0.0
  %1964 = vmatpush1.msra.mxu0 %v1855
  %1965 = vmatprep.subr.mxu0 0.0
  %1966 = vmatpush1.msra.mxu0 %v1856
  %1967 = vmatprep.subr.mxu0 0.0
  %1968 = vmatpush1.msra.mxu0 %v1857
  %1969 = vmatprep.subr.mxu0 0.0
  %1970 = vmatpush1.msra.mxu0 %v1858
  %1971 = vmatprep.subr.mxu0 0.0
  %1972 = vmatpush1.msra.mxu0 %v1859
  %1973 = vmatprep.subr.mxu0 0.0
  %1974 = vmatpush1.msra.mxu0 %v1860
  %1975 = vmatprep.subr.mxu0 0.0
  %1976 = vmatpush1.msra.mxu0 %v1861
  %1977 = vmatprep.subr.mxu0 0.0
  %1978 = vmatpush1.msra.mxu0 %v1862
  %1979 = vmatprep.subr.mxu0 0.0
  %1980 = vmatpush1.msra.mxu0 %v1863
  %1981 = vmatprep.subr.mxu0 0.0
  %1982 = vmatpush1.msra.mxu0 %v1864
  %1983 = vmatprep.subr.mxu0 0.0
  %1984 = vmatpush1.msra.mxu0 %v1865
  %1985 = vmatprep.subr.mxu0 0.0
  %1986 = vmatpush1.msra.mxu0 %v1866
  %1987 = vmatprep.subr.mxu0 0.0
  %1988 = vmatpush1.msra.mxu0 %v1867
  %1989 = vmatprep.subr.mxu0 0.0
  %1990 = vmatpush1.msra.mxu0 %v1868
  %1991 = vmatprep.subr.mxu0 0.0
  %1992 = vmatpush1.msra.mxu0 %v1869
  %1993 = vmatprep.subr.mxu0 0.0
  %1994 = vmatpush1.msra.mxu0 %v1870
  %1995 = vmatprep.subr.mxu0 0.0
  %1996 = vmatpush1.msra.mxu0 %v1871
  %1997 = vmatprep.subr.mxu0 0.0
  %1998 = vmatpush1.msra.mxu0 %v1872
  %1999 = vmatprep.subr.mxu0 0.0
  %2000 = vmatpush1.msra.mxu0 %v1873
  %2001 = vmatprep.subr.mxu0 0.0
  %2002 = vmatpush1.msra.mxu0 %v1874
  %2003 = vmatprep.subr.mxu0 0.0
  %2004 = vmatpush1.msra.mxu0 %v1875
  %2005 = vmatprep.subr.mxu0 0.0
  %2006 = vmatpush1.msra.mxu0 %v1876
  %2007 = vmatprep.subr.mxu0 0.0
  %2008 = vmatpush1.msra.mxu0 %v1877
  %2009 = vmatprep.subr.mxu0 0.0
  %2010 = vmatpush1.msra.mxu0 %v1878
  %2011 = vmatprep.subr.mxu0 0.0
  %2012 = vmatpush1.msra.mxu0 %v1879
  %2013 = vmatprep.subr.mxu0 0.0
  %2014 = vmatpush1.msra.mxu0 %v1880
  %2015 = vmatprep.mubr.f32.mxu0 %v38
  %2016 = vmatmul.mubr.f32.gmra.mrb[0].mxu0 %v37
  %v2017 = vpop.f32.mrb[0].mxu0
  %v2018 = vadd.f32 %v1948, %v2017
  %v2019 = vpop.f32.mrb[0].mxu0
  %2020 = vdwg.mxu0
  %2021 = vst [vmem:[#allocation2 + $0x30] sm:$0xff] %v2018
  %v2022 = vld [vmem:[%s7 + $0x7] sm:$0x1]
  %v2023 = vlaneseq
  %v2024 = vshrl.u32 %v2023, 7
  %v2025 = vsub.s32 0, %v2024
  %v2026 = vrot.slane %v2022, %v2025
  %vm2027 = vcmp.eq.s32.totalorder %v40, %v2026
  %vm2028 = vcmp.eq.s32.totalorder %v41, %v2026
  %vm2029 = vcmp.eq.s32.totalorder %v42, %v2026
  %vm2030 = vcmp.eq.s32.totalorder %v43, %v2026
  %vm2031 = vcmp.eq.s32.totalorder %v44, %v2026
  %vm2032 = vcmp.eq.s32.totalorder %v45, %v2026
  %vm2033 = vcmp.eq.s32.totalorder %v46, %v2026
  %vm2034 = vcmp.eq.s32.totalorder %v47, %v2026
  %vm2035 = vcmp.eq.s32.totalorder %v48, %v2026
  %vm2036 = vcmp.eq.s32.totalorder %v49, %v2026
  %vm2037 = vcmp.eq.s32.totalorder %v50, %v2026
  %vm2038 = vcmp.eq.s32.totalorder %v51, %v2026
  %vm2039 = vcmp.eq.s32.totalorder %v52, %v2026
  %vm2040 = vcmp.eq.s32.totalorder %v53, %v2026
  %vm2041 = vcmp.eq.s32.totalorder %v54, %v2026
  %vm2042 = vcmp.eq.s32.totalorder %v55, %v2026
  %vm2043 = vcmp.eq.s32.totalorder %v56, %v2026
  %vm2044 = vcmp.eq.s32.totalorder %v57, %v2026
  %vm2045 = vcmp.eq.s32.totalorder %v58, %v2026
  %vm2046 = vcmp.eq.s32.totalorder %v59, %v2026
  %vm2047 = vcmp.eq.s32.totalorder %v60, %v2026
  %vm2048 = vcmp.eq.s32.totalorder %v61, %v2026
  %vm2049 = vcmp.eq.s32.totalorder %v62, %v2026
  %vm2050 = vcmp.eq.s32.totalorder %v63, %v2026
  %vm2051 = vcmp.eq.s32.totalorder %v64, %v2026
  %vm2052 = vcmp.eq.s32.totalorder %v65, %v2026
  %vm2053 = vcmp.eq.s32.totalorder %v66, %v2026
  %vm2054 = vcmp.eq.s32.totalorder %v67, %v2026
  %vm2055 = vcmp.eq.s32.totalorder %v68, %v2026
  %vm2056 = vcmp.eq.s32.totalorder %v69, %v2026
  %vm2057 = vcmp.eq.s32.totalorder %v70, %v2026
  %vm2058 = vcmp.eq.s32.totalorder %v71, %v2026
  %vm2059 = vcmp.eq.s32.totalorder %v72, %v2026
  %vm2060 = vcmp.eq.s32.totalorder %v73, %v2026
  %vm2061 = vcmp.eq.s32.totalorder %v74, %v2026
  %vm2062 = vcmp.eq.s32.totalorder %v75, %v2026
  %vm2063 = vcmp.eq.s32.totalorder %v76, %v2026
  %vm2064 = vcmp.eq.s32.totalorder %v77, %v2026
  %vm2065 = vcmp.eq.s32.totalorder %v78, %v2026
  %vm2066 = vcmp.eq.s32.totalorder %v79, %v2026
  %vm2067 = vcmp.eq.s32.totalorder %v80, %v2026
  %vm2068 = vcmp.eq.s32.totalorder %v81, %v2026
  %vm2069 = vcmp.eq.s32.totalorder %v82, %v2026
  %vm2070 = vcmp.eq.s32.totalorder %v83, %v2026
  %vm2071 = vcmp.eq.s32.totalorder %v84, %v2026
  %vm2072 = vcmp.eq.s32.totalorder %v85, %v2026
  %vm2073 = vcmp.eq.s32.totalorder %v86, %v2026
  %vm2074 = vcmp.eq.s32.totalorder %v87, %v2026
  %vm2075 = vcmp.eq.s32.totalorder %v88, %v2026
  %vm2076 = vcmp.eq.s32.totalorder %v89, %v2026
  %vm2077 = vcmp.eq.s32.totalorder %v90, %v2026
  %vm2078 = vcmp.eq.s32.totalorder %v91, %v2026
  %vm2079 = vcmp.eq.s32.totalorder %v92, %v2026
  %vm2080 = vcmp.eq.s32.totalorder %v93, %v2026
  %vm2081 = vcmp.eq.s32.totalorder %v94, %v2026
  %vm2082 = vcmp.eq.s32.totalorder %v95, %v2026
  %vm2083 = vcmp.eq.s32.totalorder %v96, %v2026
  %vm2084 = vcmp.eq.s32.totalorder %v97, %v2026
  %vm2085 = vcmp.eq.s32.totalorder %v98, %v2026
  %vm2086 = vcmp.eq.s32.totalorder %v99, %v2026
  %vm2087 = vcmp.eq.s32.totalorder %v100, %v2026
  %vm2088 = vcmp.eq.s32.totalorder %v101, %v2026
  %vm2089 = vcmp.eq.s32.totalorder %v102, %v2026
  %vm2090 = vcmp.eq.s32.totalorder %v103, %v2026
  %v2091 = vsel %vm2027, 1.0, 0.0
  %v2092 = vsel %vm2028, 1.0, 0.0
  %v2093 = vsel %vm2029, 1.0, 0.0
  %v2094 = vsel %vm2030, 1.0, 0.0
  %v2095 = vsel %vm2031, 1.0, 0.0
  %v2096 = vsel %vm2032, 1.0, 0.0
  %v2097 = vsel %vm2033, 1.0, 0.0
  %v2098 = vsel %vm2034, 1.0, 0.0
  %v2099 = vsel %vm2035, 1.0, 0.0
  %v2100 = vsel %vm2036, 1.0, 0.0
  %v2101 = vsel %vm2037, 1.0, 0.0
  %v2102 = vsel %vm2038, 1.0, 0.0
  %v2103 = vsel %vm2039, 1.0, 0.0
  %v2104 = vsel %vm2040, 1.0, 0.0
  %v2105 = vsel %vm2041, 1.0, 0.0
  %v2106 = vsel %vm2042, 1.0, 0.0
  %v2107 = vsel %vm2043, 1.0, 0.0
  %v2108 = vsel %vm2044, 1.0, 0.0
  %v2109 = vsel %vm2045, 1.0, 0.0
  %v2110 = vsel %vm2046, 1.0, 0.0
  %v2111 = vsel %vm2047, 1.0, 0.0
  %v2112 = vsel %vm2048, 1.0, 0.0
  %v2113 = vsel %vm2049, 1.0, 0.0
  %v2114 = vsel %vm2050, 1.0, 0.0
  %v2115 = vsel %vm2051, 1.0, 0.0
  %v2116 = vsel %vm2052, 1.0, 0.0
  %v2117 = vsel %vm2053, 1.0, 0.0
  %v2118 = vsel %vm2054, 1.0, 0.0
  %v2119 = vsel %vm2055, 1.0, 0.0
  %v2120 = vsel %vm2056, 1.0, 0.0
  %v2121 = vsel %vm2057, 1.0, 0.0
  %v2122 = vsel %vm2058, 1.0, 0.0
  %v2123 = vsel %vm2059, 1.0, 0.0
  %v2124 = vsel %vm2060, 1.0, 0.0
  %v2125 = vsel %vm2061, 1.0, 0.0
  %v2126 = vsel %vm2062, 1.0, 0.0
  %v2127 = vsel %vm2063, 1.0, 0.0
  %v2128 = vsel %vm2064, 1.0, 0.0
  %v2129 = vsel %vm2065, 1.0, 0.0
  %v2130 = vsel %vm2066, 1.0, 0.0
  %v2131 = vsel %vm2067, 1.0, 0.0
  %v2132 = vsel %vm2068, 1.0, 0.0
  %v2133 = vsel %vm2069, 1.0, 0.0
  %v2134 = vsel %vm2070, 1.0, 0.0
  %v2135 = vsel %vm2071, 1.0, 0.0
  %v2136 = vsel %vm2072, 1.0, 0.0
  %v2137 = vsel %vm2073, 1.0, 0.0
  %v2138 = vsel %vm2074, 1.0, 0.0
  %v2139 = vsel %vm2075, 1.0, 0.0
  %v2140 = vsel %vm2076, 1.0, 0.0
  %v2141 = vsel %vm2077, 1.0, 0.0
  %v2142 = vsel %vm2078, 1.0, 0.0
  %v2143 = vsel %vm2079, 1.0, 0.0
  %v2144 = vsel %vm2080, 1.0, 0.0
  %v2145 = vsel %vm2081, 1.0, 0.0
  %v2146 = vsel %vm2082, 1.0, 0.0
  %v2147 = vsel %vm2083, 1.0, 0.0
  %v2148 = vsel %vm2084, 1.0, 0.0
  %v2149 = vsel %vm2085, 1.0, 0.0
  %v2150 = vsel %vm2086, 1.0, 0.0
  %v2151 = vsel %vm2087, 1.0, 0.0
  %v2152 = vsel %vm2088, 1.0, 0.0
  %v2153 = vsel %vm2089, 1.0, 0.0
  %v2154 = vsel %vm2090, 1.0, 0.0
  %2155 = vmatprep.subr.mxu0 0.0
  %2156 = vmatpush1.msra.mxu0 %v2091
  %2157 = vmatprep.subr.mxu0 0.0
  %2158 = vmatpush1.msra.mxu0 %v2092
  %2159 = vmatprep.subr.mxu0 0.0
  %2160 = vmatpush1.msra.mxu0 %v2093
  %2161 = vmatprep.subr.mxu0 0.0
  %2162 = vmatpush1.msra.mxu0 %v2094
  %2163 = vmatprep.subr.mxu0 0.0
  %2164 = vmatpush1.msra.mxu0 %v2095
  %2165 = vmatprep.subr.mxu0 0.0
  %2166 = vmatpush1.msra.mxu0 %v2096
  %2167 = vmatprep.subr.mxu0 0.0
  %2168 = vmatpush1.msra.mxu0 %v2097
  %2169 = vmatprep.subr.mxu0 0.0
  %2170 = vmatpush1.msra.mxu0 %v2098
  %2171 = vmatprep.subr.mxu0 0.0
  %2172 = vmatpush1.msra.mxu0 %v2099
  %2173 = vmatprep.subr.mxu0 0.0
  %2174 = vmatpush1.msra.mxu0 %v2100
  %2175 = vmatprep.subr.mxu0 0.0
  %2176 = vmatpush1.msra.mxu0 %v2101
  %2177 = vmatprep.subr.mxu0 0.0
  %2178 = vmatpush1.msra.mxu0 %v2102
  %2179 = vmatprep.subr.mxu0 0.0
  %2180 = vmatpush1.msra.mxu0 %v2103
  %2181 = vmatprep.subr.mxu0 0.0
  %2182 = vmatpush1.msra.mxu0 %v2104
  %2183 = vmatprep.subr.mxu0 0.0
  %2184 = vmatpush1.msra.mxu0 %v2105
  %2185 = vmatprep.subr.mxu0 0.0
  %2186 = vmatpush1.msra.mxu0 %v2106
  %2187 = vmatprep.subr.mxu0 0.0
  %2188 = vmatpush1.msra.mxu0 %v2107
  %2189 = vmatprep.subr.mxu0 0.0
  %2190 = vmatpush1.msra.mxu0 %v2108
  %2191 = vmatprep.subr.mxu0 0.0
  %2192 = vmatpush1.msra.mxu0 %v2109
  %2193 = vmatprep.subr.mxu0 0.0
  %2194 = vmatpush1.msra.mxu0 %v2110
  %2195 = vmatprep.subr.mxu0 0.0
  %2196 = vmatpush1.msra.mxu0 %v2111
  %2197 = vmatprep.subr.mxu0 0.0
  %2198 = vmatpush1.msra.mxu0 %v2112
  %2199 = vmatprep.subr.mxu0 0.0
  %2200 = vmatpush1.msra.mxu0 %v2113
  %2201 = vmatprep.subr.mxu0 0.0
  %2202 = vmatpush1.msra.mxu0 %v2114
  %2203 = vmatprep.subr.mxu0 0.0
  %2204 = vmatpush1.msra.mxu0 %v2115
  %2205 = vmatprep.subr.mxu0 0.0
  %2206 = vmatpush1.msra.mxu0 %v2116
  %2207 = vmatprep.subr.mxu0 0.0
  %2208 = vmatpush1.msra.mxu0 %v2117
  %2209 = vmatprep.subr.mxu0 0.0
  %2210 = vmatpush1.msra.mxu0 %v2118
  %2211 = vmatprep.subr.mxu0 0.0
  %2212 = vmatpush1.msra.mxu0 %v2119
  %2213 = vmatprep.subr.mxu0 0.0
  %2214 = vmatpush1.msra.mxu0 %v2120
  %2215 = vmatprep.subr.mxu0 0.0
  %2216 = vmatpush1.msra.mxu0 %v2121
  %2217 = vmatprep.subr.mxu0 0.0
  %2218 = vmatpush1.msra.mxu0 %v2122
  %2219 = vmatprep.mubr.f32.mxu0 %v36
  %2220 = vmatmul.mubr.f32.gmra.mrb[0].mxu0 %v35
  %v2221 = vpop.f32.mrb[0].mxu0
  %v2222 = vadd.f32 0.0, %v2221
  %v2223 = vpop.f32.mrb[0].mxu0
  %2224 = vdwg.mxu0
  %2225 = vmatprep.subr.mxu0 0.0
  %2226 = vmatpush1.msra.mxu0 %v2123
  %2227 = vmatprep.subr.mxu0 0.0
  %2228 = vmatpush1.msra.mxu0 %v2124
  %2229 = vmatprep.subr.mxu0 0.0
  %2230 = vmatpush1.msra.mxu0 %v2125
  %2231 = vmatprep.subr.mxu0 0.0
  %2232 = vmatpush1.msra.mxu0 %v2126
  %2233 = vmatprep.subr.mxu0 0.0
  %2234 = vmatpush1.msra.mxu0 %v2127
  %2235 = vmatprep.subr.mxu0 0.0
  %2236 = vmatpush1.msra.mxu0 %v2128
  %2237 = vmatprep.subr.mxu0 0.0
  %2238 = vmatpush1.msra.mxu0 %v2129
  %2239 = vmatprep.subr.mxu0 0.0
  %2240 = vmatpush1.msra.mxu0 %v2130
  %2241 = vmatprep.subr.mxu0 0.0
  %2242 = vmatpush1.msra.mxu0 %v2131
  %2243 = vmatprep.subr.mxu0 0.0
  %2244 = vmatpush1.msra.mxu0 %v2132
  %2245 = vmatprep.subr.mxu0 0.0
  %2246 = vmatpush1.msra.mxu0 %v2133
  %2247 = vmatprep.subr.mxu0 0.0
  %2248 = vmatpush1.msra.mxu0 %v2134
  %2249 = vmatprep.subr.mxu0 0.0
  %2250 = vmatpush1.msra.mxu0 %v2135
  %2251 = vmatprep.subr.mxu0 0.0
  %2252 = vmatpush1.msra.mxu0 %v2136
  %2253 = vmatprep.subr.mxu0 0.0
  %2254 = vmatpush1.msra.mxu0 %v2137
  %2255 = vmatprep.subr.mxu0 0.0
  %2256 = vmatpush1.msra.mxu0 %v2138
  %2257 = vmatprep.subr.mxu0 0.0
  %2258 = vmatpush1.msra.mxu0 %v2139
  %2259 = vmatprep.subr.mxu0 0.0
  %2260 = vmatpush1.msra.mxu0 %v2140
  %2261 = vmatprep.subr.mxu0 0.0
  %2262 = vmatpush1.msra.mxu0 %v2141
  %2263 = vmatprep.subr.mxu0 0.0
  %2264 = vmatpush1.msra.mxu0 %v2142
  %2265 = vmatprep.subr.mxu0 0.0
  %2266 = vmatpush1.msra.mxu0 %v2143
  %2267 = vmatprep.subr.mxu0 0.0
  %2268 = vmatpush1.msra.mxu0 %v2144
  %2269 = vmatprep.subr.mxu0 0.0
  %2270 = vmatpush1.msra.mxu0 %v2145
  %2271 = vmatprep.subr.mxu0 0.0
  %2272 = vmatpush1.msra.mxu0 %v2146
  %2273 = vmatprep.subr.mxu0 0.0
  %2274 = vmatpush1.msra.mxu0 %v2147
  %2275 = vmatprep.subr.mxu0 0.0
  %2276 = vmatpush1.msra.mxu0 %v2148
  %2277 = vmatprep.subr.mxu0 0.0
  %2278 = vmatpush1.msra.mxu0 %v2149
  %2279 = vmatprep.subr.mxu0 0.0
  %2280 = vmatpush1.msra.mxu0 %v2150
  %2281 = vmatprep.subr.mxu0 0.0
  %2282 = vmatpush1.msra.mxu0 %v2151
  %2283 = vmatprep.subr.mxu0 0.0
  %2284 = vmatpush1.msra.mxu0 %v2152
  %2285 = vmatprep.subr.mxu0 0.0
  %2286 = vmatpush1.msra.mxu0 %v2153
  %2287 = vmatprep.subr.mxu0 0.0
  %2288 = vmatpush1.msra.mxu0 %v2154
  %2289 = vmatprep.mubr.f32.mxu0 %v38
  %2290 = vmatmul.mubr.f32.gmra.mrb[0].mxu0 %v37
  %v2291 = vpop.f32.mrb[0].mxu0
  %v2292 = vadd.f32 %v2222, %v2291
  %v2293 = vpop.f32.mrb[0].mxu0
  %2294 = vdwg.mxu0
  %2295 = vst [vmem:[#allocation2 + $0x38] sm:$0xff] %v2292
  %v2296 = vld [vmem:[%s7 + $0x8] sm:$0x1]
  %v2297 = vlaneseq
  %v2298 = vshrl.u32 %v2297, 7
  %v2299 = vsub.s32 0, %v2298
  %v2300 = vrot.slane %v2296, %v2299
  %vm2301 = vcmp.eq.s32.totalorder %v40, %v2300
  %vm2302 = vcmp.eq.s32.totalorder %v41, %v2300
  %vm2303 = vcmp.eq.s32.totalorder %v42, %v2300
  %vm2304 = vcmp.eq.s32.totalorder %v43, %v2300
  %vm2305 = vcmp.eq.s32.totalorder %v44, %v2300
  %vm2306 = vcmp.eq.s32.totalorder %v45, %v2300
  %vm2307 = vcmp.eq.s32.totalorder %v46, %v2300
  %vm2308 = vcmp.eq.s32.totalorder %v47, %v2300
  %vm2309 = vcmp.eq.s32.totalorder %v48, %v2300
  %vm2310 = vcmp.eq.s32.totalorder %v49, %v2300
  %vm2311 = vcmp.eq.s32.totalorder %v50, %v2300
  %vm2312 = vcmp.eq.s32.totalorder %v51, %v2300
  %vm2313 = vcmp.eq.s32.totalorder %v52, %v2300
  %vm2314 = vcmp.eq.s32.totalorder %v53, %v2300
  %vm2315 = vcmp.eq.s32.totalorder %v54, %v2300
  %vm2316 = vcmp.eq.s32.totalorder %v55, %v2300
  %vm2317 = vcmp.eq.s32.totalorder %v56, %v2300
  %vm2318 = vcmp.eq.s32.totalorder %v57, %v2300
  %vm2319 = vcmp.eq.s32.totalorder %v58, %v2300
  %vm2320 = vcmp.eq.s32.totalorder %v59, %v2300
  %vm2321 = vcmp.eq.s32.totalorder %v60, %v2300
  %vm2322 = vcmp.eq.s32.totalorder %v61, %v2300
  %vm2323 = vcmp.eq.s32.totalorder %v62, %v2300
  %vm2324 = vcmp.eq.s32.totalorder %v63, %v2300
  %vm2325 = vcmp.eq.s32.totalorder %v64, %v2300
  %vm2326 = vcmp.eq.s32.totalorder %v65, %v2300
  %vm2327 = vcmp.eq.s32.totalorder %v66, %v2300
  %vm2328 = vcmp.eq.s32.totalorder %v67, %v2300
  %vm2329 = vcmp.eq.s32.totalorder %v68, %v2300
  %vm2330 = vcmp.eq.s32.totalorder %v69, %v2300
  %vm2331 = vcmp.eq.s32.totalorder %v70, %v2300
  %vm2332 = vcmp.eq.s32.totalorder %v71, %v2300
  %vm2333 = vcmp.eq.s32.totalorder %v72, %v2300
  %vm2334 = vcmp.eq.s32.totalorder %v73, %v2300
  %vm2335 = vcmp.eq.s32.totalorder %v74, %v2300
  %vm2336 = vcmp.eq.s32.totalorder %v75, %v2300
  %vm2337 = vcmp.eq.s32.totalorder %v76, %v2300
  %vm2338 = vcmp.eq.s32.totalorder %v77, %v2300
  %vm2339 = vcmp.eq.s32.totalorder %v78, %v2300
  %vm2340 = vcmp.eq.s32.totalorder %v79, %v2300
  %vm2341 = vcmp.eq.s32.totalorder %v80, %v2300
  %vm2342 = vcmp.eq.s32.totalorder %v81, %v2300
  %vm2343 = vcmp.eq.s32.totalorder %v82, %v2300
  %vm2344 = vcmp.eq.s32.totalorder %v83, %v2300
  %vm2345 = vcmp.eq.s32.totalorder %v84, %v2300
  %vm2346 = vcmp.eq.s32.totalorder %v85, %v2300
  %vm2347 = vcmp.eq.s32.totalorder %v86, %v2300
  %vm2348 = vcmp.eq.s32.totalorder %v87, %v2300
  %vm2349 = vcmp.eq.s32.totalorder %v88, %v2300
  %vm2350 = vcmp.eq.s32.totalorder %v89, %v2300
  %vm2351 = vcmp.eq.s32.totalorder %v90, %v2300
  %vm2352 = vcmp.eq.s32.totalorder %v91, %v2300
  %vm2353 = vcmp.eq.s32.totalorder %v92, %v2300
  %vm2354 = vcmp.eq.s32.totalorder %v93, %v2300
  %vm2355 = vcmp.eq.s32.totalorder %v94, %v2300
  %vm2356 = vcmp.eq.s32.totalorder %v95, %v2300
  %vm2357 = vcmp.eq.s32.totalorder %v96, %v2300
  %vm2358 = vcmp.eq.s32.totalorder %v97, %v2300
  %vm2359 = vcmp.eq.s32.totalorder %v98, %v2300
  %vm2360 = vcmp.eq.s32.totalorder %v99, %v2300
  %vm2361 = vcmp.eq.s32.totalorder %v100, %v2300
  %vm2362 = vcmp.eq.s32.totalorder %v101, %v2300
  %vm2363 = vcmp.eq.s32.totalorder %v102, %v2300
  %vm2364 = vcmp.eq.s32.totalorder %v103, %v2300
  %v2365 = vsel %vm2301, 1.0, 0.0
  %v2366 = vsel %vm2302, 1.0, 0.0
  %v2367 = vsel %vm2303, 1.0, 0.0
  %v2368 = vsel %vm2304, 1.0, 0.0
  %v2369 = vsel %vm2305, 1.0, 0.0
  %v2370 = vsel %vm2306, 1.0, 0.0
  %v2371 = vsel %vm2307, 1.0, 0.0
  %v2372 = vsel %vm2308, 1.0, 0.0
  %v2373 = vsel %vm2309, 1.0, 0.0
  %v2374 = vsel %vm2310, 1.0, 0.0
  %v2375 = vsel %vm2311, 1.0, 0.0
  %v2376 = vsel %vm2312, 1.0, 0.0
  %v2377 = vsel %vm2313, 1.0, 0.0
  %v2378 = vsel %vm2314, 1.0, 0.0
  %v2379 = vsel %vm2315, 1.0, 0.0
  %v2380 = vsel %vm2316, 1.0, 0.0
  %v2381 = vsel %vm2317, 1.0, 0.0
  %v2382 = vsel %vm2318, 1.0, 0.0
  %v2383 = vsel %vm2319, 1.0, 0.0
  %v2384 = vsel %vm2320, 1.0, 0.0
  %v2385 = vsel %vm2321, 1.0, 0.0
  %v2386 = vsel %vm2322, 1.0, 0.0
  %v2387 = vsel %vm2323, 1.0, 0.0
  %v2388 = vsel %vm2324, 1.0, 0.0
  %v2389 = vsel %vm2325, 1.0, 0.0
  %v2390 = vsel %vm2326, 1.0, 0.0
  %v2391 = vsel %vm2327, 1.0, 0.0
  %v2392 = vsel %vm2328, 1.0, 0.0
  %v2393 = vsel %vm2329, 1.0, 0.0
  %v2394 = vsel %vm2330, 1.0, 0.0
  %v2395 = vsel %vm2331, 1.0, 0.0
  %v2396 = vsel %vm2332, 1.0, 0.0
  %v2397 = vsel %vm2333, 1.0, 0.0
  %v2398 = vsel %vm2334, 1.0, 0.0
  %v2399 = vsel %vm2335, 1.0, 0.0
  %v2400 = vsel %vm2336, 1.0, 0.0
  %v2401 = vsel %vm2337, 1.0, 0.0
  %v2402 = vsel %vm2338, 1.0, 0.0
  %v2403 = vsel %vm2339, 1.0, 0.0
  %v2404 = vsel %vm2340, 1.0, 0.0
  %v2405 = vsel %vm2341, 1.0, 0.0
  %v2406 = vsel %vm2342, 1.0, 0.0
  %v2407 = vsel %vm2343, 1.0, 0.0
  %v2408 = vsel %vm2344, 1.0, 0.0
  %v2409 = vsel %vm2345, 1.0, 0.0
  %v2410 = vsel %vm2346, 1.0, 0.0
  %v2411 = vsel %vm2347, 1.0, 0.0
  %v2412 = vsel %vm2348, 1.0, 0.0
  %v2413 = vsel %vm2349, 1.0, 0.0
  %v2414 = vsel %vm2350, 1.0, 0.0
  %v2415 = vsel %vm2351, 1.0, 0.0
  %v2416 = vsel %vm2352, 1.0, 0.0
  %v2417 = vsel %vm2353, 1.0, 0.0
  %v2418 = vsel %vm2354, 1.0, 0.0
  %v2419 = vsel %vm2355, 1.0, 0.0
  %v2420 = vsel %vm2356, 1.0, 0.0
  %v2421 = vsel %vm2357, 1.0, 0.0
  %v2422 = vsel %vm2358, 1.0, 0.0
  %v2423 = vsel %vm2359, 1.0, 0.0
  %v2424 = vsel %vm2360, 1.0, 0.0
  %v2425 = vsel %vm2361, 1.0, 0.0
  %v2426 = vsel %vm2362, 1.0, 0.0
  %v2427 = vsel %vm2363, 1.0, 0.0
  %v2428 = vsel %vm2364, 1.0, 0.0
  %2429 = vmatprep.subr.mxu0 0.0
  %2430 = vmatpush1.msra.mxu0 %v2365
  %2431 = vmatprep.subr.mxu0 0.0
  %2432 = vmatpush1.msra.mxu0 %v2366
  %2433 = vmatprep.subr.mxu0 0.0
  %2434 = vmatpush1.msra.mxu0 %v2367
  %2435 = vmatprep.subr.mxu0 0.0
  %2436 = vmatpush1.msra.mxu0 %v2368
  %2437 = vmatprep.subr.mxu0 0.0
  %2438 = vmatpush1.msra.mxu0 %v2369
  %2439 = vmatprep.subr.mxu0 0.0
  %2440 = vmatpush1.msra.mxu0 %v2370
  %2441 = vmatprep.subr.mxu0 0.0
  %2442 = vmatpush1.msra.mxu0 %v2371
  %2443 = vmatprep.subr.mxu0 0.0
  %2444 = vmatpush1.msra.mxu0 %v2372
  %2445 = vmatprep.subr.mxu0 0.0
  %2446 = vmatpush1.msra.mxu0 %v2373
  %2447 = vmatprep.subr.mxu0 0.0
  %2448 = vmatpush1.msra.mxu0 %v2374
  %2449 = vmatprep.subr.mxu0 0.0
  %2450 = vmatpush1.msra.mxu0 %v2375
  %2451 = vmatprep.subr.mxu0 0.0
  %2452 = vmatpush1.msra.mxu0 %v2376
  %2453 = vmatprep.subr.mxu0 0.0
  %2454 = vmatpush1.msra.mxu0 %v2377
  %2455 = vmatprep.subr.mxu0 0.0
  %2456 = vmatpush1.msra.mxu0 %v2378
  %2457 = vmatprep.subr.mxu0 0.0
  %2458 = vmatpush1.msra.mxu0 %v2379
  %2459 = vmatprep.subr.mxu0 0.0
  %2460 = vmatpush1.msra.mxu0 %v2380
  %2461 = vmatprep.subr.mxu0 0.0
  %2462 = vmatpush1.msra.mxu0 %v2381
  %2463 = vmatprep.subr.mxu0 0.0
  %2464 = vmatpush1.msra.mxu0 %v2382
  %2465 = vmatprep.subr.mxu0 0.0
  %2466 = vmatpush1.msra.mxu0 %v2383
  %2467 = vmatprep.subr.mxu0 0.0
  %2468 = vmatpush1.msra.mxu0 %v2384
  %2469 = vmatprep.subr.mxu0 0.0
  %2470 = vmatpush1.msra.mxu0 %v2385
  %2471 = vmatprep.subr.mxu0 0.0
  %2472 = vmatpush1.msra.mxu0 %v2386
  %2473 = vmatprep.subr.mxu0 0.0
  %2474 = vmatpush1.msra.mxu0 %v2387
  %2475 = vmatprep.subr.mxu0 0.0
  %2476 = vmatpush1.msra.mxu0 %v2388
  %2477 = vmatprep.subr.mxu0 0.0
  %2478 = vmatpush1.msra.mxu0 %v2389
  %2479 = vmatprep.subr.mxu0 0.0
  %2480 = vmatpush1.msra.mxu0 %v2390
  %2481 = vmatprep.subr.mxu0 0.0
  %2482 = vmatpush1.msra.mxu0 %v2391
  %2483 = vmatprep.subr.mxu0 0.0
  %2484 = vmatpush1.msra.mxu0 %v2392
  %2485 = vmatprep.subr.mxu0 0.0
  %2486 = vmatpush1.msra.mxu0 %v2393
  %2487 = vmatprep.subr.mxu0 0.0
  %2488 = vmatpush1.msra.mxu0 %v2394
  %2489 = vmatprep.subr.mxu0 0.0
  %2490 = vmatpush1.msra.mxu0 %v2395
  %2491 = vmatprep.subr.mxu0 0.0
  %2492 = vmatpush1.msra.mxu0 %v2396
  %2493 = vmatprep.mubr.f32.mxu0 %v36
  %2494 = vmatmul.mubr.f32.gmra.mrb[0].mxu0 %v35
  %v2495 = vpop.f32.mrb[0].mxu0
  %v2496 = vadd.f32 0.0, %v2495
  %v2497 = vpop.f32.mrb[0].mxu0
  %2498 = vdwg.mxu0
  %2499 = vmatprep.subr.mxu0 0.0
  %2500 = vmatpush1.msra.mxu0 %v2397
  %2501 = vmatprep.subr.mxu0 0.0
  %2502 = vmatpush1.msra.mxu0 %v2398
  %2503 = vmatprep.subr.mxu0 0.0
  %2504 = vmatpush1.msra.mxu0 %v2399
  %2505 = vmatprep.subr.mxu0 0.0
  %2506 = vmatpush1.msra.mxu0 %v2400
  %2507 = vmatprep.subr.mxu0 0.0
  %2508 = vmatpush1.msra.mxu0 %v2401
  %2509 = vmatprep.subr.mxu0 0.0
  %2510 = vmatpush1.msra.mxu0 %v2402
  %2511 = vmatprep.subr.mxu0 0.0
  %2512 = vmatpush1.msra.mxu0 %v2403
  %2513 = vmatprep.subr.mxu0 0.0
  %2514 = vmatpush1.msra.mxu0 %v2404
  %2515 = vmatprep.subr.mxu0 0.0
  %2516 = vmatpush1.msra.mxu0 %v2405
  %2517 = vmatprep.subr.mxu0 0.0
  %2518 = vmatpush1.msra.mxu0 %v2406
  %2519 = vmatprep.subr.mxu0 0.0
  %2520 = vmatpush1.msra.mxu0 %v2407
  %2521 = vmatprep.subr.mxu0 0.0
  %2522 = vmatpush1.msra.mxu0 %v2408
  %2523 = vmatprep.subr.mxu0 0.0
  %2524 = vmatpush1.msra.mxu0 %v2409
  %2525 = vmatprep.subr.mxu0 0.0
  %2526 = vmatpush1.msra.mxu0 %v2410
  %2527 = vmatprep.subr.mxu0 0.0
  %2528 = vmatpush1.msra.mxu0 %v2411
  %2529 = vmatprep.subr.mxu0 0.0
  %2530 = vmatpush1.msra.mxu0 %v2412
  %2531 = vmatprep.subr.mxu0 0.0
  %2532 = vmatpush1.msra.mxu0 %v2413
  %2533 = vmatprep.subr.mxu0 0.0
  %2534 = vmatpush1.msra.mxu0 %v2414
  %2535 = vmatprep.subr.mxu0 0.0
  %2536 = vmatpush1.msra.mxu0 %v2415
  %2537 = vmatprep.subr.mxu0 0.0
  %2538 = vmatpush1.msra.mxu0 %v2416
  %2539 = vmatprep.subr.mxu0 0.0
  %2540 = vmatpush1.msra.mxu0 %v2417
  %2541 = vmatprep.subr.mxu0 0.0
  %2542 = vmatpush1.msra.mxu0 %v2418
  %2543 = vmatprep.subr.mxu0 0.0
  %2544 = vmatpush1.msra.mxu0 %v2419
  %2545 = vmatprep.subr.mxu0 0.0
  %2546 = vmatpush1.msra.mxu0 %v2420
  %2547 = vmatprep.subr.mxu0 0.0
  %2548 = vmatpush1.msra.mxu0 %v2421
  %2549 = vmatprep.subr.mxu0 0.0
  %2550 = vmatpush1.msra.mxu0 %v2422
  %2551 = vmatprep.subr.mxu0 0.0
  %2552 = vmatpush1.msra.mxu0 %v2423
  %2553 = vmatprep.subr.mxu0 0.0
  %2554 = vmatpush1.msra.mxu0 %v2424
  %2555 = vmatprep.subr.mxu0 0.0
  %2556 = vmatpush1.msra.mxu0 %v2425
  %2557 = vmatprep.subr.mxu0 0.0
  %2558 = vmatpush1.msra.mxu0 %v2426
  %2559 = vmatprep.subr.mxu0 0.0
  %2560 = vmatpush1.msra.mxu0 %v2427
  %2561 = vmatprep.subr.mxu0 0.0
  %2562 = vmatpush1.msra.mxu0 %v2428
  %2563 = vmatprep.mubr.f32.mxu0 %v38
  %2564 = vmatmul.mubr.f32.gmra.mrb[0].mxu0 %v37
  %v2565 = vpop.f32.mrb[0].mxu0
  %v2566 = vadd.f32 %v2496, %v2565
  %v2567 = vpop.f32.mrb[0].mxu0
  %2568 = vdwg.mxu0
  %2569 = vst [vmem:[#allocation2 + $0x40] sm:$0xff] %v2566
  %v2570 = vld [vmem:[%s1] sm:$0xff]
  %v2571 = vld [vmem:[#allocation2] sm:$0xff]
  %v2572 = vld [vmem:[#allocation2 + $0x8] sm:$0xff]
  %v2573 = vld [vmem:[#allocation2 + $0x10] sm:$0xff]
  %v2574 = vld [vmem:[#allocation2 + $0x18] sm:$0xff]
  %v2575 = vld [vmem:[#allocation2 + $0x20] sm:$0xff]
  %v2576 = vld [vmem:[#allocation2 + $0x28] sm:$0xff]
  %v2577 = vld [vmem:[#allocation2 + $0x30] sm:$0xff]
  %v2578 = vld [vmem:[#allocation2 + $0x38] sm:$0xff]
  %v2579 = vld [vmem:[#allocation2 + $0x40] sm:$0xff]
  %v2580 = vld [vmem:[%s4] sm:$0xff]
  %2582 = vset.pattern.permute.xlu0 0
  %2583 = vperm.xlu0 %2582, %v2580
  %v2584 = vpop.permute.xlu0 %2583
  %vm2586 = vcmask 588800
  %v2588 = vsel %vm2586, %v2570, 0
  %2590 = vmatprep.subr.mxu0 0.0
  %2591 = vmatpush1.msra.mxu0 %v2571
  %2592 = vmatprep.subr.mxu0 0.0
  %2593 = vmatpush1.msra.mxu0 %v2572
  %2594 = vmatprep.subr.mxu0 0.0
  %2595 = vmatpush1.msra.mxu0 %v2573
  %2596 = vmatprep.subr.mxu0 0.0
  %2597 = vmatpush1.msra.mxu0 %v2574
  %2598 = vmatprep.subr.mxu0 0.0
  %2599 = vmatpush1.msra.mxu0 %v2575
  %2600 = vmatprep.subr.mxu0 0.0
  %2601 = vmatpush1.msra.mxu0 %v2576
  %2602 = vmatprep.subr.mxu0 0.0
  %2603 = vmatpush1.msra.mxu0 %v2577
  %2604 = vmatprep.subr.mxu0 0.0
  %2605 = vmatpush1.msra.mxu0 %v2578
  %2606 = vmatprep.subr.mxu0 0.0
  %2607 = vmatpush1.msra.mxu0 %v2579
  %2608 = vmatprep.subr.mxu0 0.0
  %2609 = vmatpush1.msra.mxu0 0.0
  %2610 = vmatprep.subr.mxu0 0.0
  %2611 = vmatpush1.msra.mxu0 0.0
  %2612 = vmatprep.subr.mxu0 0.0
  %2613 = vmatpush1.msra.mxu0 0.0
  %2614 = vmatprep.subr.mxu0 0.0
  %2615 = vmatpush1.msra.mxu0 0.0
  %2616 = vmatprep.subr.mxu0 0.0
  %2617 = vmatpush1.msra.mxu0 0.0
  %2618 = vmatprep.subr.mxu0 0.0
  %2619 = vmatpush1.msra.mxu0 0.0
  %2620 = vmatprep.subr.mxu0 0.0
  %2621 = vmatpush1.msra.mxu0 0.0
  %2622 = vmatprep.subr.mxu0 0.0
  %2623 = vmatpush1.msra.mxu0 0.0
  %2624 = vmatprep.subr.mxu0 0.0
  %2625 = vmatpush1.msra.mxu0 0.0
  %2626 = vmatprep.subr.mxu0 0.0
  %2627 = vmatpush1.msra.mxu0 0.0
  %2628 = vmatprep.subr.mxu0 0.0
  %2629 = vmatpush1.msra.mxu0 0.0
  %2630 = vmatprep.subr.mxu0 0.0
  %2631 = vmatpush1.msra.mxu0 0.0
  %2632 = vmatprep.subr.mxu0 0.0
  %2633 = vmatpush1.msra.mxu0 0.0
  %2634 = vmatprep.subr.mxu0 0.0
  %2635 = vmatpush1.msra.mxu0 0.0
  %2636 = vmatprep.subr.mxu0 0.0
  %2637 = vmatpush1.msra.mxu0 0.0
  %2638 = vmatprep.subr.mxu0 0.0
  %2639 = vmatpush1.msra.mxu0 0.0
  %2640 = vmatprep.subr.mxu0 0.0
  %2641 = vmatpush1.msra.mxu0 0.0
  %2642 = vmatprep.subr.mxu0 0.0
  %2643 = vmatpush1.msra.mxu0 0.0
  %2644 = vmatprep.subr.mxu0 0.0
  %2645 = vmatpush1.msra.mxu0 0.0
  %2646 = vmatprep.subr.mxu0 0.0
  %2647 = vmatpush1.msra.mxu0 0.0
  %2648 = vmatprep.subr.mxu0 0.0
  %2649 = vmatpush1.msra.mxu0 0.0
  %2650 = vmatprep.subr.mxu0 0.0
  %2651 = vmatpush1.msra.mxu0 0.0
  %2652 = vmatprep.subr.mxu0 0.0
  %2653 = vmatpush1.msra.mxu0 0.0
  %2654 = vmatprep.mubr.f32.mxu0 0.0
  %2655 = vmatmul.mubr.f32.gmra.mrb[0].mxu0 %v2588
  %v2656 = vpop.f32.mrb[0].mxu0
  %v2657 = vadd.f32 %v2584, %v2656
  %v2658 = vpop.f32.mrb[0].mxu0
  %2659 = vdwg.mxu0
  %v2660 = vmax.f32 %v2657, 0.0
  %v2661 = vld [vmem:[%s8] sm:$0x1]
  %v2662 = vlaneseq
  %v2663 = vshrl.u32 %v2662, 7
  %v2664 = vsub.s32 0, %v2663
  %v2665 = vrot.slane %v2661, %v2664
  %vm2666 = vcmp.eq.s32.totalorder %v40, %v2665
  %vm2667 = vcmp.eq.s32.totalorder %v41, %v2665
  %vm2668 = vcmp.eq.s32.totalorder %v42, %v2665
  %vm2669 = vcmp.eq.s32.totalorder %v43, %v2665
  %vm2670 = vcmp.eq.s32.totalorder %v44, %v2665
  %vm2671 = vcmp.eq.s32.totalorder %v45, %v2665
  %vm2672 = vcmp.eq.s32.totalorder %v46, %v2665
  %vm2673 = vcmp.eq.s32.totalorder %v47, %v2665
  %vm2674 = vcmp.eq.s32.totalorder %v48, %v2665
  %vm2675 = vcmp.eq.s32.totalorder %v49, %v2665
  %vm2676 = vcmp.eq.s32.totalorder %v50, %v2665
  %vm2677 = vcmp.eq.s32.totalorder %v51, %v2665
  %vm2678 = vcmp.eq.s32.totalorder %v52, %v2665
  %vm2679 = vcmp.eq.s32.totalorder %v53, %v2665
  %vm2680 = vcmp.eq.s32.totalorder %v54, %v2665
  %vm2681 = vcmp.eq.s32.totalorder %v55, %v2665
  %v2682 = vsel %vm2666, 1.0, 0.0
  %v2683 = vsel %vm2667, 1.0, 0.0
  %v2684 = vsel %vm2668, 1.0, 0.0
  %v2685 = vsel %vm2669, 1.0, 0.0
  %v2686 = vsel %vm2670, 1.0, 0.0
  %v2687 = vsel %vm2671, 1.0, 0.0
  %v2688 = vsel %vm2672, 1.0, 0.0
  %v2689 = vsel %vm2673, 1.0, 0.0
  %v2690 = vsel %vm2674, 1.0, 0.0
  %v2691 = vsel %vm2675, 1.0, 0.0
  %v2692 = vsel %vm2676, 1.0, 0.0
  %v2693 = vsel %vm2677, 1.0, 0.0
  %v2694 = vsel %vm2678, 1.0, 0.0
  %v2695 = vsel %vm2679, 1.0, 0.0
  %v2696 = vsel %vm2680, 1.0, 0.0
  %v2697 = vsel %vm2681, 1.0, 0.0
  %2698 = vmatprep.subr.mxu0 0.0
  %2699 = vmatpush1.msra.mxu0 %v2682
  %2700 = vmatprep.subr.mxu0 0.0
  %2701 = vmatpush1.msra.mxu0 %v2683
  %2702 = vmatprep.subr.mxu0 0.0
  %2703 = vmatpush1.msra.mxu0 %v2684
  %2704 = vmatprep.subr.mxu0 0.0
  %2705 = vmatpush1.msra.mxu0 %v2685
  %2706 = vmatprep.subr.mxu0 0.0
  %2707 = vmatpush1.msra.mxu0 %v2686
  %2708 = vmatprep.subr.mxu0 0.0
  %2709 = vmatpush1.msra.mxu0 %v2687
  %2710 = vmatprep.subr.mxu0 0.0
  %2711 = vmatpush1.msra.mxu0 %v2688
  %2712 = vmatprep.subr.mxu0 0.0
  %2713 = vmatpush1.msra.mxu0 %v2689
  %2714 = vmatprep.subr.mxu0 0.0
  %2715 = vmatpush1.msra.mxu0 %v2690
  %2716 = vmatprep.subr.mxu0 0.0
  %2717 = vmatpush1.msra.mxu0 %v2691
  %2718 = vmatprep.subr.mxu0 0.0
  %2719 = vmatpush1.msra.mxu0 %v2692
  %2720 = vmatprep.subr.mxu0 0.0
  %2721 = vmatpush1.msra.mxu0 %v2693
  %2722 = vmatprep.subr.mxu0 0.0
  %2723 = vmatpush1.msra.mxu0 %v2694
  %2724 = vmatprep.subr.mxu0 0.0
  %2725 = vmatpush1.msra.mxu0 %v2695
  %2726 = vmatprep.subr.mxu0 0.0
  %2727 = vmatpush1.msra.mxu0 %v2696
  %2728 = vmatprep.subr.mxu0 0.0
  %2729 = vmatpush1.msra.mxu0 %v2697
  %2730 = vmatprep.subr.mxu0 0.0
  %2731 = vmatpush1.msra.mxu0 0.0
  %2732 = vmatprep.subr.mxu0 0.0
  %2733 = vmatpush1.msra.mxu0 0.0
  %2734 = vmatprep.subr.mxu0 0.0
  %2735 = vmatpush1.msra.mxu0 0.0
  %2736 = vmatprep.subr.mxu0 0.0
  %2737 = vmatpush1.msra.mxu0 0.0
  %2738 = vmatprep.subr.mxu0 0.0
  %2739 = vmatpush1.msra.mxu0 0.0
  %2740 = vmatprep.subr.mxu0 0.0
  %2741 = vmatpush1.msra.mxu0 0.0
  %2742 = vmatprep.subr.mxu0 0.0
  %2743 = vmatpush1.msra.mxu0 0.0
  %2744 = vmatprep.subr.mxu0 0.0
  %2745 = vmatpush1.msra.mxu0 0.0
  %2746 = vmatprep.subr.mxu0 0.0
  %2747 = vmatpush1.msra.mxu0 0.0
  %2748 = vmatprep.subr.mxu0 0.0
  %2749 = vmatpush1.msra.mxu0 0.0
  %2750 = vmatprep.subr.mxu0 0.0
  %2751 = vmatpush1.msra.mxu0 0.0
  %2752 = vmatprep.subr.mxu0 0.0
  %2753 = vmatpush1.msra.mxu0 0.0
  %2754 = vmatprep.subr.mxu0 0.0
  %2755 = vmatpush1.msra.mxu0 0.0
  %2756 = vmatprep.subr.mxu0 0.0
  %2757 = vmatpush1.msra.mxu0 0.0
  %2758 = vmatprep.subr.mxu0 0.0
  %2759 = vmatpush1.msra.mxu0 0.0
  %2760 = vmatprep.subr.mxu0 0.0
  %2761 = vmatpush1.msra.mxu0 0.0
  %2762 = vmatprep.mubr.f32.mxu0 0.0
  %2763 = vmatmul.mubr.f32.gmra.mrb[0].mxu0 %v2660
  %v2764 = vpop.f32.mrb[0].mxu0
  %v2765 = vadd.f32 0.0, %v2764
  %v2766 = vpop.f32.mrb[0].mxu0
  %2767 = vdwg.mxu0
  %vm2768 = vcmask 261120
  %2769 = vst.msk [vmem:[#allocation3] sm:$0xff] %vm2768, %v2765
  %v2770 = vld [vmem:[%s8 + $0x1] sm:$0x1]
  %v2771 = vlaneseq
  %v2772 = vshrl.u32 %v2771, 7
  %v2773 = vsub.s32 0, %v2772
  %v2774 = vrot.slane %v2770, %v2773
  %vm2775 = vcmp.eq.s32.totalorder %v40, %v2774
  %vm2776 = vcmp.eq.s32.totalorder %v41, %v2774
  %vm2777 = vcmp.eq.s32.totalorder %v42, %v2774
  %vm2778 = vcmp.eq.s32.totalorder %v43, %v2774
  %vm2779 = vcmp.eq.s32.totalorder %v44, %v2774
  %vm2780 = vcmp.eq.s32.totalorder %v45, %v2774
  %vm2781 = vcmp.eq.s32.totalorder %v46, %v2774
  %vm2782 = vcmp.eq.s32.totalorder %v47, %v2774
  %vm2783 = vcmp.eq.s32.totalorder %v48, %v2774
  %vm2784 = vcmp.eq.s32.totalorder %v49, %v2774
  %vm2785 = vcmp.eq.s32.totalorder %v50, %v2774
  %vm2786 = vcmp.eq.s32.totalorder %v51, %v2774
  %vm2787 = vcmp.eq.s32.totalorder %v52, %v2774
  %vm2788 = vcmp.eq.s32.totalorder %v53, %v2774
  %vm2789 = vcmp.eq.s32.totalorder %v54, %v2774
  %vm2790 = vcmp.eq.s32.totalorder %v55, %v2774
  %v2791 = vsel %vm2775, 1.0, 0.0
  %v2792 = vsel %vm2776, 1.0, 0.0
  %v2793 = vsel %vm2777, 1.0, 0.0
  %v2794 = vsel %vm2778, 1.0, 0.0
  %v2795 = vsel %vm2779, 1.0, 0.0
  %v2796 = vsel %vm2780, 1.0, 0.0
  %v2797 = vsel %vm2781, 1.0, 0.0
  %v2798 = vsel %vm2782, 1.0, 0.0
  %v2799 = vsel %vm2783, 1.0, 0.0
  %v2800 = vsel %vm2784, 1.0, 0.0
  %v2801 = vsel %vm2785, 1.0, 0.0
  %v2802 = vsel %vm2786, 1.0, 0.0
  %v2803 = vsel %vm2787, 1.0, 0.0
  %v2804 = vsel %vm2788, 1.0, 0.0
  %v2805 = vsel %vm2789, 1.0, 0.0
  %v2806 = vsel %vm2790, 1.0, 0.0
  %2807 = vmatprep.subr.mxu0 0.0
  %2808 = vmatpush1.msra.mxu0 %v2791
  %2809 = vmatprep.subr.mxu0 0.0
  %2810 = vmatpush1.msra.mxu0 %v2792
  %2811 = vmatprep.subr.mxu0 0.0
  %2812 = vmatpush1.msra.mxu0 %v2793
  %2813 = vmatprep.subr.mxu0 0.0
  %2814 = vmatpush1.msra.mxu0 %v2794
  %2815 = vmatprep.subr.mxu0 0.0
  %2816 = vmatpush1.msra.mxu0 %v2795
  %2817 = vmatprep.subr.mxu0 0.0
  %2818 = vmatpush1.msra.mxu0 %v2796
  %2819 = vmatprep.subr.mxu0 0.0
  %2820 = vmatpush1.msra.mxu0 %v2797
  %2821 = vmatprep.subr.mxu0 0.0
  %2822 = vmatpush1.msra.mxu0 %v2798
  %2823 = vmatprep.subr.mxu0 0.0
  %2824 = vmatpush1.msra.mxu0 %v2799
  %2825 = vmatprep.subr.mxu0 0.0
  %2826 = vmatpush1.msra.mxu0 %v2800
  %2827 = vmatprep.subr.mxu0 0.0
  %2828 = vmatpush1.msra.mxu0 %v2801
  %2829 = vmatprep.subr.mxu0 0.0
  %2830 = vmatpush1.msra.mxu0 %v2802
  %2831 = vmatprep.subr.mxu0 0.0
  %2832 = vmatpush1.msra.mxu0 %v2803
  %2833 = vmatprep.subr.mxu0 0.0
  %2834 = vmatpush1.msra.mxu0 %v2804
  %2835 = vmatprep.subr.mxu0 0.0
  %2836 = vmatpush1.msra.mxu0 %v2805
  %2837 = vmatprep.subr.mxu0 0.0
  %2838 = vmatpush1.msra.mxu0 %v2806
  %2839 = vmatprep.subr.mxu0 0.0
  %2840 = vmatpush1.msra.mxu0 0.0
  %2841 = vmatprep.subr.mxu0 0.0
  %2842 = vmatpush1.msra.mxu0 0.0
  %2843 = vmatprep.subr.mxu0 0.0
  %2844 = vmatpush1.msra.mxu0 0.0
  %2845 = vmatprep.subr.mxu0 0.0
  %2846 = vmatpush1.msra.mxu0 0.0
  %2847 = vmatprep.subr.mxu0 0.0
  %2848 = vmatpush1.msra.mxu0 0.0
  %2849 = vmatprep.subr.mxu0 0.0
  %2850 = vmatpush1.msra.mxu0 0.0
  %2851 = vmatprep.subr.mxu0 0.0
  %2852 = vmatpush1.msra.mxu0 0.0
  %2853 = vmatprep.subr.mxu0 0.0
  %2854 = vmatpush1.msra.mxu0 0.0
  %2855 = vmatprep.subr.mxu0 0.0
  %2856 = vmatpush1.msra.mxu0 0.0
  %2857 = vmatprep.subr.mxu0 0.0
  %2858 = vmatpush1.msra.mxu0 0.0
  %2859 = vmatprep.subr.mxu0 0.0
  %2860 = vmatpush1.msra.mxu0 0.0
  %2861 = vmatprep.subr.mxu0 0.0
  %2862 = vmatpush1.msra.mxu0 0.0
  %2863 = vmatprep.subr.mxu0 0.0
  %2864 = vmatpush1.msra.mxu0 0.0
  %2865 = vmatprep.subr.mxu0 0.0
  %2866 = vmatpush1.msra.mxu0 0.0
  %2867 = vmatprep.subr.mxu0 0.0
  %2868 = vmatpush1.msra.mxu0 0.0
  %2869 = vmatprep.subr.mxu0 0.0
  %2870 = vmatpush1.msra.mxu0 0.0
  %2871 = vmatprep.mubr.f32.mxu0 0.0
  %2872 = vmatmul.mubr.f32.gmra.mrb[0].mxu0 %v2660
  %v2873 = vpop.f32.mrb[0].mxu0
  %v2874 = vadd.f32 0.0, %v2873
  %v2875 = vpop.f32.mrb[0].mxu0
  %2876 = vdwg.mxu0
  %2877 = vst.msk [vmem:[#allocation3 + $0x8] sm:$0xff] %vm2768, %v2874
  %v2878 = vld [vmem:[%s8 + $0x2] sm:$0x1]
  %v2879 = vlaneseq
  %v2880 = vshrl.u32 %v2879, 7
  %v2881 = vsub.s32 0, %v2880
  %v2882 = vrot.slane %v2878, %v2881
  %vm2883 = vcmp.eq.s32.totalorder %v40, %v2882
  %vm2884 = vcmp.eq.s32.totalorder %v41, %v2882
  %vm2885 = vcmp.eq.s32.totalorder %v42, %v2882
  %vm2886 = vcmp.eq.s32.totalorder %v43, %v2882
  %vm2887 = vcmp.eq.s32.totalorder %v44, %v2882
  %vm2888 = vcmp.eq.s32.totalorder %v45, %v2882
  %vm2889 = vcmp.eq.s32.totalorder %v46, %v2882
  %vm2890 = vcmp.eq.s32.totalorder %v47, %v2882
  %vm2891 = vcmp.eq.s32.totalorder %v48, %v2882
  %vm2892 = vcmp.eq.s32.totalorder %v49, %v2882
  %vm2893 = vcmp.eq.s32.totalorder %v50, %v2882
  %vm2894 = vcmp.eq.s32.totalorder %v51, %v2882
  %vm2895 = vcmp.eq.s32.totalorder %v52, %v2882
  %vm2896 = vcmp.eq.s32.totalorder %v53, %v2882
  %vm2897 = vcmp.eq.s32.totalorder %v54, %v2882
  %vm2898 = vcmp.eq.s32.totalorder %v55, %v2882
  %v2899 = vsel %vm2883, 1.0, 0.0
  %v2900 = vsel %vm2884, 1.0, 0.0
  %v2901 = vsel %vm2885, 1.0, 0.0
  %v2902 = vsel %vm2886, 1.0, 0.0
  %v2903 = vsel %vm2887, 1.0, 0.0
  %v2904 = vsel %vm2888, 1.0, 0.0
  %v2905 = vsel %vm2889, 1.0, 0.0
  %v2906 = vsel %vm2890, 1.0, 0.0
  %v2907 = vsel %vm2891, 1.0, 0.0
  %v2908 = vsel %vm2892, 1.0, 0.0
  %v2909 = vsel %vm2893, 1.0, 0.0
  %v2910 = vsel %vm2894, 1.0, 0.0
  %v2911 = vsel %vm2895, 1.0, 0.0
  %v2912 = vsel %vm2896, 1.0, 0.0
  %v2913 = vsel %vm2897, 1.0, 0.0
  %v2914 = vsel %vm2898, 1.0, 0.0
  %2915 = vmatprep.subr.mxu0 0.0
  %2916 = vmatpush1.msra.mxu0 %v2899
  %2917 = vmatprep.subr.mxu0 0.0
  %2918 = vmatpush1.msra.mxu0 %v2900
  %2919 = vmatprep.subr.mxu0 0.0
  %2920 = vmatpush1.msra.mxu0 %v2901
  %2921 = vmatprep.subr.mxu0 0.0
  %2922 = vmatpush1.msra.mxu0 %v2902
  %2923 = vmatprep.subr.mxu0 0.0
  %2924 = vmatpush1.msra.mxu0 %v2903
  %2925 = vmatprep.subr.mxu0 0.0
  %2926 = vmatpush1.msra.mxu0 %v2904
  %2927 = vmatprep.subr.mxu0 0.0
  %2928 = vmatpush1.msra.mxu0 %v2905
  %2929 = vmatprep.subr.mxu0 0.0
  %2930 = vmatpush1.msra.mxu0 %v2906
  %2931 = vmatprep.subr.mxu0 0.0
  %2932 = vmatpush1.msra.mxu0 %v2907
  %2933 = vmatprep.subr.mxu0 0.0
  %2934 = vmatpush1.msra.mxu0 %v2908
  %2935 = vmatprep.subr.mxu0 0.0
  %2936 = vmatpush1.msra.mxu0 %v2909
  %2937 = vmatprep.subr.mxu0 0.0
  %2938 = vmatpush1.msra.mxu0 %v2910
  %2939 = vmatprep.subr.mxu0 0.0
  %2940 = vmatpush1.msra.mxu0 %v2911
  %2941 = vmatprep.subr.mxu0 0.0
  %2942 = vmatpush1.msra.mxu0 %v2912
  %2943 = vmatprep.subr.mxu0 0.0
  %2944 = vmatpush1.msra.mxu0 %v2913
  %2945 = vmatprep.subr.mxu0 0.0
  %2946 = vmatpush1.msra.mxu0 %v2914
  %2947 = vmatprep.subr.mxu0 0.0
  %2948 = vmatpush1.msra.mxu0 0.0
  %2949 = vmatprep.subr.mxu0 0.0
  %2950 = vmatpush1.msra.mxu0 0.0
  %2951 = vmatprep.subr.mxu0 0.0
  %2952 = vmatpush1.msra.mxu0 0.0
  %2953 = vmatprep.subr.mxu0 0.0
  %2954 = vmatpush1.msra.mxu0 0.0
  %2955 = vmatprep.subr.mxu0 0.0
  %2956 = vmatpush1.msra.mxu0 0.0
  %2957 = vmatprep.subr.mxu0 0.0
  %2958 = vmatpush1.msra.mxu0 0.0
  %2959 = vmatprep.subr.mxu0 0.0
  %2960 = vmatpush1.msra.mxu0 0.0
  %2961 = vmatprep.subr.mxu0 0.0
  %2962 = vmatpush1.msra.mxu0 0.0
  %2963 = vmatprep.subr.mxu0 0.0
  %2964 = vmatpush1.msra.mxu0 0.0
  %2965 = vmatprep.subr.mxu0 0.0
  %2966 = vmatpush1.msra.mxu0 0.0
  %2967 = vmatprep.subr.mxu0 0.0
  %2968 = vmatpush1.msra.mxu0 0.0
  %2969 = vmatprep.subr.mxu0 0.0
  %2970 = vmatpush1.msra.mxu0 0.0
  %2971 = vmatprep.subr.mxu0 0.0
  %2972 = vmatpush1.msra.mxu0 0.0
  %2973 = vmatprep.subr.mxu0 0.0
  %2974 = vmatpush1.msra.mxu0 0.0
  %2975 = vmatprep.subr.mxu0 0.0
  %2976 = vmatpush1.msra.mxu0 0.0
  %2977 = vmatprep.subr.mxu0 0.0
  %2978 = vmatpush1.msra.mxu0 0.0
  %2979 = vmatprep.mubr.f32.mxu0 0.0
  %2980 = vmatmul.mubr.f32.gmra.mrb[0].mxu0 %v2660
  %v2981 = vpop.f32.mrb[0].mxu0
  %v2982 = vadd.f32 0.0, %v2981
  %v2983 = vpop.f32.mrb[0].mxu0
  %2984 = vdwg.mxu0
  %2985 = vst.msk [vmem:[#allocation3 + $0x10] sm:$0xff] %vm2768, %v2982
  %v2986 = vld [vmem:[%s8 + $0x3] sm:$0x1]
  %v2987 = vlaneseq
  %v2988 = vshrl.u32 %v2987, 7
  %v2989 = vsub.s32 0, %v2988
  %v2990 = vrot.slane %v2986, %v2989
  %vm2991 = vcmp.eq.s32.totalorder %v40, %v2990
  %vm2992 = vcmp.eq.s32.totalorder %v41, %v2990
  %vm2993 = vcmp.eq.s32.totalorder %v42, %v2990
  %vm2994 = vcmp.eq.s32.totalorder %v43, %v2990
  %vm2995 = vcmp.eq.s32.totalorder %v44, %v2990
  %vm2996 = vcmp.eq.s32.totalorder %v45, %v2990
  %vm2997 = vcmp.eq.s32.totalorder %v46, %v2990
  %vm2998 = vcmp.eq.s32.totalorder %v47, %v2990
  %vm2999 = vcmp.eq.s32.totalorder %v48, %v2990
  %vm3000 = vcmp.eq.s32.totalorder %v49, %v2990
  %vm3001 = vcmp.eq.s32.totalorder %v50, %v2990
  %vm3002 = vcmp.eq.s32.totalorder %v51, %v2990
  %vm3003 = vcmp.eq.s32.totalorder %v52, %v2990
  %vm3004 = vcmp.eq.s32.totalorder %v53, %v2990
  %vm3005 = vcmp.eq.s32.totalorder %v54, %v2990
  %vm3006 = vcmp.eq.s32.totalorder %v55, %v2990
  %v3007 = vsel %vm2991, 1.0, 0.0
  %v3008 = vsel %vm2992, 1.0, 0.0
  %v3009 = vsel %vm2993, 1.0, 0.0
  %v3010 = vsel %vm2994, 1.0, 0.0
  %v3011 = vsel %vm2995, 1.0, 0.0
  %v3012 = vsel %vm2996, 1.0, 0.0
  %v3013 = vsel %vm2997, 1.0, 0.0
  %v3014 = vsel %vm2998, 1.0, 0.0
  %v3015 = vsel %vm2999, 1.0, 0.0
  %v3016 = vsel %vm3000, 1.0, 0.0
  %v3017 = vsel %vm3001, 1.0, 0.0
  %v3018 = vsel %vm3002, 1.0, 0.0
  %v3019 = vsel %vm3003, 1.0, 0.0
  %v3020 = vsel %vm3004, 1.0, 0.0
  %v3021 = vsel %vm3005, 1.0, 0.0
  %v3022 = vsel %vm3006, 1.0, 0.0
  %3023 = vmatprep.subr.mxu0 0.0
  %3024 = vmatpush1.msra.mxu0 %v3007
  %3025 = vmatprep.subr.mxu0 0.0
  %3026 = vmatpush1.msra.mxu0 %v3008
  %3027 = vmatprep.subr.mxu0 0.0
  %3028 = vmatpush1.msra.mxu0 %v3009
  %3029 = vmatprep.subr.mxu0 0.0
  %3030 = vmatpush1.msra.mxu0 %v3010
  %3031 = vmatprep.subr.mxu0 0.0
  %3032 = vmatpush1.msra.mxu0 %v3011
  %3033 = vmatprep.subr.mxu0 0.0
  %3034 = vmatpush1.msra.mxu0 %v3012
  %3035 = vmatprep.subr.mxu0 0.0
  %3036 = vmatpush1.msra.mxu0 %v3013
  %3037 = vmatprep.subr.mxu0 0.0
  %3038 = vmatpush1.msra.mxu0 %v3014
  %3039 = vmatprep.subr.mxu0 0.0
  %3040 = vmatpush1.msra.mxu0 %v3015
  %3041 = vmatprep.subr.mxu0 0.0
  %3042 = vmatpush1.msra.mxu0 %v3016
  %3043 = vmatprep.subr.mxu0 0.0
  %3044 = vmatpush1.msra.mxu0 %v3017
  %3045 = vmatprep.subr.mxu0 0.0
  %3046 = vmatpush1.msra.mxu0 %v3018
  %3047 = vmatprep.subr.mxu0 0.0
  %3048 = vmatpush1.msra.mxu0 %v3019
  %3049 = vmatprep.subr.mxu0 0.0
  %3050 = vmatpush1.msra.mxu0 %v3020
  %3051 = vmatprep.subr.mxu0 0.0
  %3052 = vmatpush1.msra.mxu0 %v3021
  %3053 = vmatprep.subr.mxu0 0.0
  %3054 = vmatpush1.msra.mxu0 %v3022
  %3055 = vmatprep.subr.mxu0 0.0
  %3056 = vmatpush1.msra.mxu0 0.0
  %3057 = vmatprep.subr.mxu0 0.0
  %3058 = vmatpush1.msra.mxu0 0.0
  %3059 = vmatprep.subr.mxu0 0.0
  %3060 = vmatpush1.msra.mxu0 0.0
  %3061 = vmatprep.subr.mxu0 0.0
  %3062 = vmatpush1.msra.mxu0 0.0
  %3063 = vmatprep.subr.mxu0 0.0
  %3064 = vmatpush1.msra.mxu0 0.0
  %3065 = vmatprep.subr.mxu0 0.0
  %3066 = vmatpush1.msra.mxu0 0.0
  %3067 = vmatprep.subr.mxu0 0.0
  %3068 = vmatpush1.msra.mxu0 0.0
  %3069 = vmatprep.subr.mxu0 0.0
  %3070 = vmatpush1.msra.mxu0 0.0
  %3071 = vmatprep.subr.mxu0 0.0
  %3072 = vmatpush1.msra.mxu0 0.0
  %3073 = vmatprep.subr.mxu0 0.0
  %3074 = vmatpush1.msra.mxu0 0.0
  %3075 = vmatprep.subr.mxu0 0.0
  %3076 = vmatpush1.msra.mxu0 0.0
  %3077 = vmatprep.subr.mxu0 0.0
  %3078 = vmatpush1.msra.mxu0 0.0
  %3079 = vmatprep.subr.mxu0 0.0
  %3080 = vmatpush1.msra.mxu0 0.0
  %3081 = vmatprep.subr.mxu0 0.0
  %3082 = vmatpush1.msra.mxu0 0.0
  %3083 = vmatprep.subr.mxu0 0.0
  %3084 = vmatpush1.msra.mxu0 0.0
  %3085 = vmatprep.subr.mxu0 0.0
  %3086 = vmatpush1.msra.mxu0 0.0
  %3087 = vmatprep.mubr.f32.mxu0 0.0
  %3088 = vmatmul.mubr.f32.gmra.mrb[0].mxu0 %v2660
  %v3089 = vpop.f32.mrb[0].mxu0
  %v3090 = vadd.f32 0.0, %v3089
  %v3091 = vpop.f32.mrb[0].mxu0
  %3092 = vdwg.mxu0
  %3093 = vst.msk [vmem:[#allocation3 + $0x18] sm:$0xff] %vm2768, %v3090
  %v3094 = vld [vmem:[%s8 + $0x4] sm:$0x1]
  %v3095 = vlaneseq
  %v3096 = vshrl.u32 %v3095, 7
  %v3097 = vsub.s32 0, %v3096
  %v3098 = vrot.slane %v3094, %v3097
  %vm3099 = vcmp.eq.s32.totalorder %v40, %v3098
  %vm3100 = vcmp.eq.s32.totalorder %v41, %v3098
  %vm3101 = vcmp.eq.s32.totalorder %v42, %v3098
  %vm3102 = vcmp.eq.s32.totalorder %v43, %v3098
  %vm3103 = vcmp.eq.s32.totalorder %v44, %v3098
  %vm3104 = vcmp.eq.s32.totalorder %v45, %v3098
  %vm3105 = vcmp.eq.s32.totalorder %v46, %v3098
  %vm3106 = vcmp.eq.s32.totalorder %v47, %v3098
  %vm3107 = vcmp.eq.s32.totalorder %v48, %v3098
  %vm3108 = vcmp.eq.s32.totalorder %v49, %v3098
  %vm3109 = vcmp.eq.s32.totalorder %v50, %v3098
  %vm3110 = vcmp.eq.s32.totalorder %v51, %v3098
  %vm3111 = vcmp.eq.s32.totalorder %v52, %v3098
  %vm3112 = vcmp.eq.s32.totalorder %v53, %v3098
  %vm3113 = vcmp.eq.s32.totalorder %v54, %v3098
  %vm3114 = vcmp.eq.s32.totalorder %v55, %v3098
  %v3115 = vsel %vm3099, 1.0, 0.0
  %v3116 = vsel %vm3100, 1.0, 0.0
  %v3117 = vsel %vm3101, 1.0, 0.0
  %v3118 = vsel %vm3102, 1.0, 0.0
  %v3119 = vsel %vm3103, 1.0, 0.0
  %v3120 = vsel %vm3104, 1.0, 0.0
  %v3121 = vsel %vm3105, 1.0, 0.0
  %v3122 = vsel %vm3106, 1.0, 0.0
  %v3123 = vsel %vm3107, 1.0, 0.0
  %v3124 = vsel %vm3108, 1.0, 0.0
  %v3125 = vsel %vm3109, 1.0, 0.0
  %v3126 = vsel %vm3110, 1.0, 0.0
  %v3127 = vsel %vm3111, 1.0, 0.0
  %v3128 = vsel %vm3112, 1.0, 0.0
  %v3129 = vsel %vm3113, 1.0, 0.0
  %v3130 = vsel %vm3114, 1.0, 0.0
  %3131 = vmatprep.subr.mxu0 0.0
  %3132 = vmatpush1.msra.mxu0 %v3115
  %3133 = vmatprep.subr.mxu0 0.0
  %3134 = vmatpush1.msra.mxu0 %v3116
  %3135 = vmatprep.subr.mxu0 0.0
  %3136 = vmatpush1.msra.mxu0 %v3117
  %3137 = vmatprep.subr.mxu0 0.0
  %3138 = vmatpush1.msra.mxu0 %v3118
  %3139 = vmatprep.subr.mxu0 0.0
  %3140 = vmatpush1.msra.mxu0 %v3119
  %3141 = vmatprep.subr.mxu0 0.0
  %3142 = vmatpush1.msra.mxu0 %v3120
  %3143 = vmatprep.subr.mxu0 0.0
  %3144 = vmatpush1.msra.mxu0 %v3121
  %3145 = vmatprep.subr.mxu0 0.0
  %3146 = vmatpush1.msra.mxu0 %v3122
  %3147 = vmatprep.subr.mxu0 0.0
  %3148 = vmatpush1.msra.mxu0 %v3123
  %3149 = vmatprep.subr.mxu0 0.0
  %3150 = vmatpush1.msra.mxu0 %v3124
  %3151 = vmatprep.subr.mxu0 0.0
  %3152 = vmatpush1.msra.mxu0 %v3125
  %3153 = vmatprep.subr.mxu0 0.0
  %3154 = vmatpush1.msra.mxu0 %v3126
  %3155 = vmatprep.subr.mxu0 0.0
  %3156 = vmatpush1.msra.mxu0 %v3127
  %3157 = vmatprep.subr.mxu0 0.0
  %3158 = vmatpush1.msra.mxu0 %v3128
  %3159 = vmatprep.subr.mxu0 0.0
  %3160 = vmatpush1.msra.mxu0 %v3129
  %3161 = vmatprep.subr.mxu0 0.0
  %3162 = vmatpush1.msra.mxu0 %v3130
  %3163 = vmatprep.subr.mxu0 0.0
  %3164 = vmatpush1.msra.mxu0 0.0
  %3165 = vmatprep.subr.mxu0 0.0
  %3166 = vmatpush1.msra.mxu0 0.0
  %3167 = vmatprep.subr.mxu0 0.0
  %3168 = vmatpush1.msra.mxu0 0.0
  %3169 = vmatprep.subr.mxu0 0.0
  %3170 = vmatpush1.msra.mxu0 0.0
  %3171 = vmatprep.subr.mxu0 0.0
  %3172 = vmatpush1.msra.mxu0 0.0
  %3173 = vmatprep.subr.mxu0 0.0
  %3174 = vmatpush1.msra.mxu0 0.0
  %3175 = vmatprep.subr.mxu0 0.0
  %3176 = vmatpush1.msra.mxu0 0.0
  %3177 = vmatprep.subr.mxu0 0.0
  %3178 = vmatpush1.msra.mxu0 0.0
  %3179 = vmatprep.subr.mxu0 0.0
  %3180 = vmatpush1.msra.mxu0 0.0
  %3181 = vmatprep.subr.mxu0 0.0
  %3182 = vmatpush1.msra.mxu0 0.0
  %3183 = vmatprep.subr.mxu0 0.0
  %3184 = vmatpush1.msra.mxu0 0.0
  %3185 = vmatprep.subr.mxu0 0.0
  %3186 = vmatpush1.msra.mxu0 0.0
  %3187 = vmatprep.subr.mxu0 0.0
  %3188 = vmatpush1.msra.mxu0 0.0
  %3189 = vmatprep.subr.mxu0 0.0
  %3190 = vmatpush1.msra.mxu0 0.0
  %3191 = vmatprep.subr.mxu0 0.0
  %3192 = vmatpush1.msra.mxu0 0.0
  %3193 = vmatprep.subr.mxu0 0.0
  %3194 = vmatpush1.msra.mxu0 0.0
  %3195 = vmatprep.mubr.f32.mxu0 0.0
  %3196 = vmatmul.mubr.f32.gmra.mrb[0].mxu0 %v2660
  %v3197 = vpop.f32.mrb[0].mxu0
  %v3198 = vadd.f32 0.0, %v3197
  %v3199 = vpop.f32.mrb[0].mxu0
  %3200 = vdwg.mxu0
  %3201 = vst.msk [vmem:[#allocation3 + $0x20] sm:$0xff] %vm2768, %v3198
  %v3202 = vld [vmem:[%s8 + $0x5] sm:$0x1]
  %v3203 = vlaneseq
  %v3204 = vshrl.u32 %v3203, 7
  %v3205 = vsub.s32 0, %v3204
  %v3206 = vrot.slane %v3202, %v3205
  %vm3207 = vcmp.eq.s32.totalorder %v40, %v3206
  %vm3208 = vcmp.eq.s32.totalorder %v41, %v3206
  %vm3209 = vcmp.eq.s32.totalorder %v42, %v3206
  %vm3210 = vcmp.eq.s32.totalorder %v43, %v3206
  %vm3211 = vcmp.eq.s32.totalorder %v44, %v3206
  %vm3212 = vcmp.eq.s32.totalorder %v45, %v3206
  %vm3213 = vcmp.eq.s32.totalorder %v46, %v3206
  %vm3214 = vcmp.eq.s32.totalorder %v47, %v3206
  %vm3215 = vcmp.eq.s32.totalorder %v48, %v3206
  %vm3216 = vcmp.eq.s32.totalorder %v49, %v3206
  %vm3217 = vcmp.eq.s32.totalorder %v50, %v3206
  %vm3218 = vcmp.eq.s32.totalorder %v51, %v3206
  %vm3219 = vcmp.eq.s32.totalorder %v52, %v3206
  %vm3220 = vcmp.eq.s32.totalorder %v53, %v3206
  %vm3221 = vcmp.eq.s32.totalorder %v54, %v3206
  %vm3222 = vcmp.eq.s32.totalorder %v55, %v3206
  %v3223 = vsel %vm3207, 1.0, 0.0
  %v3224 = vsel %vm3208, 1.0, 0.0
  %v3225 = vsel %vm3209, 1.0, 0.0
  %v3226 = vsel %vm3210, 1.0, 0.0
  %v3227 = vsel %vm3211, 1.0, 0.0
  %v3228 = vsel %vm3212, 1.0, 0.0
  %v3229 = vsel %vm3213, 1.0, 0.0
  %v3230 = vsel %vm3214, 1.0, 0.0
  %v3231 = vsel %vm3215, 1.0, 0.0
  %v3232 = vsel %vm3216, 1.0, 0.0
  %v3233 = vsel %vm3217, 1.0, 0.0
  %v3234 = vsel %vm3218, 1.0, 0.0
  %v3235 = vsel %vm3219, 1.0, 0.0
  %v3236 = vsel %vm3220, 1.0, 0.0
  %v3237 = vsel %vm3221, 1.0, 0.0
  %v3238 = vsel %vm3222, 1.0, 0.0
  %3239 = vmatprep.subr.mxu0 0.0
  %3240 = vmatpush1.msra.mxu0 %v3223
  %3241 = vmatprep.subr.mxu0 0.0
  %3242 = vmatpush1.msra.mxu0 %v3224
  %3243 = vmatprep.subr.mxu0 0.0
  %3244 = vmatpush1.msra.mxu0 %v3225
  %3245 = vmatprep.subr.mxu0 0.0
  %3246 = vmatpush1.msra.mxu0 %v3226
  %3247 = vmatprep.subr.mxu0 0.0
  %3248 = vmatpush1.msra.mxu0 %v3227
  %3249 = vmatprep.subr.mxu0 0.0
  %3250 = vmatpush1.msra.mxu0 %v3228
  %3251 = vmatprep.subr.mxu0 0.0
  %3252 = vmatpush1.msra.mxu0 %v3229
  %3253 = vmatprep.subr.mxu0 0.0
  %3254 = vmatpush1.msra.mxu0 %v3230
  %3255 = vmatprep.subr.mxu0 0.0
  %3256 = vmatpush1.msra.mxu0 %v3231
  %3257 = vmatprep.subr.mxu0 0.0
  %3258 = vmatpush1.msra.mxu0 %v3232
  %3259 = vmatprep.subr.mxu0 0.0
  %3260 = vmatpush1.msra.mxu0 %v3233
  %3261 = vmatprep.subr.mxu0 0.0
  %3262 = vmatpush1.msra.mxu0 %v3234
  %3263 = vmatprep.subr.mxu0 0.0
  %3264 = vmatpush1.msra.mxu0 %v3235
  %3265 = vmatprep.subr.mxu0 0.0
  %3266 = vmatpush1.msra.mxu0 %v3236
  %3267 = vmatprep.subr.mxu0 0.0
  %3268 = vmatpush1.msra.mxu0 %v3237
  %3269 = vmatprep.subr.mxu0 0.0
  %3270 = vmatpush1.msra.mxu0 %v3238
  %3271 = vmatprep.subr.mxu0 0.0
  %3272 = vmatpush1.msra.mxu0 0.0
  %3273 = vmatprep.subr.mxu0 0.0
  %3274 = vmatpush1.msra.mxu0 0.0
  %3275 = vmatprep.subr.mxu0 0.0
  %3276 = vmatpush1.msra.mxu0 0.0
  %3277 = vmatprep.subr.mxu0 0.0
  %3278 = vmatpush1.msra.mxu0 0.0
  %3279 = vmatprep.subr.mxu0 0.0
  %3280 = vmatpush1.msra.mxu0 0.0
  %3281 = vmatprep.subr.mxu0 0.0
  %3282 = vmatpush1.msra.mxu0 0.0
  %3283 = vmatprep.subr.mxu0 0.0
  %3284 = vmatpush1.msra.mxu0 0.0
  %3285 = vmatprep.subr.mxu0 0.0
  %3286 = vmatpush1.msra.mxu0 0.0
  %3287 = vmatprep.subr.mxu0 0.0
  %3288 = vmatpush1.msra.mxu0 0.0
  %3289 = vmatprep.subr.mxu0 0.0
  %3290 = vmatpush1.msra.mxu0 0.0
  %3291 = vmatprep.subr.mxu0 0.0
  %3292 = vmatpush1.msra.mxu0 0.0
  %3293 = vmatprep.subr.mxu0 0.0
  %3294 = vmatpush1.msra.mxu0 0.0
  %3295 = vmatprep.subr.mxu0 0.0
  %3296 = vmatpush1.msra.mxu0 0.0
  %3297 = vmatprep.subr.mxu0 0.0
  %3298 = vmatpush1.msra.mxu0 0.0
  %3299 = vmatprep.subr.mxu0 0.0
  %3300 = vmatpush1.msra.mxu0 0.0
  %3301 = vmatprep.subr.mxu0 0.0
  %3302 = vmatpush1.msra.mxu0 0.0
  %3303 = vmatprep.mubr.f32.mxu0 0.0
  %3304 = vmatmul.mubr.f32.gmra.mrb[0].mxu0 %v2660
  %v3305 = vpop.f32.mrb[0].mxu0
  %v3306 = vadd.f32 0.0, %v3305
  %v3307 = vpop.f32.mrb[0].mxu0
  %3308 = vdwg.mxu0
  %3309 = vst.msk [vmem:[#allocation3 + $0x28] sm:$0xff] %vm2768, %v3306
  %v3310 = vld [vmem:[%s8 + $0x6] sm:$0x1]
  %v3311 = vlaneseq
  %v3312 = vshrl.u32 %v3311, 7
  %v3313 = vsub.s32 0, %v3312
  %v3314 = vrot.slane %v3310, %v3313
  %vm3315 = vcmp.eq.s32.totalorder %v40, %v3314
  %vm3316 = vcmp.eq.s32.totalorder %v41, %v3314
  %vm3317 = vcmp.eq.s32.totalorder %v42, %v3314
  %vm3318 = vcmp.eq.s32.totalorder %v43, %v3314
  %vm3319 = vcmp.eq.s32.totalorder %v44, %v3314
  %vm3320 = vcmp.eq.s32.totalorder %v45, %v3314
  %vm3321 = vcmp.eq.s32.totalorder %v46, %v3314
  %vm3322 = vcmp.eq.s32.totalorder %v47, %v3314
  %vm3323 = vcmp.eq.s32.totalorder %v48, %v3314
  %vm3324 = vcmp.eq.s32.totalorder %v49, %v3314
  %vm3325 = vcmp.eq.s32.totalorder %v50, %v3314
  %vm3326 = vcmp.eq.s32.totalorder %v51, %v3314
  %vm3327 = vcmp.eq.s32.totalorder %v52, %v3314
  %vm3328 = vcmp.eq.s32.totalorder %v53, %v3314
  %vm3329 = vcmp.eq.s32.totalorder %v54, %v3314
  %vm3330 = vcmp.eq.s32.totalorder %v55, %v3314
  %v3331 = vsel %vm3315, 1.0, 0.0
  %v3332 = vsel %vm3316, 1.0, 0.0
  %v3333 = vsel %vm3317, 1.0, 0.0
  %v3334 = vsel %vm3318, 1.0, 0.0
  %v3335 = vsel %vm3319, 1.0, 0.0
  %v3336 = vsel %vm3320, 1.0, 0.0
  %v3337 = vsel %vm3321, 1.0, 0.0
  %v3338 = vsel %vm3322, 1.0, 0.0
  %v3339 = vsel %vm3323, 1.0, 0.0
  %v3340 = vsel %vm3324, 1.0, 0.0
  %v3341 = vsel %vm3325, 1.0, 0.0
  %v3342 = vsel %vm3326, 1.0, 0.0
  %v3343 = vsel %vm3327, 1.0, 0.0
  %v3344 = vsel %vm3328, 1.0, 0.0
  %v3345 = vsel %vm3329, 1.0, 0.0
  %v3346 = vsel %vm3330, 1.0, 0.0
  %3347 = vmatprep.subr.mxu0 0.0
  %3348 = vmatpush1.msra.mxu0 %v3331
  %3349 = vmatprep.subr.mxu0 0.0
  %3350 = vmatpush1.msra.mxu0 %v3332
  %3351 = vmatprep.subr.mxu0 0.0
  %3352 = vmatpush1.msra.mxu0 %v3333
  %3353 = vmatprep.subr.mxu0 0.0
  %3354 = vmatpush1.msra.mxu0 %v3334
  %3355 = vmatprep.subr.mxu0 0.0
  %3356 = vmatpush1.msra.mxu0 %v3335
  %3357 = vmatprep.subr.mxu0 0.0
  %3358 = vmatpush1.msra.mxu0 %v3336
  %3359 = vmatprep.subr.mxu0 0.0
  %3360 = vmatpush1.msra.mxu0 %v3337
  %3361 = vmatprep.subr.mxu0 0.0
  %3362 = vmatpush1.msra.mxu0 %v3338
  %3363 = vmatprep.subr.mxu0 0.0
  %3364 = vmatpush1.msra.mxu0 %v3339
  %3365 = vmatprep.subr.mxu0 0.0
  %3366 = vmatpush1.msra.mxu0 %v3340
  %3367 = vmatprep.subr.mxu0 0.0
  %3368 = vmatpush1.msra.mxu0 %v3341
  %3369 = vmatprep.subr.mxu0 0.0
  %3370 = vmatpush1.msra.mxu0 %v3342
  %3371 = vmatprep.subr.mxu0 0.0
  %3372 = vmatpush1.msra.mxu0 %v3343
  %3373 = vmatprep.subr.mxu0 0.0
  %3374 = vmatpush1.msra.mxu0 %v3344
  %3375 = vmatprep.subr.mxu0 0.0
  %3376 = vmatpush1.msra.mxu0 %v3345
  %3377 = vmatprep.subr.mxu0 0.0
  %3378 = vmatpush1.msra.mxu0 %v3346
  %3379 = vmatprep.subr.mxu0 0.0
  %3380 = vmatpush1.msra.mxu0 0.0
  %3381 = vmatprep.subr.mxu0 0.0
  %3382 = vmatpush1.msra.mxu0 0.0
  %3383 = vmatprep.subr.mxu0 0.0
  %3384 = vmatpush1.msra.mxu0 0.0
  %3385 = vmatprep.subr.mxu0 0.0
  %3386 = vmatpush1.msra.mxu0 0.0
  %3387 = vmatprep.subr.mxu0 0.0
  %3388 = vmatpush1.msra.mxu0 0.0
  %3389 = vmatprep.subr.mxu0 0.0
  %3390 = vmatpush1.msra.mxu0 0.0
  %3391 = vmatprep.subr.mxu0 0.0
  %3392 = vmatpush1.msra.mxu0 0.0
  %3393 = vmatprep.subr.mxu0 0.0
  %3394 = vmatpush1.msra.mxu0 0.0
  %3395 = vmatprep.subr.mxu0 0.0
  %3396 = vmatpush1.msra.mxu0 0.0
  %3397 = vmatprep.subr.mxu0 0.0
  %3398 = vmatpush1.msra.mxu0 0.0
  %3399 = vmatprep.subr.mxu0 0.0
  %3400 = vmatpush1.msra.mxu0 0.0
  %3401 = vmatprep.subr.mxu0 0.0
  %3402 = vmatpush1.msra.mxu0 0.0
  %3403 = vmatprep.subr.mxu0 0.0
  %3404 = vmatpush1.msra.mxu0 0.0
  %3405 = vmatprep.subr.mxu0 0.0
  %3406 = vmatpush1.msra.mxu0 0.0
  %3407 = vmatprep.subr.mxu0 0.0
  %3408 = vmatpush1.msra.mxu0 0.0
  %3409 = vmatprep.subr.mxu0 0.0
  %3410 = vmatpush1.msra.mxu0 0.0
  %3411 = vmatprep.mubr.f32.mxu0 0.0
  %3412 = vmatmul.mubr.f32.gmra.mrb[0].mxu0 %v2660
  %v3413 = vpop.f32.mrb[0].mxu0
  %v3414 = vadd.f32 0.0, %v3413
  %v3415 = vpop.f32.mrb[0].mxu0
  %3416 = vdwg.mxu0
  %3417 = vst.msk [vmem:[#allocation3 + $0x30] sm:$0xff] %vm2768, %v3414
  %v3418 = vld [vmem:[%s8 + $0x7] sm:$0x1]
  %v3419 = vlaneseq
  %v3420 = vshrl.u32 %v3419, 7
  %v3421 = vsub.s32 0, %v3420
  %v3422 = vrot.slane %v3418, %v3421
  %vm3423 = vcmp.eq.s32.totalorder %v40, %v3422
  %vm3424 = vcmp.eq.s32.totalorder %v41, %v3422
  %vm3425 = vcmp.eq.s32.totalorder %v42, %v3422
  %vm3426 = vcmp.eq.s32.totalorder %v43, %v3422
  %vm3427 = vcmp.eq.s32.totalorder %v44, %v3422
  %vm3428 = vcmp.eq.s32.totalorder %v45, %v3422
  %vm3429 = vcmp.eq.s32.totalorder %v46, %v3422
  %vm3430 = vcmp.eq.s32.totalorder %v47, %v3422
  %vm3431 = vcmp.eq.s32.totalorder %v48, %v3422
  %vm3432 = vcmp.eq.s32.totalorder %v49, %v3422
  %vm3433 = vcmp.eq.s32.totalorder %v50, %v3422
  %vm3434 = vcmp.eq.s32.totalorder %v51, %v3422
  %vm3435 = vcmp.eq.s32.totalorder %v52, %v3422
  %vm3436 = vcmp.eq.s32.totalorder %v53, %v3422
  %vm3437 = vcmp.eq.s32.totalorder %v54, %v3422
  %vm3438 = vcmp.eq.s32.totalorder %v55, %v3422
  %v3439 = vsel %vm3423, 1.0, 0.0
  %v3440 = vsel %vm3424, 1.0, 0.0
  %v3441 = vsel %vm3425, 1.0, 0.0
  %v3442 = vsel %vm3426, 1.0, 0.0
  %v3443 = vsel %vm3427, 1.0, 0.0
  %v3444 = vsel %vm3428, 1.0, 0.0
  %v3445 = vsel %vm3429, 1.0, 0.0
  %v3446 = vsel %vm3430, 1.0, 0.0
  %v3447 = vsel %vm3431, 1.0, 0.0
  %v3448 = vsel %vm3432, 1.0, 0.0
  %v3449 = vsel %vm3433, 1.0, 0.0
  %v3450 = vsel %vm3434, 1.0, 0.0
  %v3451 = vsel %vm3435, 1.0, 0.0
  %v3452 = vsel %vm3436, 1.0, 0.0
  %v3453 = vsel %vm3437, 1.0, 0.0
  %v3454 = vsel %vm3438, 1.0, 0.0
  %3455 = vmatprep.subr.mxu0 0.0
  %3456 = vmatpush1.msra.mxu0 %v3439
  %3457 = vmatprep.subr.mxu0 0.0
  %3458 = vmatpush1.msra.mxu0 %v3440
  %3459 = vmatprep.subr.mxu0 0.0
  %3460 = vmatpush1.msra.mxu0 %v3441
  %3461 = vmatprep.subr.mxu0 0.0
  %3462 = vmatpush1.msra.mxu0 %v3442
  %3463 = vmatprep.subr.mxu0 0.0
  %3464 = vmatpush1.msra.mxu0 %v3443
  %3465 = vmatprep.subr.mxu0 0.0
  %3466 = vmatpush1.msra.mxu0 %v3444
  %3467 = vmatprep.subr.mxu0 0.0
  %3468 = vmatpush1.msra.mxu0 %v3445
  %3469 = vmatprep.subr.mxu0 0.0
  %3470 = vmatpush1.msra.mxu0 %v3446
  %3471 = vmatprep.subr.mxu0 0.0
  %3472 = vmatpush1.msra.mxu0 %v3447
  %3473 = vmatprep.subr.mxu0 0.0
  %3474 = vmatpush1.msra.mxu0 %v3448
  %3475 = vmatprep.subr.mxu0 0.0
  %3476 = vmatpush1.msra.mxu0 %v3449
  %3477 = vmatprep.subr.mxu0 0.0
  %3478 = vmatpush1.msra.mxu0 %v3450
  %3479 = vmatprep.subr.mxu0 0.0
  %3480 = vmatpush1.msra.mxu0 %v3451
  %3481 = vmatprep.subr.mxu0 0.0
  %3482 = vmatpush1.msra.mxu0 %v3452
  %3483 = vmatprep.subr.mxu0 0.0
  %3484 = vmatpush1.msra.mxu0 %v3453
  %3485 = vmatprep.subr.mxu0 0.0
  %3486 = vmatpush1.msra.mxu0 %v3454
  %3487 = vmatprep.subr.mxu0 0.0
  %3488 = vmatpush1.msra.mxu0 0.0
  %3489 = vmatprep.subr.mxu0 0.0
  %3490 = vmatpush1.msra.mxu0 0.0
  %3491 = vmatprep.subr.mxu0 0.0
  %3492 = vmatpush1.msra.mxu0 0.0
  %3493 = vmatprep.subr.mxu0 0.0
  %3494 = vmatpush1.msra.mxu0 0.0
  %3495 = vmatprep.subr.mxu0 0.0
  %3496 = vmatpush1.msra.mxu0 0.0
  %3497 = vmatprep.subr.mxu0 0.0
  %3498 = vmatpush1.msra.mxu0 0.0
  %3499 = vmatprep.subr.mxu0 0.0
  %3500 = vmatpush1.msra.mxu0 0.0
  %3501 = vmatprep.subr.mxu0 0.0
  %3502 = vmatpush1.msra.mxu0 0.0
  %3503 = vmatprep.subr.mxu0 0.0
  %3504 = vmatpush1.msra.mxu0 0.0
  %3505 = vmatprep.subr.mxu0 0.0
  %3506 = vmatpush1.msra.mxu0 0.0
  %3507 = vmatprep.subr.mxu0 0.0
  %3508 = vmatpush1.msra.mxu0 0.0
  %3509 = vmatprep.subr.mxu0 0.0
  %3510 = vmatpush1.msra.mxu0 0.0
  %3511 = vmatprep.subr.mxu0 0.0
  %3512 = vmatpush1.msra.mxu0 0.0
  %3513 = vmatprep.subr.mxu0 0.0
  %3514 = vmatpush1.msra.mxu0 0.0
  %3515 = vmatprep.subr.mxu0 0.0
  %3516 = vmatpush1.msra.mxu0 0.0
  %3517 = vmatprep.subr.mxu0 0.0
  %3518 = vmatpush1.msra.mxu0 0.0
  %3519 = vmatprep.mubr.f32.mxu0 0.0
  %3520 = vmatmul.mubr.f32.gmra.mrb[0].mxu0 %v2660
  %v3521 = vpop.f32.mrb[0].mxu0
  %v3522 = vadd.f32 0.0, %v3521
  %v3523 = vpop.f32.mrb[0].mxu0
  %3524 = vdwg.mxu0
  %3525 = vst.msk [vmem:[#allocation3 + $0x38] sm:$0xff] %vm2768, %v3522
  %v3526 = vld [vmem:[%s8 + $0x8] sm:$0x1]
  %v3527 = vlaneseq
  %v3528 = vshrl.u32 %v3527, 7
  %v3529 = vsub.s32 0, %v3528
  %v3530 = vrot.slane %v3526, %v3529
  %vm3531 = vcmp.eq.s32.totalorder %v40, %v3530
  %vm3532 = vcmp.eq.s32.totalorder %v41, %v3530
  %vm3533 = vcmp.eq.s32.totalorder %v42, %v3530
  %vm3534 = vcmp.eq.s32.totalorder %v43, %v3530
  %vm3535 = vcmp.eq.s32.totalorder %v44, %v3530
  %vm3536 = vcmp.eq.s32.totalorder %v45, %v3530
  %vm3537 = vcmp.eq.s32.totalorder %v46, %v3530
  %vm3538 = vcmp.eq.s32.totalorder %v47, %v3530
  %vm3539 = vcmp.eq.s32.totalorder %v48, %v3530
  %vm3540 = vcmp.eq.s32.totalorder %v49, %v3530
  %vm3541 = vcmp.eq.s32.totalorder %v50, %v3530
  %vm3542 = vcmp.eq.s32.totalorder %v51, %v3530
  %vm3543 = vcmp.eq.s32.totalorder %v52, %v3530
  %vm3544 = vcmp.eq.s32.totalorder %v53, %v3530
  %vm3545 = vcmp.eq.s32.totalorder %v54, %v3530
  %vm3546 = vcmp.eq.s32.totalorder %v55, %v3530
  %v3547 = vsel %vm3531, 1.0, 0.0
  %v3548 = vsel %vm3532, 1.0, 0.0
  %v3549 = vsel %vm3533, 1.0, 0.0
  %v3550 = vsel %vm3534, 1.0, 0.0
  %v3551 = vsel %vm3535, 1.0, 0.0
  %v3552 = vsel %vm3536, 1.0, 0.0
  %v3553 = vsel %vm3537, 1.0, 0.0
  %v3554 = vsel %vm3538, 1.0, 0.0
  %v3555 = vsel %vm3539, 1.0, 0.0
  %v3556 = vsel %vm3540, 1.0, 0.0
  %v3557 = vsel %vm3541, 1.0, 0.0
  %v3558 = vsel %vm3542, 1.0, 0.0
  %v3559 = vsel %vm3543, 1.0, 0.0
  %v3560 = vsel %vm3544, 1.0, 0.0
  %v3561 = vsel %vm3545, 1.0, 0.0
  %v3562 = vsel %vm3546, 1.0, 0.0
  %3563 = vmatprep.subr.mxu0 0.0
  %3564 = vmatpush1.msra.mxu0 %v3547
  %3565 = vmatprep.subr.mxu0 0.0
  %3566 = vmatpush1.msra.mxu0 %v3548
  %3567 = vmatprep.subr.mxu0 0.0
  %3568 = vmatpush1.msra.mxu0 %v3549
  %3569 = vmatprep.subr.mxu0 0.0
  %3570 = vmatpush1.msra.mxu0 %v3550
  %3571 = vmatprep.subr.mxu0 0.0
  %3572 = vmatpush1.msra.mxu0 %v3551
  %3573 = vmatprep.subr.mxu0 0.0
  %3574 = vmatpush1.msra.mxu0 %v3552
  %3575 = vmatprep.subr.mxu0 0.0
  %3576 = vmatpush1.msra.mxu0 %v3553
  %3577 = vmatprep.subr.mxu0 0.0
  %3578 = vmatpush1.msra.mxu0 %v3554
  %3579 = vmatprep.subr.mxu0 0.0
  %3580 = vmatpush1.msra.mxu0 %v3555
  %3581 = vmatprep.subr.mxu0 0.0
  %3582 = vmatpush1.msra.mxu0 %v3556
  %3583 = vmatprep.subr.mxu0 0.0
  %3584 = vmatpush1.msra.mxu0 %v3557
  %3585 = vmatprep.subr.mxu0 0.0
  %3586 = vmatpush1.msra.mxu0 %v3558
  %3587 = vmatprep.subr.mxu0 0.0
  %3588 = vmatpush1.msra.mxu0 %v3559
  %3589 = vmatprep.subr.mxu0 0.0
  %3590 = vmatpush1.msra.mxu0 %v3560
  %3591 = vmatprep.subr.mxu0 0.0
  %3592 = vmatpush1.msra.mxu0 %v3561
  %3593 = vmatprep.subr.mxu0 0.0
  %3594 = vmatpush1.msra.mxu0 %v3562
  %3595 = vmatprep.subr.mxu0 0.0
  %3596 = vmatpush1.msra.mxu0 0.0
  %3597 = vmatprep.subr.mxu0 0.0
  %3598 = vmatpush1.msra.mxu0 0.0
  %3599 = vmatprep.subr.mxu0 0.0
  %3600 = vmatpush1.msra.mxu0 0.0
  %3601 = vmatprep.subr.mxu0 0.0
  %3602 = vmatpush1.msra.mxu0 0.0
  %3603 = vmatprep.subr.mxu0 0.0
  %3604 = vmatpush1.msra.mxu0 0.0
  %3605 = vmatprep.subr.mxu0 0.0
  %3606 = vmatpush1.msra.mxu0 0.0
  %3607 = vmatprep.subr.mxu0 0.0
  %3608 = vmatpush1.msra.mxu0 0.0
  %3609 = vmatprep.subr.mxu0 0.0
  %3610 = vmatpush1.msra.mxu0 0.0
  %3611 = vmatprep.subr.mxu0 0.0
  %3612 = vmatpush1.msra.mxu0 0.0
  %3613 = vmatprep.subr.mxu0 0.0
  %3614 = vmatpush1.msra.mxu0 0.0
  %3615 = vmatprep.subr.mxu0 0.0
  %3616 = vmatpush1.msra.mxu0 0.0
  %3617 = vmatprep.subr.mxu0 0.0
  %3618 = vmatpush1.msra.mxu0 0.0
  %3619 = vmatprep.subr.mxu0 0.0
  %3620 = vmatpush1.msra.mxu0 0.0
  %3621 = vmatprep.subr.mxu0 0.0
  %3622 = vmatpush1.msra.mxu0 0.0
  %3623 = vmatprep.subr.mxu0 0.0
  %3624 = vmatpush1.msra.mxu0 0.0
  %3625 = vmatprep.subr.mxu0 0.0
  %3626 = vmatpush1.msra.mxu0 0.0
  %3627 = vmatprep.mubr.f32.mxu0 0.0
  %3628 = vmatmul.mubr.f32.gmra.mrb[0].mxu0 %v2660
  %v3629 = vpop.f32.mrb[0].mxu0
  %v3630 = vadd.f32 0.0, %v3629
  %v3631 = vpop.f32.mrb[0].mxu0
  %3632 = vdwg.mxu0
  %3633 = vst.msk [vmem:[#allocation3 + $0x40] sm:$0xff] %vm2768, %v3630
  %v3634 = vld [vmem:[%s2] sm:$0xff]
  %v3635 = vld [vmem:[%s2 + $0x8] sm:$0xff]
  %v3636 = vld [vmem:[#allocation3] sm:$0xff]
  %v3637 = vld [vmem:[#allocation3 + $0x8] sm:$0xff]
  %v3638 = vld [vmem:[#allocation3 + $0x10] sm:$0xff]
  %v3639 = vld [vmem:[#allocation3 + $0x18] sm:$0xff]
  %v3640 = vld [vmem:[#allocation3 + $0x20] sm:$0xff]
  %v3641 = vld [vmem:[#allocation3 + $0x28] sm:$0xff]
  %v3642 = vld [vmem:[#allocation3 + $0x30] sm:$0xff]
  %v3643 = vld [vmem:[#allocation3 + $0x38] sm:$0xff]
  %v3644 = vld [vmem:[#allocation3 + $0x40] sm:$0xff]
  %v3645 = vld [vmem:[%s5] sm:$0xff]
  %v3646 = vld [vmem:[%s5 + $0x8] sm:$0xff]
  %3648 = vset.pattern.permute.xlu0 0
  %3649 = vperm.xlu0 %3648, %v3645
  %v3650 = vpop.permute.xlu0 %3649
  %3653 = vset.pattern.permute.xlu0 0
  %3654 = vperm.xlu0 %3653, %v3646
  %v3655 = vpop.permute.xlu0 %3654
  %v3658 = vsel %vm2586, %v3634, 0
  %v3661 = vsel %vm2586, %v3635, 0
  %3663 = vmatprep.subr.mxu0 0.0
  %3664 = vmatpush1.msra.mxu0 %v3636
  %3665 = vmatprep.subr.mxu0 0.0
  %3666 = vmatpush1.msra.mxu0 %v3637
  %3667 = vmatprep.subr.mxu0 0.0
  %3668 = vmatpush1.msra.mxu0 %v3638
  %3669 = vmatprep.subr.mxu0 0.0
  %3670 = vmatpush1.msra.mxu0 %v3639
  %3671 = vmatprep.subr.mxu0 0.0
  %3672 = vmatpush1.msra.mxu0 %v3640
  %3673 = vmatprep.subr.mxu0 0.0
  %3674 = vmatpush1.msra.mxu0 %v3641
  %3675 = vmatprep.subr.mxu0 0.0
  %3676 = vmatpush1.msra.mxu0 %v3642
  %3677 = vmatprep.subr.mxu0 0.0
  %3678 = vmatpush1.msra.mxu0 %v3643
  %3679 = vmatprep.subr.mxu0 0.0
  %3680 = vmatpush1.msra.mxu0 %v3644
  %3681 = vmatprep.subr.mxu0 0.0
  %3682 = vmatpush1.msra.mxu0 0.0
  %3683 = vmatprep.subr.mxu0 0.0
  %3684 = vmatpush1.msra.mxu0 0.0
  %3685 = vmatprep.subr.mxu0 0.0
  %3686 = vmatpush1.msra.mxu0 0.0
  %3687 = vmatprep.subr.mxu0 0.0
  %3688 = vmatpush1.msra.mxu0 0.0
  %3689 = vmatprep.subr.mxu0 0.0
  %3690 = vmatpush1.msra.mxu0 0.0
  %3691 = vmatprep.subr.mxu0 0.0
  %3692 = vmatpush1.msra.mxu0 0.0
  %3693 = vmatprep.subr.mxu0 0.0
  %3694 = vmatpush1.msra.mxu0 0.0
  %3695 = vmatprep.subr.mxu0 0.0
  %3696 = vmatpush1.msra.mxu0 0.0
  %3697 = vmatprep.subr.mxu0 0.0
  %3698 = vmatpush1.msra.mxu0 0.0
  %3699 = vmatprep.subr.mxu0 0.0
  %3700 = vmatpush1.msra.mxu0 0.0
  %3701 = vmatprep.subr.mxu0 0.0
  %3702 = vmatpush1.msra.mxu0 0.0
  %3703 = vmatprep.subr.mxu0 0.0
  %3704 = vmatpush1.msra.mxu0 0.0
  %3705 = vmatprep.subr.mxu0 0.0
  %3706 = vmatpush1.msra.mxu0 0.0
  %3707 = vmatprep.subr.mxu0 0.0
  %3708 = vmatpush1.msra.mxu0 0.0
  %3709 = vmatprep.subr.mxu0 0.0
  %3710 = vmatpush1.msra.mxu0 0.0
  %3711 = vmatprep.subr.mxu0 0.0
  %3712 = vmatpush1.msra.mxu0 0.0
  %3713 = vmatprep.subr.mxu0 0.0
  %3714 = vmatpush1.msra.mxu0 0.0
  %3715 = vmatprep.subr.mxu0 0.0
  %3716 = vmatpush1.msra.mxu0 0.0
  %3717 = vmatprep.subr.mxu0 0.0
  %3718 = vmatpush1.msra.mxu0 0.0
  %3719 = vmatprep.subr.mxu0 0.0
  %3720 = vmatpush1.msra.mxu0 0.0
  %3721 = vmatprep.subr.mxu0 0.0
  %3722 = vmatpush1.msra.mxu0 0.0
  %3723 = vmatprep.subr.mxu0 0.0
  %3724 = vmatpush1.msra.mxu0 0.0
  %3725 = vmatprep.subr.mxu0 0.0
  %3726 = vmatpush1.msra.mxu0 0.0
  %3727 = vmatprep.mubr.f32.mxu0 0.0
  %3728 = vmatmul.mubr.f32.gmra.mrb[0].mxu0 %v3658
  %v3729 = vpop.f32.mrb[0].mxu0
  %v3730 = vadd.f32 %v3650, %v3729
  %v3731 = vpop.f32.mrb[0].mxu0
  %3732 = vmatprep.mubr.f32.mxu0 0.0
  %3733 = vmatmul.mubr.f32.gmra.mrb[0].mxu0 %v3661
  %v3734 = vpop.f32.mrb[0].mxu0
  %v3735 = vadd.f32 %v3655, %v3734
  %v3736 = vpop.f32.mrb[0].mxu0
  %3737 = vdwg.mxu0
  %v3738 = vmax.f32 %v3730, 0.0
  %v3739 = vmax.f32 %v3735, 0.0
  %3742 = vrot.lane.b32.xlu0 %v3738, 120
  %v3743 = vpop.permute.xlu0 %3742
  %3744 = vrot.lane.b32.xlu0 %v3739, 120
  %v3745 = vpop.permute.xlu0 %3744
  %v3748 = vmax.f32 %v3738, %v3743
  %v3749 = vmax.f32 %v3739, %v3745
  %3752 = vrot.lane.b32.xlu0 %v3748, 112
  %v3753 = vpop.permute.xlu0 %3752
  %3754 = vrot.lane.b32.xlu0 %v3749, 112
  %v3755 = vpop.permute.xlu0 %3754
  %v3758 = vmax.f32 %v3748, %v3753
  %v3759 = vmax.f32 %v3749, %v3755
  %v3760 = vld [vmem:[%s9] sm:$0x1]
  %v3761 = vlaneseq
  %v3762 = vshrl.u32 %v3761, 7
  %v3763 = vsub.s32 0, %v3762
  %v3764 = vrot.slane %v3760, %v3763
  %vm3765 = vcmp.eq.s32.totalorder %v40, %v3764
  %v3766 = vsel %vm3765, 1.0, 0.0
  %vm3767 = vcmask 64512
  %v3769 = vsel %vm3767, %v3758, 0
  %v3772 = vsel %vm3767, %v3759, 0
  %3774 = vmatprep.subr.mxu0 0.0
  %3775 = vmatpush1.msra.mxu0 %v3766
  %3776 = vmatprep.subr.mxu0 0.0
  %3777 = vmatpush1.msra.mxu0 0.0
  %3778 = vmatprep.subr.mxu0 0.0
  %3779 = vmatpush1.msra.mxu0 0.0
  %3780 = vmatprep.subr.mxu0 0.0
  %3781 = vmatpush1.msra.mxu0 0.0
  %3782 = vmatprep.subr.mxu0 0.0
  %3783 = vmatpush1.msra.mxu0 0.0
  %3784 = vmatprep.subr.mxu0 0.0
  %3785 = vmatpush1.msra.mxu0 0.0
  %3786 = vmatprep.subr.mxu0 0.0
  %3787 = vmatpush1.msra.mxu0 0.0
  %3788 = vmatprep.subr.mxu0 0.0
  %3789 = vmatpush1.msra.mxu0 0.0
  %3790 = vmatprep.subr.mxu0 0.0
  %3791 = vmatpush1.msra.mxu0 0.0
  %3792 = vmatprep.subr.mxu0 0.0
  %3793 = vmatpush1.msra.mxu0 0.0
  %3794 = vmatprep.subr.mxu0 0.0
  %3795 = vmatpush1.msra.mxu0 0.0
  %3796 = vmatprep.subr.mxu0 0.0
  %3797 = vmatpush1.msra.mxu0 0.0
  %3798 = vmatprep.subr.mxu0 0.0
  %3799 = vmatpush1.msra.mxu0 0.0
  %3800 = vmatprep.subr.mxu0 0.0
  %3801 = vmatpush1.msra.mxu0 0.0
  %3802 = vmatprep.subr.mxu0 0.0
  %3803 = vmatpush1.msra.mxu0 0.0
  %3804 = vmatprep.subr.mxu0 0.0
  %3805 = vmatpush1.msra.mxu0 0.0
  %3806 = vmatprep.subr.mxu0 0.0
  %3807 = vmatpush1.msra.mxu0 0.0
  %3808 = vmatprep.subr.mxu0 0.0
  %3809 = vmatpush1.msra.mxu0 0.0
  %3810 = vmatprep.subr.mxu0 0.0
  %3811 = vmatpush1.msra.mxu0 0.0
  %3812 = vmatprep.subr.mxu0 0.0
  %3813 = vmatpush1.msra.mxu0 0.0
  %3814 = vmatprep.subr.mxu0 0.0
  %3815 = vmatpush1.msra.mxu0 0.0
  %3816 = vmatprep.subr.mxu0 0.0
  %3817 = vmatpush1.msra.mxu0 0.0
  %3818 = vmatprep.subr.mxu0 0.0
  %3819 = vmatpush1.msra.mxu0 0.0
  %3820 = vmatprep.subr.mxu0 0.0
  %3821 = vmatpush1.msra.mxu0 0.0
  %3822 = vmatprep.subr.mxu0 0.0
  %3823 = vmatpush1.msra.mxu0 0.0
  %3824 = vmatprep.subr.mxu0 0.0
  %3825 = vmatpush1.msra.mxu0 0.0
  %3826 = vmatprep.subr.mxu0 0.0
  %3827 = vmatpush1.msra.mxu0 0.0
  %3828 = vmatprep.subr.mxu0 0.0
  %3829 = vmatpush1.msra.mxu0 0.0
  %3830 = vmatprep.subr.mxu0 0.0
  %3831 = vmatpush1.msra.mxu0 0.0
  %3832 = vmatprep.subr.mxu0 0.0
  %3833 = vmatpush1.msra.mxu0 0.0
  %3834 = vmatprep.subr.mxu0 0.0
  %3835 = vmatpush1.msra.mxu0 0.0
  %3836 = vmatprep.subr.mxu0 0.0
  %3837 = vmatpush1.msra.mxu0 0.0
  %3838 = vmatprep.mubr.f32.mxu0 0.0
  %3839 = vmatmul.mubr.f32.gmra.mrb[0].mxu0 %v3769
  %v3840 = vpop.f32.mrb[0].mxu0
  %v3841 = vadd.f32 0.0, %v3840
  %v3842 = vpop.f32.mrb[0].mxu0
  %3843 = vmatprep.mubr.f32.mxu0 0.0
  %3844 = vmatmul.mubr.f32.gmra.mrb[0].mxu0 %v3772
  %v3845 = vpop.f32.mrb[0].mxu0
  %v3846 = vadd.f32 0.0, %v3845
  %v3847 = vpop.f32.mrb[0].mxu0
  %3848 = vdwg.mxu0
  %vm3849 = vcmask 15360
  %3850 = vst.msk [vmem:[#allocation4] sm:$0xff] %vm3849, %v3841
  %3851 = vst.msk [vmem:[#allocation4 + $0x8] sm:$0xff] %vm3849, %v3846
  %v3852 = vld [vmem:[%s9 + $0x1] sm:$0x1]
  %v3853 = vlaneseq
  %v3854 = vshrl.u32 %v3853, 7
  %v3855 = vsub.s32 0, %v3854
  %v3856 = vrot.slane %v3852, %v3855
  %vm3857 = vcmp.eq.s32.totalorder %v40, %v3856
  %v3858 = vsel %vm3857, 1.0, 0.0
  %3859 = vmatprep.subr.mxu0 0.0
  %3860 = vmatpush1.msra.mxu0 %v3858
  %3861 = vmatprep.subr.mxu0 0.0
  %3862 = vmatpush1.msra.mxu0 0.0
  %3863 = vmatprep.subr.mxu0 0.0
  %3864 = vmatpush1.msra.mxu0 0.0
  %3865 = vmatprep.subr.mxu0 0.0
  %3866 = vmatpush1.msra.mxu0 0.0
  %3867 = vmatprep.subr.mxu0 0.0
  %3868 = vmatpush1.msra.mxu0 0.0
  %3869 = vmatprep.subr.mxu0 0.0
  %3870 = vmatpush1.msra.mxu0 0.0
  %3871 = vmatprep.subr.mxu0 0.0
  %3872 = vmatpush1.msra.mxu0 0.0
  %3873 = vmatprep.subr.mxu0 0.0
  %3874 = vmatpush1.msra.mxu0 0.0
  %3875 = vmatprep.subr.mxu0 0.0
  %3876 = vmatpush1.msra.mxu0 0.0
  %3877 = vmatprep.subr.mxu0 0.0
  %3878 = vmatpush1.msra.mxu0 0.0
  %3879 = vmatprep.subr.mxu0 0.0
  %3880 = vmatpush1.msra.mxu0 0.0
  %3881 = vmatprep.subr.mxu0 0.0
  %3882 = vmatpush1.msra.mxu0 0.0
  %3883 = vmatprep.subr.mxu0 0.0
  %3884 = vmatpush1.msra.mxu0 0.0
  %3885 = vmatprep.subr.mxu0 0.0
  %3886 = vmatpush1.msra.mxu0 0.0
  %3887 = vmatprep.subr.mxu0 0.0
  %3888 = vmatpush1.msra.mxu0 0.0
  %3889 = vmatprep.subr.mxu0 0.0
  %3890 = vmatpush1.msra.mxu0 0.0
  %3891 = vmatprep.subr.mxu0 0.0
  %3892 = vmatpush1.msra.mxu0 0.0
  %3893 = vmatprep.subr.mxu0 0.0
  %3894 = vmatpush1.msra.mxu0 0.0
  %3895 = vmatprep.subr.mxu0 0.0
  %3896 = vmatpush1.msra.mxu0 0.0
  %3897 = vmatprep.subr.mxu0 0.0
  %3898 = vmatpush1.msra.mxu0 0.0
  %3899 = vmatprep.subr.mxu0 0.0
  %3900 = vmatpush1.msra.mxu0 0.0
  %3901 = vmatprep.subr.mxu0 0.0
  %3902 = vmatpush1.msra.mxu0 0.0
  %3903 = vmatprep.subr.mxu0 0.0
  %3904 = vmatpush1.msra.mxu0 0.0
  %3905 = vmatprep.subr.mxu0 0.0
  %3906 = vmatpush1.msra.mxu0 0.0
  %3907 = vmatprep.subr.mxu0 0.0
  %3908 = vmatpush1.msra.mxu0 0.0
  %3909 = vmatprep.subr.mxu0 0.0
  %3910 = vmatpush1.msra.mxu0 0.0
  %3911 = vmatprep.subr.mxu0 0.0
  %3912 = vmatpush1.msra.mxu0 0.0
  %3913 = vmatprep.subr.mxu0 0.0
  %3914 = vmatpush1.msra.mxu0 0.0
  %3915 = vmatprep.subr.mxu0 0.0
  %3916 = vmatpush1.msra.mxu0 0.0
  %3917 = vmatprep.subr.mxu0 0.0
  %3918 = vmatpush1.msra.mxu0 0.0
  %3919 = vmatprep.subr.mxu0 0.0
  %3920 = vmatpush1.msra.mxu0 0.0
  %3921 = vmatprep.subr.mxu0 0.0
  %3922 = vmatpush1.msra.mxu0 0.0
  %3923 = vmatprep.mubr.f32.mxu0 0.0
  %3924 = vmatmul.mubr.f32.gmra.mrb[0].mxu0 %v3769
  %v3925 = vpop.f32.mrb[0].mxu0
  %v3926 = vadd.f32 0.0, %v3925
  %v3927 = vpop.f32.mrb[0].mxu0
  %3928 = vmatprep.mubr.f32.mxu0 0.0
  %3929 = vmatmul.mubr.f32.gmra.mrb[0].mxu0 %v3772
  %v3930 = vpop.f32.mrb[0].mxu0
  %v3931 = vadd.f32 0.0, %v3930
  %v3932 = vpop.f32.mrb[0].mxu0
  %3933 = vdwg.mxu0
  %3934 = vst.msk [vmem:[#allocation4 + $0x10] sm:$0xff] %vm3849, %v3926
  %3935 = vst.msk [vmem:[#allocation4 + $0x18] sm:$0xff] %vm3849, %v3931
  %v3936 = vld [vmem:[%s9 + $0x2] sm:$0x1]
  %v3937 = vlaneseq
  %v3938 = vshrl.u32 %v3937, 7
  %v3939 = vsub.s32 0, %v3938
  %v3940 = vrot.slane %v3936, %v3939
  %vm3941 = vcmp.eq.s32.totalorder %v40, %v3940
  %v3942 = vsel %vm3941, 1.0, 0.0
  %3943 = vmatprep.subr.mxu0 0.0
  %3944 = vmatpush1.msra.mxu0 %v3942
  %3945 = vmatprep.subr.mxu0 0.0
  %3946 = vmatpush1.msra.mxu0 0.0
  %3947 = vmatprep.subr.mxu0 0.0
  %3948 = vmatpush1.msra.mxu0 0.0
  %3949 = vmatprep.subr.mxu0 0.0
  %3950 = vmatpush1.msra.mxu0 0.0
  %3951 = vmatprep.subr.mxu0 0.0
  %3952 = vmatpush1.msra.mxu0 0.0
  %3953 = vmatprep.subr.mxu0 0.0
  %3954 = vmatpush1.msra.mxu0 0.0
  %3955 = vmatprep.subr.mxu0 0.0
  %3956 = vmatpush1.msra.mxu0 0.0
  %3957 = vmatprep.subr.mxu0 0.0
  %3958 = vmatpush1.msra.mxu0 0.0
  %3959 = vmatprep.subr.mxu0 0.0
  %3960 = vmatpush1.msra.mxu0 0.0
  %3961 = vmatprep.subr.mxu0 0.0
  %3962 = vmatpush1.msra.mxu0 0.0
  %3963 = vmatprep.subr.mxu0 0.0
  %3964 = vmatpush1.msra.mxu0 0.0
  %3965 = vmatprep.subr.mxu0 0.0
  %3966 = vmatpush1.msra.mxu0 0.0
  %3967 = vmatprep.subr.mxu0 0.0
  %3968 = vmatpush1.msra.mxu0 0.0
  %3969 = vmatprep.subr.mxu0 0.0
  %3970 = vmatpush1.msra.mxu0 0.0
  %3971 = vmatprep.subr.mxu0 0.0
  %3972 = vmatpush1.msra.mxu0 0.0
  %3973 = vmatprep.subr.mxu0 0.0
  %3974 = vmatpush1.msra.mxu0 0.0
  %3975 = vmatprep.subr.mxu0 0.0
  %3976 = vmatpush1.msra.mxu0 0.0
  %3977 = vmatprep.subr.mxu0 0.0
  %3978 = vmatpush1.msra.mxu0 0.0
  %3979 = vmatprep.subr.mxu0 0.0
  %3980 = vmatpush1.msra.mxu0 0.0
  %3981 = vmatprep.subr.mxu0 0.0
  %3982 = vmatpush1.msra.mxu0 0.0
  %3983 = vmatprep.subr.mxu0 0.0
  %3984 = vmatpush1.msra.mxu0 0.0
  %3985 = vmatprep.subr.mxu0 0.0
  %3986 = vmatpush1.msra.mxu0 0.0
  %3987 = vmatprep.subr.mxu0 0.0
  %3988 = vmatpush1.msra.mxu0 0.0
  %3989 = vmatprep.subr.mxu0 0.0
  %3990 = vmatpush1.msra.mxu0 0.0
  %3991 = vmatprep.subr.mxu0 0.0
  %3992 = vmatpush1.msra.mxu0 0.0
  %3993 = vmatprep.subr.mxu0 0.0
  %3994 = vmatpush1.msra.mxu0 0.0
  %3995 = vmatprep.subr.mxu0 0.0
  %3996 = vmatpush1.msra.mxu0 0.0
  %3997 = vmatprep.subr.mxu0 0.0
  %3998 = vmatpush1.msra.mxu0 0.0
  %3999 = vmatprep.subr.mxu0 0.0
  %4000 = vmatpush1.msra.mxu0 0.0
  %4001 = vmatprep.subr.mxu0 0.0
  %4002 = vmatpush1.msra.mxu0 0.0
  %4003 = vmatprep.subr.mxu0 0.0
  %4004 = vmatpush1.msra.mxu0 0.0
  %4005 = vmatprep.subr.mxu0 0.0
  %4006 = vmatpush1.msra.mxu0 0.0
  %4007 = vmatprep.mubr.f32.mxu0 0.0
  %4008 = vmatmul.mubr.f32.gmra.mrb[0].mxu0 %v3769
  %v4009 = vpop.f32.mrb[0].mxu0
  %v4010 = vadd.f32 0.0, %v4009
  %v4011 = vpop.f32.mrb[0].mxu0
  %4012 = vmatprep.mubr.f32.mxu0 0.0
  %4013 = vmatmul.mubr.f32.gmra.mrb[0].mxu0 %v3772
  %v4014 = vpop.f32.mrb[0].mxu0
  %v4015 = vadd.f32 0.0, %v4014
  %v4016 = vpop.f32.mrb[0].mxu0
  %4017 = vdwg.mxu0
  %4018 = vst.msk [vmem:[#allocation4 + $0x20] sm:$0xff] %vm3849, %v4010
  %4019 = vst.msk [vmem:[#allocation4 + $0x28] sm:$0xff] %vm3849, %v4015
  %v4020 = vld [vmem:[%s9 + $0x3] sm:$0x1]
  %v4021 = vlaneseq
  %v4022 = vshrl.u32 %v4021, 7
  %v4023 = vsub.s32 0, %v4022
  %v4024 = vrot.slane %v4020, %v4023
  %vm4025 = vcmp.eq.s32.totalorder %v40, %v4024
  %v4026 = vsel %vm4025, 1.0, 0.0
  %4027 = vmatprep.subr.mxu0 0.0
  %4028 = vmatpush1.msra.mxu0 %v4026
  %4029 = vmatprep.subr.mxu0 0.0
  %4030 = vmatpush1.msra.mxu0 0.0
  %4031 = vmatprep.subr.mxu0 0.0
  %4032 = vmatpush1.msra.mxu0 0.0
  %4033 = vmatprep.subr.mxu0 0.0
  %4034 = vmatpush1.msra.mxu0 0.0
  %4035 = vmatprep.subr.mxu0 0.0
  %4036 = vmatpush1.msra.mxu0 0.0
  %4037 = vmatprep.subr.mxu0 0.0
  %4038 = vmatpush1.msra.mxu0 0.0
  %4039 = vmatprep.subr.mxu0 0.0
  %4040 = vmatpush1.msra.mxu0 0.0
  %4041 = vmatprep.subr.mxu0 0.0
  %4042 = vmatpush1.msra.mxu0 0.0
  %4043 = vmatprep.subr.mxu0 0.0
  %4044 = vmatpush1.msra.mxu0 0.0
  %4045 = vmatprep.subr.mxu0 0.0
  %4046 = vmatpush1.msra.mxu0 0.0
  %4047 = vmatprep.subr.mxu0 0.0
  %4048 = vmatpush1.msra.mxu0 0.0
  %4049 = vmatprep.subr.mxu0 0.0
  %4050 = vmatpush1.msra.mxu0 0.0
  %4051 = vmatprep.subr.mxu0 0.0
  %4052 = vmatpush1.msra.mxu0 0.0
  %4053 = vmatprep.subr.mxu0 0.0
  %4054 = vmatpush1.msra.mxu0 0.0
  %4055 = vmatprep.subr.mxu0 0.0
  %4056 = vmatpush1.msra.mxu0 0.0
  %4057 = vmatprep.subr.mxu0 0.0
  %4058 = vmatpush1.msra.mxu0 0.0
  %4059 = vmatprep.subr.mxu0 0.0
  %4060 = vmatpush1.msra.mxu0 0.0
  %4061 = vmatprep.subr.mxu0 0.0
  %4062 = vmatpush1.msra.mxu0 0.0
  %4063 = vmatprep.subr.mxu0 0.0
  %4064 = vmatpush1.msra.mxu0 0.0
  %4065 = vmatprep.subr.mxu0 0.0
  %4066 = vmatpush1.msra.mxu0 0.0
  %4067 = vmatprep.subr.mxu0 0.0
  %4068 = vmatpush1.msra.mxu0 0.0
  %4069 = vmatprep.subr.mxu0 0.0
  %4070 = vmatpush1.msra.mxu0 0.0
  %4071 = vmatprep.subr.mxu0 0.0
  %4072 = vmatpush1.msra.mxu0 0.0
  %4073 = vmatprep.subr.mxu0 0.0
  %4074 = vmatpush1.msra.mxu0 0.0
  %4075 = vmatprep.subr.mxu0 0.0
  %4076 = vmatpush1.msra.mxu0 0.0
  %4077 = vmatprep.subr.mxu0 0.0
  %4078 = vmatpush1.msra.mxu0 0.0
  %4079 = vmatprep.subr.mxu0 0.0
  %4080 = vmatpush1.msra.mxu0 0.0
  %4081 = vmatprep.subr.mxu0 0.0
  %4082 = vmatpush1.msra.mxu0 0.0
  %4083 = vmatprep.subr.mxu0 0.0
  %4084 = vmatpush1.msra.mxu0 0.0
  %4085 = vmatprep.subr.mxu0 0.0
  %4086 = vmatpush1.msra.mxu0 0.0
  %4087 = vmatprep.subr.mxu0 0.0
  %4088 = vmatpush1.msra.mxu0 0.0
  %4089 = vmatprep.subr.mxu0 0.0
  %4090 = vmatpush1.msra.mxu0 0.0
  %4091 = vmatprep.mubr.f32.mxu0 0.0
  %4092 = vmatmul.mubr.f32.gmra.mrb[0].mxu0 %v3769
  %v4093 = vpop.f32.mrb[0].mxu0
  %v4094 = vadd.f32 0.0, %v4093
  %v4095 = vpop.f32.mrb[0].mxu0
  %4096 = vmatprep.mubr.f32.mxu0 0.0
  %4097 = vmatmul.mubr.f32.gmra.mrb[0].mxu0 %v3772
  %v4098 = vpop.f32.mrb[0].mxu0
  %v4099 = vadd.f32 0.0, %v4098
  %v4100 = vpop.f32.mrb[0].mxu0
  %4101 = vdwg.mxu0
  %4102 = vst.msk [vmem:[#allocation4 + $0x30] sm:$0xff] %vm3849, %v4094
  %4103 = vst.msk [vmem:[#allocation4 + $0x38] sm:$0xff] %vm3849, %v4099
  %v4104 = vld [vmem:[%s9 + $0x4] sm:$0x1]
  %v4105 = vlaneseq
  %v4106 = vshrl.u32 %v4105, 7
  %v4107 = vsub.s32 0, %v4106
  %v4108 = vrot.slane %v4104, %v4107
  %vm4109 = vcmp.eq.s32.totalorder %v40, %v4108
  %v4110 = vsel %vm4109, 1.0, 0.0
  %4111 = vmatprep.subr.mxu0 0.0
  %4112 = vmatpush1.msra.mxu0 %v4110
  %4113 = vmatprep.subr.mxu0 0.0
  %4114 = vmatpush1.msra.mxu0 0.0
  %4115 = vmatprep.subr.mxu0 0.0
  %4116 = vmatpush1.msra.mxu0 0.0
  %4117 = vmatprep.subr.mxu0 0.0
  %4118 = vmatpush1.msra.mxu0 0.0
  %4119 = vmatprep.subr.mxu0 0.0
  %4120 = vmatpush1.msra.mxu0 0.0
  %4121 = vmatprep.subr.mxu0 0.0
  %4122 = vmatpush1.msra.mxu0 0.0
  %4123 = vmatprep.subr.mxu0 0.0
  %4124 = vmatpush1.msra.mxu0 0.0
  %4125 = vmatprep.subr.mxu0 0.0
  %4126 = vmatpush1.msra.mxu0 0.0
  %4127 = vmatprep.subr.mxu0 0.0
  %4128 = vmatpush1.msra.mxu0 0.0
  %4129 = vmatprep.subr.mxu0 0.0
  %4130 = vmatpush1.msra.mxu0 0.0
  %4131 = vmatprep.subr.mxu0 0.0
  %4132 = vmatpush1.msra.mxu0 0.0
  %4133 = vmatprep.subr.mxu0 0.0
  %4134 = vmatpush1.msra.mxu0 0.0
  %4135 = vmatprep.subr.mxu0 0.0
  %4136 = vmatpush1.msra.mxu0 0.0
  %4137 = vmatprep.subr.mxu0 0.0
  %4138 = vmatpush1.msra.mxu0 0.0
  %4139 = vmatprep.subr.mxu0 0.0
  %4140 = vmatpush1.msra.mxu0 0.0
  %4141 = vmatprep.subr.mxu0 0.0
  %4142 = vmatpush1.msra.mxu0 0.0
  %4143 = vmatprep.subr.mxu0 0.0
  %4144 = vmatpush1.msra.mxu0 0.0
  %4145 = vmatprep.subr.mxu0 0.0
  %4146 = vmatpush1.msra.mxu0 0.0
  %4147 = vmatprep.subr.mxu0 0.0
  %4148 = vmatpush1.msra.mxu0 0.0
  %4149 = vmatprep.subr.mxu0 0.0
  %4150 = vmatpush1.msra.mxu0 0.0
  %4151 = vmatprep.subr.mxu0 0.0
  %4152 = vmatpush1.msra.mxu0 0.0
  %4153 = vmatprep.subr.mxu0 0.0
  %4154 = vmatpush1.msra.mxu0 0.0
  %4155 = vmatprep.subr.mxu0 0.0
  %4156 = vmatpush1.msra.mxu0 0.0
  %4157 = vmatprep.subr.mxu0 0.0
  %4158 = vmatpush1.msra.mxu0 0.0
  %4159 = vmatprep.subr.mxu0 0.0
  %4160 = vmatpush1.msra.mxu0 0.0
  %4161 = vmatprep.subr.mxu0 0.0
  %4162 = vmatpush1.msra.mxu0 0.0
  %4163 = vmatprep.subr.mxu0 0.0
  %4164 = vmatpush1.msra.mxu0 0.0
  %4165 = vmatprep.subr.mxu0 0.0
  %4166 = vmatpush1.msra.mxu0 0.0
  %4167 = vmatprep.subr.mxu0 0.0
  %4168 = vmatpush1.msra.mxu0 0.0
  %4169 = vmatprep.subr.mxu0 0.0
  %4170 = vmatpush1.msra.mxu0 0.0
  %4171 = vmatprep.subr.mxu0 0.0
  %4172 = vmatpush1.msra.mxu0 0.0
  %4173 = vmatprep.subr.mxu0 0.0
  %4174 = vmatpush1.msra.mxu0 0.0
  %4175 = vmatprep.mubr.f32.mxu0 0.0
  %4176 = vmatmul.mubr.f32.gmra.mrb[0].mxu0 %v3769
  %v4177 = vpop.f32.mrb[0].mxu0
  %v4178 = vadd.f32 0.0, %v4177
  %v4179 = vpop.f32.mrb[0].mxu0
  %4180 = vmatprep.mubr.f32.mxu0 0.0
  %4181 = vmatmul.mubr.f32.gmra.mrb[0].mxu0 %v3772
  %v4182 = vpop.f32.mrb[0].mxu0
  %v4183 = vadd.f32 0.0, %v4182
  %v4184 = vpop.f32.mrb[0].mxu0
  %4185 = vdwg.mxu0
  %4186 = vst.msk [vmem:[#allocation4 + $0x40] sm:$0xff] %vm3849, %v4178
  %4187 = vst.msk [vmem:[#allocation4 + $0x48] sm:$0xff] %vm3849, %v4183
  %v4188 = vld [vmem:[%s9 + $0x5] sm:$0x1]
  %v4189 = vlaneseq
  %v4190 = vshrl.u32 %v4189, 7
  %v4191 = vsub.s32 0, %v4190
  %v4192 = vrot.slane %v4188, %v4191
  %vm4193 = vcmp.eq.s32.totalorder %v40, %v4192
  %v4194 = vsel %vm4193, 1.0, 0.0
  %4195 = vmatprep.subr.mxu0 0.0
  %4196 = vmatpush1.msra.mxu0 %v4194
  %4197 = vmatprep.subr.mxu0 0.0
  %4198 = vmatpush1.msra.mxu0 0.0
  %4199 = vmatprep.subr.mxu0 0.0
  %4200 = vmatpush1.msra.mxu0 0.0
  %4201 = vmatprep.subr.mxu0 0.0
  %4202 = vmatpush1.msra.mxu0 0.0
  %4203 = vmatprep.subr.mxu0 0.0
  %4204 = vmatpush1.msra.mxu0 0.0
  %4205 = vmatprep.subr.mxu0 0.0
  %4206 = vmatpush1.msra.mxu0 0.0
  %4207 = vmatprep.subr.mxu0 0.0
  %4208 = vmatpush1.msra.mxu0 0.0
  %4209 = vmatprep.subr.mxu0 0.0
  %4210 = vmatpush1.msra.mxu0 0.0
  %4211 = vmatprep.subr.mxu0 0.0
  %4212 = vmatpush1.msra.mxu0 0.0
  %4213 = vmatprep.subr.mxu0 0.0
  %4214 = vmatpush1.msra.mxu0 0.0
  %4215 = vmatprep.subr.mxu0 0.0
  %4216 = vmatpush1.msra.mxu0 0.0
  %4217 = vmatprep.subr.mxu0 0.0
  %4218 = vmatpush1.msra.mxu0 0.0
  %4219 = vmatprep.subr.mxu0 0.0
  %4220 = vmatpush1.msra.mxu0 0.0
  %4221 = vmatprep.subr.mxu0 0.0
  %4222 = vmatpush1.msra.mxu0 0.0
  %4223 = vmatprep.subr.mxu0 0.0
  %4224 = vmatpush1.msra.mxu0 0.0
  %4225 = vmatprep.subr.mxu0 0.0
  %4226 = vmatpush1.msra.mxu0 0.0
  %4227 = vmatprep.subr.mxu0 0.0
  %4228 = vmatpush1.msra.mxu0 0.0
  %4229 = vmatprep.subr.mxu0 0.0
  %4230 = vmatpush1.msra.mxu0 0.0
  %4231 = vmatprep.subr.mxu0 0.0
  %4232 = vmatpush1.msra.mxu0 0.0
  %4233 = vmatprep.subr.mxu0 0.0
  %4234 = vmatpush1.msra.mxu0 0.0
  %4235 = vmatprep.subr.mxu0 0.0
  %4236 = vmatpush1.msra.mxu0 0.0
  %4237 = vmatprep.subr.mxu0 0.0
  %4238 = vmatpush1.msra.mxu0 0.0
  %4239 = vmatprep.subr.mxu0 0.0
  %4240 = vmatpush1.msra.mxu0 0.0
  %4241 = vmatprep.subr.mxu0 0.0
  %4242 = vmatpush1.msra.mxu0 0.0
  %4243 = vmatprep.subr.mxu0 0.0
  %4244 = vmatpush1.msra.mxu0 0.0
  %4245 = vmatprep.subr.mxu0 0.0
  %4246 = vmatpush1.msra.mxu0 0.0
  %4247 = vmatprep.subr.mxu0 0.0
  %4248 = vmatpush1.msra.mxu0 0.0
  %4249 = vmatprep.subr.mxu0 0.0
  %4250 = vmatpush1.msra.mxu0 0.0
  %4251 = vmatprep.subr.mxu0 0.0
  %4252 = vmatpush1.msra.mxu0 0.0
  %4253 = vmatprep.subr.mxu0 0.0
  %4254 = vmatpush1.msra.mxu0 0.0
  %4255 = vmatprep.subr.mxu0 0.0
  %4256 = vmatpush1.msra.mxu0 0.0
  %4257 = vmatprep.subr.mxu0 0.0
  %4258 = vmatpush1.msra.mxu0 0.0
  %4259 = vmatprep.mubr.f32.mxu0 0.0
  %4260 = vmatmul.mubr.f32.gmra.mrb[0].mxu0 %v3769
  %v4261 = vpop.f32.mrb[0].mxu0
  %v4262 = vadd.f32 0.0, %v4261
  %v4263 = vpop.f32.mrb[0].mxu0
  %4264 = vmatprep.mubr.f32.mxu0 0.0
  %4265 = vmatmul.mubr.f32.gmra.mrb[0].mxu0 %v3772
  %v4266 = vpop.f32.mrb[0].mxu0
  %v4267 = vadd.f32 0.0, %v4266
  %v4268 = vpop.f32.mrb[0].mxu0
  %4269 = vdwg.mxu0
  %4270 = vst.msk [vmem:[#allocation4 + $0x50] sm:$0xff] %vm3849, %v4262
  %4271 = vst.msk [vmem:[#allocation4 + $0x58] sm:$0xff] %vm3849, %v4267
  %v4272 = vld [vmem:[%s9 + $0x6] sm:$0x1]
  %v4273 = vlaneseq
  %v4274 = vshrl.u32 %v4273, 7
  %v4275 = vsub.s32 0, %v4274
  %v4276 = vrot.slane %v4272, %v4275
  %vm4277 = vcmp.eq.s32.totalorder %v40, %v4276
  %v4278 = vsel %vm4277, 1.0, 0.0
  %4279 = vmatprep.subr.mxu0 0.0
  %4280 = vmatpush1.msra.mxu0 %v4278
  %4281 = vmatprep.subr.mxu0 0.0
  %4282 = vmatpush1.msra.mxu0 0.0
  %4283 = vmatprep.subr.mxu0 0.0
  %4284 = vmatpush1.msra.mxu0 0.0
  %4285 = vmatprep.subr.mxu0 0.0
  %4286 = vmatpush1.msra.mxu0 0.0
  %4287 = vmatprep.subr.mxu0 0.0
  %4288 = vmatpush1.msra.mxu0 0.0
  %4289 = vmatprep.subr.mxu0 0.0
  %4290 = vmatpush1.msra.mxu0 0.0
  %4291 = vmatprep.subr.mxu0 0.0
  %4292 = vmatpush1.msra.mxu0 0.0
  %4293 = vmatprep.subr.mxu0 0.0
  %4294 = vmatpush1.msra.mxu0 0.0
  %4295 = vmatprep.subr.mxu0 0.0
  %4296 = vmatpush1.msra.mxu0 0.0
  %4297 = vmatprep.subr.mxu0 0.0
  %4298 = vmatpush1.msra.mxu0 0.0
  %4299 = vmatprep.subr.mxu0 0.0
  %4300 = vmatpush1.msra.mxu0 0.0
  %4301 = vmatprep.subr.mxu0 0.0
  %4302 = vmatpush1.msra.mxu0 0.0
  %4303 = vmatprep.subr.mxu0 0.0
  %4304 = vmatpush1.msra.mxu0 0.0
  %4305 = vmatprep.subr.mxu0 0.0
  %4306 = vmatpush1.msra.mxu0 0.0
  %4307 = vmatprep.subr.mxu0 0.0
  %4308 = vmatpush1.msra.mxu0 0.0
  %4309 = vmatprep.subr.mxu0 0.0
  %4310 = vmatpush1.msra.mxu0 0.0
  %4311 = vmatprep.subr.mxu0 0.0
  %4312 = vmatpush1.msra.mxu0 0.0
  %4313 = vmatprep.subr.mxu0 0.0
  %4314 = vmatpush1.msra.mxu0 0.0
  %4315 = vmatprep.subr.mxu0 0.0
  %4316 = vmatpush1.msra.mxu0 0.0
  %4317 = vmatprep.subr.mxu0 0.0
  %4318 = vmatpush1.msra.mxu0 0.0
  %4319 = vmatprep.subr.mxu0 0.0
  %4320 = vmatpush1.msra.mxu0 0.0
  %4321 = vmatprep.subr.mxu0 0.0
  %4322 = vmatpush1.msra.mxu0 0.0
  %4323 = vmatprep.subr.mxu0 0.0
  %4324 = vmatpush1.msra.mxu0 0.0
  %4325 = vmatprep.subr.mxu0 0.0
  %4326 = vmatpush1.msra.mxu0 0.0
  %4327 = vmatprep.subr.mxu0 0.0
  %4328 = vmatpush1.msra.mxu0 0.0
  %4329 = vmatprep.subr.mxu0 0.0
  %4330 = vmatpush1.msra.mxu0 0.0
  %4331 = vmatprep.subr.mxu0 0.0
  %4332 = vmatpush1.msra.mxu0 0.0
  %4333 = vmatprep.subr.mxu0 0.0
  %4334 = vmatpush1.msra.mxu0 0.0
  %4335 = vmatprep.subr.mxu0 0.0
  %4336 = vmatpush1.msra.mxu0 0.0
  %4337 = vmatprep.subr.mxu0 0.0
  %4338 = vmatpush1.msra.mxu0 0.0
  %4339 = vmatprep.subr.mxu0 0.0
  %4340 = vmatpush1.msra.mxu0 0.0
  %4341 = vmatprep.subr.mxu0 0.0
  %4342 = vmatpush1.msra.mxu0 0.0
  %4343 = vmatprep.mubr.f32.mxu0 0.0
  %4344 = vmatmul.mubr.f32.gmra.mrb[0].mxu0 %v3769
  %v4345 = vpop.f32.mrb[0].mxu0
  %v4346 = vadd.f32 0.0, %v4345
  %v4347 = vpop.f32.mrb[0].mxu0
  %4348 = vmatprep.mubr.f32.mxu0 0.0
  %4349 = vmatmul.mubr.f32.gmra.mrb[0].mxu0 %v3772
  %v4350 = vpop.f32.mrb[0].mxu0
  %v4351 = vadd.f32 0.0, %v4350
  %v4352 = vpop.f32.mrb[0].mxu0
  %4353 = vdwg.mxu0
  %4354 = vst.msk [vmem:[#allocation4 + $0x60] sm:$0xff] %vm3849, %v4346
  %4355 = vst.msk [vmem:[#allocation4 + $0x68] sm:$0xff] %vm3849, %v4351
  %v4356 = vld [vmem:[%s9 + $0x7] sm:$0x1]
  %v4357 = vlaneseq
  %v4358 = vshrl.u32 %v4357, 7
  %v4359 = vsub.s32 0, %v4358
  %v4360 = vrot.slane %v4356, %v4359
  %vm4361 = vcmp.eq.s32.totalorder %v40, %v4360
  %v4362 = vsel %vm4361, 1.0, 0.0
  %4363 = vmatprep.subr.mxu0 0.0
  %4364 = vmatpush1.msra.mxu0 %v4362
  %4365 = vmatprep.subr.mxu0 0.0
  %4366 = vmatpush1.msra.mxu0 0.0
  %4367 = vmatprep.subr.mxu0 0.0
  %4368 = vmatpush1.msra.mxu0 0.0
  %4369 = vmatprep.subr.mxu0 0.0
  %4370 = vmatpush1.msra.mxu0 0.0
  %4371 = vmatprep.subr.mxu0 0.0
  %4372 = vmatpush1.msra.mxu0 0.0
  %4373 = vmatprep.subr.mxu0 0.0
  %4374 = vmatpush1.msra.mxu0 0.0
  %4375 = vmatprep.subr.mxu0 0.0
  %4376 = vmatpush1.msra.mxu0 0.0
  %4377 = vmatprep.subr.mxu0 0.0
  %4378 = vmatpush1.msra.mxu0 0.0
  %4379 = vmatprep.subr.mxu0 0.0
  %4380 = vmatpush1.msra.mxu0 0.0
  %4381 = vmatprep.subr.mxu0 0.0
  %4382 = vmatpush1.msra.mxu0 0.0
  %4383 = vmatprep.subr.mxu0 0.0
  %4384 = vmatpush1.msra.mxu0 0.0
  %4385 = vmatprep.subr.mxu0 0.0
  %4386 = vmatpush1.msra.mxu0 0.0
  %4387 = vmatprep.subr.mxu0 0.0
  %4388 = vmatpush1.msra.mxu0 0.0
  %4389 = vmatprep.subr.mxu0 0.0
  %4390 = vmatpush1.msra.mxu0 0.0
  %4391 = vmatprep.subr.mxu0 0.0
  %4392 = vmatpush1.msra.mxu0 0.0
  %4393 = vmatprep.subr.mxu0 0.0
  %4394 = vmatpush1.msra.mxu0 0.0
  %4395 = vmatprep.subr.mxu0 0.0
  %4396 = vmatpush1.msra.mxu0 0.0
  %4397 = vmatprep.subr.mxu0 0.0
  %4398 = vmatpush1.msra.mxu0 0.0
  %4399 = vmatprep.subr.mxu0 0.0
  %4400 = vmatpush1.msra.mxu0 0.0
  %4401 = vmatprep.subr.mxu0 0.0
  %4402 = vmatpush1.msra.mxu0 0.0
  %4403 = vmatprep.subr.mxu0 0.0
  %4404 = vmatpush1.msra.mxu0 0.0
  %4405 = vmatprep.subr.mxu0 0.0
  %4406 = vmatpush1.msra.mxu0 0.0
  %4407 = vmatprep.subr.mxu0 0.0
  %4408 = vmatpush1.msra.mxu0 0.0
  %4409 = vmatprep.subr.mxu0 0.0
  %4410 = vmatpush1.msra.mxu0 0.0
  %4411 = vmatprep.subr.mxu0 0.0
  %4412 = vmatpush1.msra.mxu0 0.0
  %4413 = vmatprep.subr.mxu0 0.0
  %4414 = vmatpush1.msra.mxu0 0.0
  %4415 = vmatprep.subr.mxu0 0.0
  %4416 = vmatpush1.msra.mxu0 0.0
  %4417 = vmatprep.subr.mxu0 0.0
  %4418 = vmatpush1.msra.mxu0 0.0
  %4419 = vmatprep.subr.mxu0 0.0
  %4420 = vmatpush1.msra.mxu0 0.0
  %4421 = vmatprep.subr.mxu0 0.0
  %4422 = vmatpush1.msra.mxu0 0.0
  %4423 = vmatprep.subr.mxu0 0.0
  %4424 = vmatpush1.msra.mxu0 0.0
  %4425 = vmatprep.subr.mxu0 0.0
  %4426 = vmatpush1.msra.mxu0 0.0
  %4427 = vmatprep.mubr.f32.mxu0 0.0
  %4428 = vmatmul.mubr.f32.gmra.mrb[0].mxu0 %v3769
  %v4429 = vpop.f32.mrb[0].mxu0
  %v4430 = vadd.f32 0.0, %v4429
  %v4431 = vpop.f32.mrb[0].mxu0
  %4432 = vmatprep.mubr.f32.mxu0 0.0
  %4433 = vmatmul.mubr.f32.gmra.mrb[0].mxu0 %v3772
  %v4434 = vpop.f32.mrb[0].mxu0
  %v4435 = vadd.f32 0.0, %v4434
  %v4436 = vpop.f32.mrb[0].mxu0
  %4437 = vdwg.mxu0
  %4438 = vst.msk [vmem:[#allocation4 + $0x70] sm:$0xff] %vm3849, %v4430
  %4439 = vst.msk [vmem:[#allocation4 + $0x78] sm:$0xff] %vm3849, %v4435
  %v4440 = vld [vmem:[%s9 + $0x8] sm:$0x1]
  %v4441 = vlaneseq
  %v4442 = vshrl.u32 %v4441, 7
  %v4443 = vsub.s32 0, %v4442
  %v4444 = vrot.slane %v4440, %v4443
  %vm4445 = vcmp.eq.s32.totalorder %v40, %v4444
  %v4446 = vsel %vm4445, 1.0, 0.0
  %4447 = vmatprep.subr.mxu0 0.0
  %4448 = vmatpush1.msra.mxu0 %v4446
  %4449 = vmatprep.subr.mxu0 0.0
  %4450 = vmatpush1.msra.mxu0 0.0
  %4451 = vmatprep.subr.mxu0 0.0
  %4452 = vmatpush1.msra.mxu0 0.0
  %4453 = vmatprep.subr.mxu0 0.0
  %4454 = vmatpush1.msra.mxu0 0.0
  %4455 = vmatprep.subr.mxu0 0.0
  %4456 = vmatpush1.msra.mxu0 0.0
  %4457 = vmatprep.subr.mxu0 0.0
  %4458 = vmatpush1.msra.mxu0 0.0
  %4459 = vmatprep.subr.mxu0 0.0
  %4460 = vmatpush1.msra.mxu0 0.0
  %4461 = vmatprep.subr.mxu0 0.0
  %4462 = vmatpush1.msra.mxu0 0.0
  %4463 = vmatprep.subr.mxu0 0.0
  %4464 = vmatpush1.msra.mxu0 0.0
  %4465 = vmatprep.subr.mxu0 0.0
  %4466 = vmatpush1.msra.mxu0 0.0
  %4467 = vmatprep.subr.mxu0 0.0
  %4468 = vmatpush1.msra.mxu0 0.0
  %4469 = vmatprep.subr.mxu0 0.0
  %4470 = vmatpush1.msra.mxu0 0.0
  %4471 = vmatprep.subr.mxu0 0.0
  %4472 = vmatpush1.msra.mxu0 0.0
  %4473 = vmatprep.subr.mxu0 0.0
  %4474 = vmatpush1.msra.mxu0 0.0
  %4475 = vmatprep.subr.mxu0 0.0
  %4476 = vmatpush1.msra.mxu0 0.0
  %4477 = vmatprep.subr.mxu0 0.0
  %4478 = vmatpush1.msra.mxu0 0.0
  %4479 = vmatprep.subr.mxu0 0.0
  %4480 = vmatpush1.msra.mxu0 0.0
  %4481 = vmatprep.subr.mxu0 0.0
  %4482 = vmatpush1.msra.mxu0 0.0
  %4483 = vmatprep.subr.mxu0 0.0
  %4484 = vmatpush1.msra.mxu0 0.0
  %4485 = vmatprep.subr.mxu0 0.0
  %4486 = vmatpush1.msra.mxu0 0.0
  %4487 = vmatprep.subr.mxu0 0.0
  %4488 = vmatpush1.msra.mxu0 0.0
  %4489 = vmatprep.subr.mxu0 0.0
  %4490 = vmatpush1.msra.mxu0 0.0
  %4491 = vmatprep.subr.mxu0 0.0
  %4492 = vmatpush1.msra.mxu0 0.0
  %4493 = vmatprep.subr.mxu0 0.0
  %4494 = vmatpush1.msra.mxu0 0.0
  %4495 = vmatprep.subr.mxu0 0.0
  %4496 = vmatpush1.msra.mxu0 0.0
  %4497 = vmatprep.subr.mxu0 0.0
  %4498 = vmatpush1.msra.mxu0 0.0
  %4499 = vmatprep.subr.mxu0 0.0
  %4500 = vmatpush1.msra.mxu0 0.0
  %4501 = vmatprep.subr.mxu0 0.0
  %4502 = vmatpush1.msra.mxu0 0.0
  %4503 = vmatprep.subr.mxu0 0.0
  %4504 = vmatpush1.msra.mxu0 0.0
  %4505 = vmatprep.subr.mxu0 0.0
  %4506 = vmatpush1.msra.mxu0 0.0
  %4507 = vmatprep.subr.mxu0 0.0
  %4508 = vmatpush1.msra.mxu0 0.0
  %4509 = vmatprep.subr.mxu0 0.0
  %4510 = vmatpush1.msra.mxu0 0.0
  %4511 = vmatprep.mubr.f32.mxu0 0.0
  %4512 = vmatmul.mubr.f32.gmra.mrb[0].mxu0 %v3769
  %v4513 = vpop.f32.mrb[0].mxu0
  %v4514 = vadd.f32 0.0, %v4513
  %v4515 = vpop.f32.mrb[0].mxu0
  %4516 = vmatprep.mubr.f32.mxu0 0.0
  %4517 = vmatmul.mubr.f32.gmra.mrb[0].mxu0 %v3772
  %v4518 = vpop.f32.mrb[0].mxu0
  %v4519 = vadd.f32 0.0, %v4518
  %v4520 = vpop.f32.mrb[0].mxu0
  %4521 = vdwg.mxu0
  %4522 = vst.msk [vmem:[#allocation4 + $0x80] sm:$0xff] %vm3849, %v4514
  %4523 = vst.msk [vmem:[#allocation4 + $0x88] sm:$0xff] %vm3849, %v4519
  %v4524 = vld [vmem:[%s3] sm:$0xff]
  %v4525 = vld [vmem:[%s3 + $0x8] sm:$0xff]
  %v4526 = vld [vmem:[%s3 + $0x10] sm:$0xff]
  %v4527 = vld [vmem:[%s3 + $0x18] sm:$0xff]
  %v4528 = vld [vmem:[%s3 + $0x20] sm:$0xff]
  %v4529 = vld [vmem:[%s3 + $0x28] sm:$0xff]
  %v4530 = vld [vmem:[%s3 + $0x30] sm:$0xff]
  %v4531 = vld [vmem:[%s3 + $0x38] sm:$0xff]
  %v4532 = vld [vmem:[#allocation4] sm:$0xff]
  %v4533 = vld [vmem:[#allocation4 + $0x8] sm:$0xff]
  %v4534 = vld [vmem:[#allocation4 + $0x10] sm:$0xff]
  %v4535 = vld [vmem:[#allocation4 + $0x18] sm:$0xff]
  %v4536 = vld [vmem:[#allocation4 + $0x20] sm:$0xff]
  %v4537 = vld [vmem:[#allocation4 + $0x28] sm:$0xff]
  %v4538 = vld [vmem:[#allocation4 + $0x30] sm:$0xff]
  %v4539 = vld [vmem:[#allocation4 + $0x38] sm:$0xff]
  %v4540 = vld [vmem:[#allocation4 + $0x40] sm:$0xff]
  %v4541 = vld [vmem:[#allocation4 + $0x48] sm:$0xff]
  %v4542 = vld [vmem:[#allocation4 + $0x50] sm:$0xff]
  %v4543 = vld [vmem:[#allocation4 + $0x58] sm:$0xff]
  %v4544 = vld [vmem:[#allocation4 + $0x60] sm:$0xff]
  %v4545 = vld [vmem:[#allocation4 + $0x68] sm:$0xff]
  %v4546 = vld [vmem:[#allocation4 + $0x70] sm:$0xff]
  %v4547 = vld [vmem:[#allocation4 + $0x78] sm:$0xff]
  %v4548 = vld [vmem:[#allocation4 + $0x80] sm:$0xff]
  %v4549 = vld [vmem:[#allocation4 + $0x88] sm:$0xff]
  %v4550 = vld [vmem:[%s6] sm:$0xff]
  %v4551 = vld [vmem:[%s6 + $0x8] sm:$0xff]
  %v4552 = vld [vmem:[%s6 + $0x10] sm:$0xff]
  %v4553 = vld [vmem:[%s6 + $0x18] sm:$0xff]
  %4555 = vset.pattern.permute.xlu0 0
  %4556 = vperm.xlu0 %4555, %v4550
  %v4557 = vpop.permute.xlu0 %4556
  %4560 = vset.pattern.permute.xlu0 0
  %4561 = vperm.xlu0 %4560, %v4551
  %v4562 = vpop.permute.xlu0 %4561
  %4565 = vset.pattern.permute.xlu0 0
  %4566 = vperm.xlu0 %4565, %v4552
  %v4567 = vpop.permute.xlu0 %4566
  %4570 = vset.pattern.permute.xlu0 0
  %4571 = vperm.xlu0 %4570, %v4553
  %v4572 = vpop.permute.xlu0 %4571
  %vm4574 = vcmask 130048
  %v4576 = vsel %vm4574, %v4525, 0
  %v4579 = vsel %vm4574, %v4527, 0
  %v4582 = vsel %vm4574, %v4529, 0
  %v4585 = vsel %vm4574, %v4531, 0
  %4587 = vmatprep.subr.mxu0 0.0
  %4588 = vmatpush1.msra.mxu0 %v4532
  %4589 = vmatprep.subr.mxu0 0.0
  %4590 = vmatpush1.msra.mxu0 %v4533
  %4591 = vmatprep.subr.mxu0 0.0
  %4592 = vmatpush1.msra.mxu0 %v4534
  %4593 = vmatprep.subr.mxu0 0.0
  %4594 = vmatpush1.msra.mxu0 %v4535
  %4595 = vmatprep.subr.mxu0 0.0
  %4596 = vmatpush1.msra.mxu0 %v4536
  %4597 = vmatprep.subr.mxu0 0.0
  %4598 = vmatpush1.msra.mxu0 %v4537
  %4599 = vmatprep.subr.mxu0 0.0
  %4600 = vmatpush1.msra.mxu0 %v4538
  %4601 = vmatprep.subr.mxu0 0.0
  %4602 = vmatpush1.msra.mxu0 %v4539
  %4603 = vmatprep.subr.mxu0 0.0
  %4604 = vmatpush1.msra.mxu0 %v4540
  %4605 = vmatprep.subr.mxu0 0.0
  %4606 = vmatpush1.msra.mxu0 %v4541
  %4607 = vmatprep.subr.mxu0 0.0
  %4608 = vmatpush1.msra.mxu0 %v4542
  %4609 = vmatprep.subr.mxu0 0.0
  %4610 = vmatpush1.msra.mxu0 %v4543
  %4611 = vmatprep.subr.mxu0 0.0
  %4612 = vmatpush1.msra.mxu0 %v4544
  %4613 = vmatprep.subr.mxu0 0.0
  %4614 = vmatpush1.msra.mxu0 %v4545
  %4615 = vmatprep.subr.mxu0 0.0
  %4616 = vmatpush1.msra.mxu0 %v4546
  %4617 = vmatprep.subr.mxu0 0.0
  %4618 = vmatpush1.msra.mxu0 %v4547
  %4619 = vmatprep.subr.mxu0 0.0
  %4620 = vmatpush1.msra.mxu0 %v4548
  %4621 = vmatprep.subr.mxu0 0.0
  %4622 = vmatpush1.msra.mxu0 %v4549
  %4623 = vmatprep.subr.mxu0 0.0
  %4624 = vmatpush1.msra.mxu0 0.0
  %4625 = vmatprep.subr.mxu0 0.0
  %4626 = vmatpush1.msra.mxu0 0.0
  %4627 = vmatprep.subr.mxu0 0.0
  %4628 = vmatpush1.msra.mxu0 0.0
  %4629 = vmatprep.subr.mxu0 0.0
  %4630 = vmatpush1.msra.mxu0 0.0
  %4631 = vmatprep.subr.mxu0 0.0
  %4632 = vmatpush1.msra.mxu0 0.0
  %4633 = vmatprep.subr.mxu0 0.0
  %4634 = vmatpush1.msra.mxu0 0.0
  %4635 = vmatprep.subr.mxu0 0.0
  %4636 = vmatpush1.msra.mxu0 0.0
  %4637 = vmatprep.subr.mxu0 0.0
  %4638 = vmatpush1.msra.mxu0 0.0
  %4639 = vmatprep.subr.mxu0 0.0
  %4640 = vmatpush1.msra.mxu0 0.0
  %4641 = vmatprep.subr.mxu0 0.0
  %4642 = vmatpush1.msra.mxu0 0.0
  %4643 = vmatprep.subr.mxu0 0.0
  %4644 = vmatpush1.msra.mxu0 0.0
  %4645 = vmatprep.subr.mxu0 0.0
  %4646 = vmatpush1.msra.mxu0 0.0
  %4647 = vmatprep.subr.mxu0 0.0
  %4648 = vmatpush1.msra.mxu0 0.0
  %4649 = vmatprep.subr.mxu0 0.0
  %4650 = vmatpush1.msra.mxu0 0.0
  %4651 = vmatprep.mubr.f32.mxu0 %v4576
  %4652 = vmatmul.mubr.f32.gmra.mrb[0].mxu0 %v4524
  %v4653 = vpop.f32.mrb[0].mxu0
  %v4654 = vadd.f32 %v4557, %v4653
  %v4655 = vpop.f32.mrb[0].mxu0
  %4656 = vmatprep.mubr.f32.mxu0 %v4579
  %4657 = vmatmul.mubr.f32.gmra.mrb[0].mxu0 %v4526
  %v4658 = vpop.f32.mrb[0].mxu0
  %v4659 = vadd.f32 %v4562, %v4658
  %v4660 = vpop.f32.mrb[0].mxu0
  %4661 = vmatprep.mubr.f32.mxu0 %v4582
  %4662 = vmatmul.mubr.f32.gmra.mrb[0].mxu0 %v4528
  %v4663 = vpop.f32.mrb[0].mxu0
  %v4664 = vadd.f32 %v4567, %v4663
  %v4665 = vpop.f32.mrb[0].mxu0
  %4666 = vmatprep.mubr.f32.mxu0 %v4585
  %4667 = vmatmul.mubr.f32.gmra.mrb[0].mxu0 %v4530
  %v4668 = vpop.f32.mrb[0].mxu0
  %v4669 = vadd.f32 %v4572, %v4668
  %v4670 = vpop.f32.mrb[0].mxu0
  %4671 = vdwg.mxu0
  %v4672 = vmax.f32 %v4654, 0.0
  %v4673 = vmax.f32 %v4659, 0.0
  %v4674 = vmax.f32 %v4664, 0.0
  %v4675 = vmax.f32 %v4669, 0.0
  %4676 = vst.msk [vmem:[%s10] sm:$0xff] %vm3849, %v4672
  %4677 = vst.msk [vmem:[%s10 + $0x8] sm:$0xff] %vm3849, %v4673
  %4678 = vst.msk [vmem:[%s10 + $0x10] sm:$0xff] %vm3849, %v4674
  %4679 = vst.msk [vmem:[%s10 + $0x18] sm:$0xff] %vm3849, %v4675
  // Predicated region
  $region42: #{cnn_base_forward.1} parent=0 // pred_check
    _
  $region43: #{cnn_base_forward.1} parent=0 // pred_check_branch
    %4681 = sbr.rel (0) target = $region45
  $region44: #{cnn_base_forward.1} parent=0 // pred_region
    _
  $region45: #{cnn_base_forward.1} parent=0 // pred_fallthru
    _
  // Predicated region
  $region46: #{cnn_base_forward.1} parent=0 // pred_check
    _
  $region47: #{cnn_base_forward.1} parent=0 // pred_check_branch
    %4683 = sbr.rel (0) target = $region49
  $region48: #{cnn_base_forward.1} parent=0 // pred_region
    _
  $region49: #{cnn_base_forward.1} parent=0 // pred_fallthru
    _

</llo_original>
